<compile_context>
chip_gen: v5e
topology: v5e:2x2
jax: 0.10.0
libtpu: 0.0.40
codegen_flags: <defaults>
</compile_context>

<pallas_src>
import functools

import jax
import jax.numpy as jnp
from jax.experimental import pallas as pl
from jax.experimental.pallas import tpu as pltpu


LRELU_SLOPE = 0.01  # PyTorch nn.LeakyReLU default negative_slope


def _round_up(x, m):
    return ((x + m - 1) // m) * m


# ----------------------------------------------------------------------------
# Pallas kernels: transposed conv-as-matmul with fused bias + LeakyReLU,
# optionally followed by a fused 1x1x1 projection in the same epilogue.
#   single:  out[c, m] = lrelu( W1[c, k] @ x[k, m] + b1[c] )
#   fused :  out[c2,m] = W2[c2,c1] @ lrelu(W1 @ x + b1) + b2[c2]
# K and Cout are full-extent blocks (no padding); the lane axis of the output
# block is M -> lane-dense unmasked stores for the large layers.
# ----------------------------------------------------------------------------
def _conv_mm_kernel(x_ref, w1_ref, b1_ref, o_ref, *, act):
    r = jnp.dot(w1_ref[...], x_ref[0], preferred_element_type=jnp.float32)
    r = r + b1_ref[...]                       # (C1, tm) + (C1, 1)
    if act:
        r = jnp.where(r >= 0.0, r, LRELU_SLOPE * r)
    o_ref[0] = r.astype(o_ref.dtype)


def _conv_mm_fused_kernel(x_ref, w1_ref, b1_ref, w2_ref, b2_ref, o_ref):
    r = jnp.dot(w1_ref[...], x_ref[0], preferred_element_type=jnp.float32)
    r = r + b1_ref[...]
    r = jnp.where(r >= 0.0, r, LRELU_SLOPE * r)   # LeakyReLU between the convs
    r2 = jnp.dot(w2_ref[...], r, preferred_element_type=jnp.float32)
    r2 = r2 + b2_ref[...]
    o_ref[0] = r2.astype(o_ref.dtype)


def _pick_tm(mb):
    # Small layers: single full-extent M block.  Big layers: cap at 1024 so
    # there are >=2 parallel M steps (v7x has 2 TensorCores per chip).
    if mb <= 1024:
        return _round_up(mb, 8)
    return 1024


def pallas_conv_matmul(xT, w1T, b1, w2T=None, b2=None, act=True,
                       out_dtype=jnp.bfloat16):
    """xT: [Nb, K, Mb] (bf16), w1T: [C1, K] (bf16), b1: [C1, 1] (f32).
    Optional fused 1x1x1 tail: w2T [C2, C1] (f32), b2 [C2, 1] (f32).
    Returns [Nb, Cout, Mb]."""
    nb, K, mb = xT.shape
    c1 = w1T.shape[0]
    cout = c1 if w2T is None else w2T.shape[0]

    tm = _pick_tm(mb)
    mp = _round_up(mb, tm)
    if mp != mb:  # pad only M (never K / Cout)
        xT = jnp.pad(xT, ((0, 0), (0, 0), (0, mp - mb)))

    x_spec = pl.BlockSpec((1, K, tm), lambda b, i: (b, 0, i))
    w1_spec = pl.BlockSpec((c1, K), lambda b, i: (0, 0))
    b1_spec = pl.BlockSpec((c1, 1), lambda b, i: (0, 0))
    out_spec = pl.BlockSpec((1, cout, tm), lambda b, i: (b, 0, i))

    if w2T is None:
        kernel = functools.partial(_conv_mm_kernel, act=act)
        in_specs = [x_spec, w1_spec, b1_spec]
        args = (xT, w1T, b1)
    else:
        kernel = _conv_mm_fused_kernel
        in_specs = [x_spec, w1_spec, b1_spec,
                    pl.BlockSpec((cout, c1), lambda b, i: (0, 0)),
                    pl.BlockSpec((cout, 1), lambda b, i: (0, 0))]
        args = (xT, w1T, b1, w2T, b2)

    out = pl.pallas_call(
        kernel,
        out_shape=jax.ShapeDtypeStruct((nb, cout, mp), out_dtype),
        grid_spec=pltpu.PrefetchScalarGridSpec(
            num_scalar_prefetch=0,
            grid=(nb, mp // tm),
            in_specs=in_specs,
            out_specs=out_spec,
        ),
        compiler_params=pltpu.CompilerParams(
            dimension_semantics=("parallel", "parallel"),
        ),
    )(*args)

    if mp != mb:
        out = out[:, :, :mb]
    return out


# ----------------------------------------------------------------------------
# Conv3d = channel-first im2col (JAX glue) + Pallas matmul kernel (hot path)
# ----------------------------------------------------------------------------
def conv3d(x, w1T, b1, *, kernel_size, stride=1, padding=0, act=True,
           w2T=None, b2=None, out_dtype=jnp.bfloat16):
    """x: [Nb, Cin, D, H, W] (bf16); w1T: [Cout, kd*kh*kw*Cin] with
    (tap(dz,dy,dx), Cin) ordering.  Returns [Nb, Cout, Do, Ho, Wo]."""
    nb, cin, D, H, W = x.shape
    kd = kh = kw = kernel_size
    if padding > 0:
        p = padding
        x = jnp.pad(x, ((0, 0), (0, 0), (p, p), (p, p), (p, p)))
    Do = (D + 2 * padding - kd) // stride + 1
    Ho = (H + 2 * padding - kh) // stride + 1
    Wo = (W + 2 * padding - kw) // stride + 1

    if kd == kh == kw == 1 and stride == 1:
        patches = x.reshape(nb, cin, Do * Ho * Wo)
    else:
        # TODO(synk): im2col is still materialized in HBM; a tap-accumulating
        # kernel (grid axis over the 27 taps with Element offsets) would avoid
        # the 27x blow-up but can't express the stride-2 stages cleanly.
        cols = []
        for dz in range(kd):
            for dy in range(kh):
                for dx in range(kw):
                    cols.append(x[:, :,
                                  dz: dz + stride * Do: stride,
                                  dy: dy + stride * Ho: stride,
                                  dx: dx + stride * Wo: stride])
        # [Nb, ntaps, Cin, Do, Ho, Wo] -> [Nb, K, M]   (K = (tap, Cin))
        patches = jnp.stack(cols, axis=1).reshape(
            nb, kd * kh * kw * cin, Do * Ho * Wo)

    y = pallas_conv_matmul(patches, w1T, b1, w2T=w2T, b2=b2, act=act,
                           out_dtype=out_dtype)
    return y.reshape(nb, y.shape[1], Do, Ho, Wo)


def upsample2_nearest(x):
    # Single broadcast+reshape (one XLA copy) instead of 3 sequential repeats.
    nb, c, D, H, W = x.shape
    x = jnp.broadcast_to(x[:, :, :, None, :, None, :, None],
                         (nb, c, D, 2, H, 2, W, 2))
    return x.reshape(nb, c, 2 * D, 2 * H, 2 * W)


# ----------------------------------------------------------------------------
# Parameter init (deterministic; matches Seq2Seq3d.init(): trunc_normal 0.02,
# zero bias).  Weights are stored pre-reshaped to [Cout, K] and pre-cast so no
# reshape/cast ops run inside the forward pass.
# ----------------------------------------------------------------------------
def trunc_normal(key, shape, std=0.02):
    return jax.random.truncated_normal(key, -2.0, 2.0, shape, jnp.float32) * std


def conv_w(key, cin, cout, k, dtype=jnp.bfloat16):
    w = trunc_normal(key, (cout, k, k, k, cin))        # (Cout, dz, dy, dx, Cin)
    return w.reshape(cout, k * k * k * cin).astype(dtype)


def build_params(key):
    keys = jax.random.split(key, 16)
    c_enc = (8, 16)       # encoder channels per stage
    zdim = 8              # latent_space_dim
    n_dom = 2             # number of target domains
    f32 = jnp.float32
    return {
        # ---- ImageEncoder3d ----
        "enc1_w": conv_w(keys[0], 1, c_enc[0], 3),
        "enc1_b": jnp.zeros((c_enc[0], 1), f32),
        "enc1r_w": conv_w(keys[1], c_enc[0], c_enc[0], 3),
        "enc1r_b": jnp.zeros((c_enc[0], 1), f32),
        "enc2_w": conv_w(keys[2], c_enc[0], c_enc[1], 3),
        "enc2_b": jnp.zeros((c_enc[1], 1), f32),
        "enc2r_w": conv_w(keys[3], c_enc[1], c_enc[1], 3),
        "enc2r_b": jnp.zeros((c_enc[1], 1), f32),
        "enc_z_w": conv_w(keys[4], c_enc[1], zdim, 1, dtype=f32),   # fused tail
        "enc_z_b": jnp.zeros((zdim, 1), f32),
        # ---- HyperImageDecoder3d ----
        "hyper_w": trunc_normal(keys[5], (n_dom, 2 * zdim)),        # FiLM g/b
        "dec_in_w": conv_w(keys[6], zdim, c_enc[1], 1),
        "dec_in_b": jnp.zeros((c_enc[1], 1), f32),
        "dec1_w": conv_w(keys[7], c_enc[1], c_enc[0], 3),
        "dec1_b": jnp.zeros((c_enc[0], 1), f32),
        "dec2_w": conv_w(keys[8], c_enc[0], c_enc[0], 3),
        "dec2_b": jnp.zeros((c_enc[0], 1), f32),
        "dec_out_w": conv_w(keys[9], c_enc[0], 1, 1, dtype=f32),    # fused tail
        "dec_out_b": jnp.zeros((1, 1), f32),
    }


# ----------------------------------------------------------------------------
# Seq2Seq3d forward:  z = image_encoder(x_src); out = hyper_decoder(z, domain)
# Stays in NCDHW (channel-first) throughout so no boundary transposes and the
# kernel output lane axis is the large spatial M axis.
# ----------------------------------------------------------------------------
def seq2seq3d_forward(params, x_src, domain_tgt):
    x = x_src.astype(jnp.bfloat16)   # bf16 activations, f32 MXU accumulation

    # --- ImageEncoder3d ---
    h = conv3d(x, params["enc1_w"], params["enc1_b"], kernel_size=3,
               stride=2, padding=1)
    h = conv3d(h, params["enc1r_w"], params["enc1r_b"], kernel_size=3,
               stride=1, padding=1)
    h = conv3d(h, params["enc2_w"], params["enc2_b"], kernel_size=3,
               stride=2, padding=1)
    # enc2r (3x3x3 + LeakyReLU) with the 1x1x1 latent projection fused into
    # the same kernel epilogue -> z.
    z = conv3d(h, params["enc2r_w"], params["enc2r_b"], kernel_size=3,
               stride=1, padding=1,
               w2T=params["enc_z_w"], b2=params["enc_z_b"])

    # --- HyperImageDecoder3d ---
    # FiLM-style domain conditioning: per-channel affine from target domain.
    gb = domain_tgt.astype(jnp.float32) @ params["hyper_w"]     # [Nb, 2*zdim]
    zdim = z.shape[1]
    gamma = gb[:, :zdim, None, None, None]
    beta = gb[:, zdim:, None, None, None]
    z = (z.astype(jnp.float32) * (1.0 + gamma) + beta).astype(jnp.bfloat16)

    d = conv3d(z, params["dec_in_w"], params["dec_in_b"], kernel_size=1)
    d = upsample2_nearest(d)
    d = conv3d(d, params["dec1_w"], params["dec1_b"], kernel_size=3,
               stride=1, padding=1)
    d = upsample2_nearest(d)
    # dec2 (3x3x3 + LeakyReLU) with the final 1x1x1 output conv fused in.
    out = conv3d(d, params["dec2_w"], params["dec2_b"], kernel_size=3,
                 stride=1, padding=1,
                 w2T=params["dec_out_w"], b2=params["dec_out_b"],
                 out_dtype=jnp.float32)
    return out  # NCDHW, matching the PyTorch output convention


if __name__ == "__main__":
    key = jax.random.PRNGKey(0)
    k_param, k_x = jax.random.split(key)

    params = build_params(k_param)

    # x_src: [N=2, C=1, D=8, H=16, W=16] (NCDHW, torch convention)
    x_src = jax.random.normal(k_x, (2, 1, 8, 16, 16), dtype=jnp.float32)
    # domain_tgt: one-hot target-domain code per batch element.
    domain_tgt = jnp.array([[1.0, 0.0], [0.0, 1.0]], dtype=jnp.float32)

    fwd = jax.jit(seq2seq3d_forward)
    out = fwd(params, x_src, domain_tgt)
    out = jax.block_until_ready(out)

    assert out.shape == (2, 1, 8, 16, 16), out.shape
    assert jnp.all(jnp.isfinite(out))
    print("KERNEL_OK")
</pallas_src>

<mosaic_0001>
module attributes {stable_mosaic.version = 11 : i64} {
  func.func @_conv_mm_kernel(%arg0: i32, %arg1: i32, %arg2: memref<1x27x256xbf16, #tpu.memory_space<vmem>>, %arg3: memref<8x27xbf16, #tpu.memory_space<vmem>>, %arg4: memref<8x1xf32, #tpu.memory_space<vmem>>, %arg5: memref<1x8x256xbf16, #tpu.memory_space<vmem>>) attributes {dimension_semantics = [#tpu.dimension_semantics<parallel>, #tpu.dimension_semantics<parallel>], iteration_bounds = array<i64: 2, 1>, scalar_prefetch = 0 : i64, scratch_operands = 0 : i64, tpu.core_type = #tpu.core_type<tc>, window_params = [{transform_indices = @transform_0, window_bounds = array<i64: 1, 27, 256>}, {pipeline_mode = #tpu.pipeline_mode<synchronous>, transform_indices = @transform_1, window_bounds = array<i64: 8, 27>}, {pipeline_mode = #tpu.pipeline_mode<synchronous>, transform_indices = @transform_2, window_bounds = array<i64: 8, 1>}, {transform_indices = @transform_3, window_bounds = array<i64: 1, 8, 256>}]} {
    %c0 = arith.constant 0 : index
    %c0_0 = arith.constant 0 : index
    %0 = vector.load %arg3[%c0, %c0_0] : memref<8x27xbf16, #tpu.memory_space<vmem>>, vector<8x27xbf16>
    %c0_1 = arith.constant 0 : index
    %c0_2 = arith.constant 0 : index
    %c0_3 = arith.constant 0 : index
    %1 = vector.load %arg2[%c0_1, %c0_2, %c0_3] : memref<1x27x256xbf16, #tpu.memory_space<vmem>>, vector<1x27x256xbf16>
    %2 = vector.shape_cast %1 : vector<1x27x256xbf16> to vector<27x256xbf16>
    %cst = arith.constant dense<0.000000e+00> : vector<8x256xf32>
    %3 = tpu.matmul %0, %2, %cst {dimension_numbers = #tpu.dot_dimension_numbers<[1], [0], [0], [1], [0, 0, 1, 1], [], []>} : vector<8x27xbf16>, vector<27x256xbf16>, vector<8x256xf32> -> vector<8x256xf32>
    %c0_4 = arith.constant 0 : index
    %c0_5 = arith.constant 0 : index
    %4 = vector.load %arg4[%c0_4, %c0_5] : memref<8x1xf32, #tpu.memory_space<vmem>>, vector<8x1xf32>
    %5 = vector.broadcast %4 : vector<8x1xf32> to vector<8x256xf32>
    %6 = arith.addf %3, %5 : vector<8x256xf32>
    %cst_6 = arith.constant 0.000000e+00 : f32
    %7 = vector.broadcast %cst_6 : f32 to vector<8x256xf32>
    %8 = arith.cmpf oge, %6, %7 : vector<8x256xf32>
    %cst_7 = arith.constant 0.00999999977 : f32
    %9 = vector.broadcast %cst_7 : f32 to vector<8x256xf32>
    %10 = arith.mulf %9, %6 : vector<8x256xf32>
    %11 = arith.select %8, %6, %10 : vector<8x256xi1>, vector<8x256xf32>
    %12 = arith.truncf %11 : vector<8x256xf32> to vector<8x256xbf16>
    %c0_8 = arith.constant 0 : index
    %c0_9 = arith.constant 0 : index
    %c0_10 = arith.constant 0 : index
    %13 = vector.load %arg5[%c0_8, %c0_9, %c0_10] : memref<1x8x256xbf16, #tpu.memory_space<vmem>>, vector<1x8x256xbf16>
    %14 = vector.shape_cast %13 : vector<1x8x256xbf16> to vector<8x256xbf16>
    %15 = vector.shape_cast %12 : vector<8x256xbf16> to vector<1x8x256xbf16>
    tpu.vector_store %arg5[%c0_8, %c0_9, %c0_10], %15 {strides = array<i32>} : memref<1x8x256xbf16, #tpu.memory_space<vmem>>, vector<1x8x256xbf16>,
    return
  }
  func.func @transform_0(%arg0: i32, %arg1: i32) -> (i32, i32, i32) {
    %c0_i32 = arith.constant 0 : i32
    %c0_i32_0 = arith.constant 0 : i32
    return %arg0, %c0_i32, %arg1 : i32, i32, i32
  }
  func.func @transform_1(%arg0: i32, %arg1: i32) -> (i32, i32) {
    %c0_i32 = arith.constant 0 : i32
    %c0_i32_0 = arith.constant 0 : i32
    %c0_i32_1 = arith.constant 0 : i32
    return %c0_i32, %c0_i32_0 : i32, i32
  }
  func.func @transform_2(%arg0: i32, %arg1: i32) -> (i32, i32) {
    %c0_i32 = arith.constant 0 : i32
    %c0_i32_0 = arith.constant 0 : i32
    %c0_i32_1 = arith.constant 0 : i32
    return %c0_i32, %c0_i32_0 : i32, i32
  }
  func.func @transform_3(%arg0: i32, %arg1: i32) -> (i32, i32, i32) {
    %c0_i32 = arith.constant 0 : i32
    %c0_i32_0 = arith.constant 0 : i32
    return %arg0, %c0_i32, %arg1 : i32, i32, i32
  }
}

module attributes {stable_mosaic.version = 11 : i64} {
  func.func @_conv_mm_kernel(%arg0: i32, %arg1: i32, %arg2: memref<1x216x256xbf16, #tpu.memory_space<vmem>>, %arg3: memref<8x216xbf16, #tpu.memory_space<vmem>>, %arg4: memref<8x1xf32, #tpu.memory_space<vmem>>, %arg5: memref<1x8x256xbf16, #tpu.memory_space<vmem>>) attributes {dimension_semantics = [#tpu.dimension_semantics<parallel>, #tpu.dimension_semantics<parallel>], iteration_bounds = array<i64: 2, 1>, scalar_prefetch = 0 : i64, scratch_operands = 0 : i64, tpu.core_type = #tpu.core_type<tc>, window_params = [{transform_indices = @transform_0, window_bounds = array<i64: 1, 216, 256>}, {pipeline_mode = #tpu.pipeline_mode<synchronous>, transform_indices = @transform_1, window_bounds = array<i64: 8, 216>}, {pipeline_mode = #tpu.pipeline_mode<synchronous>, transform_indices = @transform_2, window_bounds = array<i64: 8, 1>}, {transform_indices = @transform_3, window_bounds = array<i64: 1, 8, 256>}]} {
    %c0 = arith.constant 0 : index
    %c0_0 = arith.constant 0 : index
    %0 = vector.load %arg3[%c0, %c0_0] : memref<8x216xbf16, #tpu.memory_space<vmem>>, vector<8x216xbf16>
    %c0_1 = arith.constant 0 : index
    %c0_2 = arith.constant 0 : index
    %c0_3 = arith.constant 0 : index
    %1 = vector.load %arg2[%c0_1, %c0_2, %c0_3] : memref<1x216x256xbf16, #tpu.memory_space<vmem>>, vector<1x216x256xbf16>
    %2 = vector.shape_cast %1 : vector<1x216x256xbf16> to vector<216x256xbf16>
    %cst = arith.constant dense<0.000000e+00> : vector<8x256xf32>
    %3 = tpu.matmul %0, %2, %cst {dimension_numbers = #tpu.dot_dimension_numbers<[1], [0], [0], [1], [0, 0, 1, 1], [], []>} : vector<8x216xbf16>, vector<216x256xbf16>, vector<8x256xf32> -> vector<8x256xf32>
    %c0_4 = arith.constant 0 : index
    %c0_5 = arith.constant 0 : index
    %4 = vector.load %arg4[%c0_4, %c0_5] : memref<8x1xf32, #tpu.memory_space<vmem>>, vector<8x1xf32>
    %5 = vector.broadcast %4 : vector<8x1xf32> to vector<8x256xf32>
    %6 = arith.addf %3, %5 : vector<8x256xf32>
    %cst_6 = arith.constant 0.000000e+00 : f32
    %7 = vector.broadcast %cst_6 : f32 to vector<8x256xf32>
    %8 = arith.cmpf oge, %6, %7 : vector<8x256xf32>
    %cst_7 = arith.constant 0.00999999977 : f32
    %9 = vector.broadcast %cst_7 : f32 to vector<8x256xf32>
    %10 = arith.mulf %9, %6 : vector<8x256xf32>
    %11 = arith.select %8, %6, %10 : vector<8x256xi1>, vector<8x256xf32>
    %12 = arith.truncf %11 : vector<8x256xf32> to vector<8x256xbf16>
    %c0_8 = arith.constant 0 : index
    %c0_9 = arith.constant 0 : index
    %c0_10 = arith.constant 0 : index
    %13 = vector.load %arg5[%c0_8, %c0_9, %c0_10] : memref<1x8x256xbf16, #tpu.memory_space<vmem>>, vector<1x8x256xbf16>
    %14 = vector.shape_cast %13 : vector<1x8x256xbf16> to vector<8x256xbf16>
    %15 = vector.shape_cast %12 : vector<8x256xbf16> to vector<1x8x256xbf16>
    tpu.vector_store %arg5[%c0_8, %c0_9, %c0_10], %15 {strides = array<i32>} : memref<1x8x256xbf16, #tpu.memory_space<vmem>>, vector<1x8x256xbf16>,
    return
  }
  func.func @transform_0(%arg0: i32, %arg1: i32) -> (i32, i32, i32) {
    %c0_i32 = arith.constant 0 : i32
    %c0_i32_0 = arith.constant 0 : i32
    return %arg0, %c0_i32, %arg1 : i32, i32, i32
  }
  func.func @transform_1(%arg0: i32, %arg1: i32) -> (i32, i32) {
    %c0_i32 = arith.constant 0 : i32
    %c0_i32_0 = arith.constant 0 : i32
    %c0_i32_1 = arith.constant 0 : i32
    return %c0_i32, %c0_i32_0 : i32, i32
  }
  func.func @transform_2(%arg0: i32, %arg1: i32) -> (i32, i32) {
    %c0_i32 = arith.constant 0 : i32
    %c0_i32_0 = arith.constant 0 : i32
    %c0_i32_1 = arith.constant 0 : i32
    return %c0_i32, %c0_i32_0 : i32, i32
  }
  func.func @transform_3(%arg0: i32, %arg1: i32) -> (i32, i32, i32) {
    %c0_i32 = arith.constant 0 : i32
    %c0_i32_0 = arith.constant 0 : i32
    return %arg0, %c0_i32, %arg1 : i32, i32, i32
  }
}

module attributes {stable_mosaic.version = 11 : i64} {
  func.func @_conv_mm_kernel(%arg0: i32, %arg1: i32, %arg2: memref<1x216x32xbf16, #tpu.memory_space<vmem>>, %arg3: memref<16x216xbf16, #tpu.memory_space<vmem>>, %arg4: memref<16x1xf32, #tpu.memory_space<vmem>>, %arg5: memref<1x16x32xbf16, #tpu.memory_space<vmem>>) attributes {dimension_semantics = [#tpu.dimension_semantics<parallel>, #tpu.dimension_semantics<parallel>], iteration_bounds = array<i64: 2, 1>, scalar_prefetch = 0 : i64, scratch_operands = 0 : i64, tpu.core_type = #tpu.core_type<tc>, window_params = [{transform_indices = @transform_0, window_bounds = array<i64: 1, 216, 32>}, {pipeline_mode = #tpu.pipeline_mode<synchronous>, transform_indices = @transform_1, window_bounds = array<i64: 16, 216>}, {pipeline_mode = #tpu.pipeline_mode<synchronous>, transform_indices = @transform_2, window_bounds = array<i64: 16, 1>}, {transform_indices = @transform_3, window_bounds = array<i64: 1, 16, 32>}]} {
    %c0 = arith.constant 0 : index
    %c0_0 = arith.constant 0 : index
    %0 = vector.load %arg3[%c0, %c0_0] : memref<16x216xbf16, #tpu.memory_space<vmem>>, vector<16x216xbf16>
    %c0_1 = arith.constant 0 : index
    %c0_2 = arith.constant 0 : index
    %c0_3 = arith.constant 0 : index
    %1 = vector.load %arg2[%c0_1, %c0_2, %c0_3] : memref<1x216x32xbf16, #tpu.memory_space<vmem>>, vector<1x216x32xbf16>
    %2 = vector.shape_cast %1 : vector<1x216x32xbf16> to vector<216x32xbf16>
    %cst = arith.constant dense<0.000000e+00> : vector<16x32xf32>
    %3 = tpu.matmul %0, %2, %cst {dimension_numbers = #tpu.dot_dimension_numbers<[1], [0], [0], [1], [0, 0, 1, 1], [], []>} : vector<16x216xbf16>, vector<216x32xbf16>, vector<16x32xf32> -> vector<16x32xf32>
    %c0_4 = arith.constant 0 : index
    %c0_5 = arith.constant 0 : index
    %4 = vector.load %arg4[%c0_4, %c0_5] : memref<16x1xf32, #tpu.memory_space<vmem>>, vector<16x1xf32>
    %5 = vector.broadcast %4 : vector<16x1xf32> to vector<16x32xf32>
    %6 = arith.addf %3, %5 : vector<16x32xf32>
    %cst_6 = arith.constant 0.000000e+00 : f32
    %7 = vector.broadcast %cst_6 : f32 to vector<16x32xf32>
    %8 = arith.cmpf oge, %6, %7 : vector<16x32xf32>
    %cst_7 = arith.constant 0.00999999977 : f32
    %9 = vector.broadcast %cst_7 : f32 to vector<16x32xf32>
    %10 = arith.mulf %9, %6 : vector<16x32xf32>
    %11 = arith.select %8, %6, %10 : vector<16x32xi1>, vector<16x32xf32>
    %12 = arith.truncf %11 : vector<16x32xf32> to vector<16x32xbf16>
    %c0_8 = arith.constant 0 : index
    %c0_9 = arith.constant 0 : index
    %c0_10 = arith.constant 0 : index
    %13 = vector.load %arg5[%c0_8, %c0_9, %c0_10] : memref<1x16x32xbf16, #tpu.memory_space<vmem>>, vector<1x16x32xbf16>
    %14 = vector.shape_cast %13 : vector<1x16x32xbf16> to vector<16x32xbf16>
    %15 = vector.shape_cast %12 : vector<16x32xbf16> to vector<1x16x32xbf16>
    tpu.vector_store %arg5[%c0_8, %c0_9, %c0_10], %15 {strides = array<i32>} : memref<1x16x32xbf16, #tpu.memory_space<vmem>>, vector<1x16x32xbf16>,
    return
  }
  func.func @transform_0(%arg0: i32, %arg1: i32) -> (i32, i32, i32) {
    %c0_i32 = arith.constant 0 : i32
    %c0_i32_0 = arith.constant 0 : i32
    return %arg0, %c0_i32, %arg1 : i32, i32, i32
  }
  func.func @transform_1(%arg0: i32, %arg1: i32) -> (i32, i32) {
    %c0_i32 = arith.constant 0 : i32
    %c0_i32_0 = arith.constant 0 : i32
    %c0_i32_1 = arith.constant 0 : i32
    return %c0_i32, %c0_i32_0 : i32, i32
  }
  func.func @transform_2(%arg0: i32, %arg1: i32) -> (i32, i32) {
    %c0_i32 = arith.constant 0 : i32
    %c0_i32_0 = arith.constant 0 : i32
    %c0_i32_1 = arith.constant 0 : i32
    return %c0_i32, %c0_i32_0 : i32, i32
  }
  func.func @transform_3(%arg0: i32, %arg1: i32) -> (i32, i32, i32) {
    %c0_i32 = arith.constant 0 : i32
    %c0_i32_0 = arith.constant 0 : i32
    return %arg0, %c0_i32, %arg1 : i32, i32, i32
  }
}

module attributes {stable_mosaic.version = 11 : i64} {
  func.func @_conv_mm_fused_kernel(%arg0: i32, %arg1: i32, %arg2: memref<1x432x32xbf16, #tpu.memory_space<vmem>>, %arg3: memref<16x432xbf16, #tpu.memory_space<vmem>>, %arg4: memref<16x1xf32, #tpu.memory_space<vmem>>, %arg5: memref<8x16xf32, #tpu.memory_space<vmem>>, %arg6: memref<8x1xf32, #tpu.memory_space<vmem>>, %arg7: memref<1x8x32xbf16, #tpu.memory_space<vmem>>) attributes {dimension_semantics = [#tpu.dimension_semantics<parallel>, #tpu.dimension_semantics<parallel>], iteration_bounds = array<i64: 2, 1>, scalar_prefetch = 0 : i64, scratch_operands = 0 : i64, tpu.core_type = #tpu.core_type<tc>, window_params = [{transform_indices = @transform_0, window_bounds = array<i64: 1, 432, 32>}, {pipeline_mode = #tpu.pipeline_mode<synchronous>, transform_indices = @transform_1, window_bounds = array<i64: 16, 432>}, {pipeline_mode = #tpu.pipeline_mode<synchronous>, transform_indices = @transform_2, window_bounds = array<i64: 16, 1>}, {pipeline_mode = #tpu.pipeline_mode<synchronous>, transform_indices = @transform_3, window_bounds = array<i64: 8, 16>}, {pipeline_mode = #tpu.pipeline_mode<synchronous>, transform_indices = @transform_4, window_bounds = array<i64: 8, 1>}, {transform_indices = @transform_5, window_bounds = array<i64: 1, 8, 32>}]} {
    %c0 = arith.constant 0 : index
    %c0_0 = arith.constant 0 : index
    %0 = vector.load %arg3[%c0, %c0_0] : memref<16x432xbf16, #tpu.memory_space<vmem>>, vector<16x432xbf16>
    %c0_1 = arith.constant 0 : index
    %c0_2 = arith.constant 0 : index
    %c0_3 = arith.constant 0 : index
    %1 = vector.load %arg2[%c0_1, %c0_2, %c0_3] : memref<1x432x32xbf16, #tpu.memory_space<vmem>>, vector<1x432x32xbf16>
    %2 = vector.shape_cast %1 : vector<1x432x32xbf16> to vector<432x32xbf16>
    %cst = arith.constant dense<0.000000e+00> : vector<16x32xf32>
    %3 = tpu.matmul %0, %2, %cst {dimension_numbers = #tpu.dot_dimension_numbers<[1], [0], [0], [1], [0, 0, 1, 1], [], []>} : vector<16x432xbf16>, vector<432x32xbf16>, vector<16x32xf32> -> vector<16x32xf32>
    %c0_4 = arith.constant 0 : index
    %c0_5 = arith.constant 0 : index
    %4 = vector.load %arg4[%c0_4, %c0_5] : memref<16x1xf32, #tpu.memory_space<vmem>>, vector<16x1xf32>
    %5 = vector.broadcast %4 : vector<16x1xf32> to vector<16x32xf32>
    %6 = arith.addf %3, %5 : vector<16x32xf32>
    %cst_6 = arith.constant 0.000000e+00 : f32
    %7 = vector.broadcast %cst_6 : f32 to vector<16x32xf32>
    %8 = arith.cmpf oge, %6, %7 : vector<16x32xf32>
    %cst_7 = arith.constant 0.00999999977 : f32
    %9 = vector.broadcast %cst_7 : f32 to vector<16x32xf32>
    %10 = arith.mulf %9, %6 : vector<16x32xf32>
    %11 = arith.select %8, %6, %10 : vector<16x32xi1>, vector<16x32xf32>
    %c0_8 = arith.constant 0 : index
    %c0_9 = arith.constant 0 : index
    %12 = vector.load %arg5[%c0_8, %c0_9] : memref<8x16xf32, #tpu.memory_space<vmem>>, vector<8x16xf32>
    %cst_10 = arith.constant dense<0.000000e+00> : vector<8x32xf32>
    %13 = tpu.matmul %12, %11, %cst_10 {dimension_numbers = #tpu.dot_dimension_numbers<[1], [0], [0], [1], [0, 0, 1, 1], [], []>} : vector<8x16xf32>, vector<16x32xf32>, vector<8x32xf32> -> vector<8x32xf32>
    %c0_11 = arith.constant 0 : index
    %c0_12 = arith.constant 0 : index
    %14 = vector.load %arg6[%c0_11, %c0_12] : memref<8x1xf32, #tpu.memory_space<vmem>>, vector<8x1xf32>
    %15 = vector.broadcast %14 : vector<8x1xf32> to vector<8x32xf32>
    %16 = arith.addf %13, %15 : vector<8x32xf32>
    %17 = arith.truncf %16 : vector<8x32xf32> to vector<8x32xbf16>
    %c0_13 = arith.constant 0 : index
    %c0_14 = arith.constant 0 : index
    %c0_15 = arith.constant 0 : index
    %18 = vector.load %arg7[%c0_13, %c0_14, %c0_15] : memref<1x8x32xbf16, #tpu.memory_space<vmem>>, vector<1x8x32xbf16>
    %19 = vector.shape_cast %18 : vector<1x8x32xbf16> to vector<8x32xbf16>
    %20 = vector.shape_cast %17 : vector<8x32xbf16> to vector<1x8x32xbf16>
    tpu.vector_store %arg7[%c0_13, %c0_14, %c0_15], %20 {strides = array<i32>} : memref<1x8x32xbf16, #tpu.memory_space<vmem>>, vector<1x8x32xbf16>,
    return
  }
  func.func @transform_0(%arg0: i32, %arg1: i32) -> (i32, i32, i32) {
    %c0_i32 = arith.constant 0 : i32
    %c0_i32_0 = arith.constant 0 : i32
    return %arg0, %c0_i32, %arg1 : i32, i32, i32
  }
  func.func @transform_1(%arg0: i32, %arg1: i32) -> (i32, i32) {
    %c0_i32 = arith.constant 0 : i32
    %c0_i32_0 = arith.constant 0 : i32
    %c0_i32_1 = arith.constant 0 : i32
    return %c0_i32, %c0_i32_0 : i32, i32
  }
  func.func @transform_2(%arg0: i32, %arg1: i32) -> (i32, i32) {
    %c0_i32 = arith.constant 0 : i32
    %c0_i32_0 = arith.constant 0 : i32
    %c0_i32_1 = arith.constant 0 : i32
    return %c0_i32, %c0_i32_0 : i32, i32
  }
  func.func @transform_3(%arg0: i32, %arg1: i32) -> (i32, i32) {
    %c0_i32 = arith.constant 0 : i32
    %c0_i32_0 = arith.constant 0 : i32
    %c0_i32_1 = arith.constant 0 : i32
    return %c0_i32, %c0_i32_0 : i32, i32
  }
  func.func @transform_4(%arg0: i32, %arg1: i32) -> (i32, i32) {
    %c0_i32 = arith.constant 0 : i32
    %c0_i32_0 = arith.constant 0 : i32
    %c0_i32_1 = arith.constant 0 : i32
    return %c0_i32, %c0_i32_0 : i32, i32
  }
  func.func @transform_5(%arg0: i32, %arg1: i32) -> (i32, i32, i32) {
    %c0_i32 = arith.constant 0 : i32
    %c0_i32_0 = arith.constant 0 : i32
    return %arg0, %c0_i32, %arg1 : i32, i32, i32
  }
}

module attributes {stable_mosaic.version = 11 : i64} {
  func.func @_conv_mm_kernel(%arg0: i32, %arg1: i32, %arg2: memref<1x8x32xbf16, #tpu.memory_space<vmem>>, %arg3: memref<16x8xbf16, #tpu.memory_space<vmem>>, %arg4: memref<16x1xf32, #tpu.memory_space<vmem>>, %arg5: memref<1x16x32xbf16, #tpu.memory_space<vmem>>) attributes {dimension_semantics = [#tpu.dimension_semantics<parallel>, #tpu.dimension_semantics<parallel>], iteration_bounds = array<i64: 2, 1>, scalar_prefetch = 0 : i64, scratch_operands = 0 : i64, tpu.core_type = #tpu.core_type<tc>, window_params = [{transform_indices = @transform_0, window_bounds = array<i64: 1, 8, 32>}, {pipeline_mode = #tpu.pipeline_mode<synchronous>, transform_indices = @transform_1, window_bounds = array<i64: 16, 8>}, {pipeline_mode = #tpu.pipeline_mode<synchronous>, transform_indices = @transform_2, window_bounds = array<i64: 16, 1>}, {transform_indices = @transform_3, window_bounds = array<i64: 1, 16, 32>}]} {
    %c0 = arith.constant 0 : index
    %c0_0 = arith.constant 0 : index
    %0 = vector.load %arg3[%c0, %c0_0] : memref<16x8xbf16, #tpu.memory_space<vmem>>, vector<16x8xbf16>
    %c0_1 = arith.constant 0 : index
    %c0_2 = arith.constant 0 : index
    %c0_3 = arith.constant 0 : index
    %1 = vector.load %arg2[%c0_1, %c0_2, %c0_3] : memref<1x8x32xbf16, #tpu.memory_space<vmem>>, vector<1x8x32xbf16>
    %2 = vector.shape_cast %1 : vector<1x8x32xbf16> to vector<8x32xbf16>
    %cst = arith.constant dense<0.000000e+00> : vector<16x32xf32>
    %3 = tpu.matmul %0, %2, %cst {dimension_numbers = #tpu.dot_dimension_numbers<[1], [0], [0], [1], [0, 0, 1, 1], [], []>} : vector<16x8xbf16>, vector<8x32xbf16>, vector<16x32xf32> -> vector<16x32xf32>
    %c0_4 = arith.constant 0 : index
    %c0_5 = arith.constant 0 : index
    %4 = vector.load %arg4[%c0_4, %c0_5] : memref<16x1xf32, #tpu.memory_space<vmem>>, vector<16x1xf32>
    %5 = vector.broadcast %4 : vector<16x1xf32> to vector<16x32xf32>
    %6 = arith.addf %3, %5 : vector<16x32xf32>
    %cst_6 = arith.constant 0.000000e+00 : f32
    %7 = vector.broadcast %cst_6 : f32 to vector<16x32xf32>
    %8 = arith.cmpf oge, %6, %7 : vector<16x32xf32>
    %cst_7 = arith.constant 0.00999999977 : f32
    %9 = vector.broadcast %cst_7 : f32 to vector<16x32xf32>
    %10 = arith.mulf %9, %6 : vector<16x32xf32>
    %11 = arith.select %8, %6, %10 : vector<16x32xi1>, vector<16x32xf32>
    %12 = arith.truncf %11 : vector<16x32xf32> to vector<16x32xbf16>
    %c0_8 = arith.constant 0 : index
    %c0_9 = arith.constant 0 : index
    %c0_10 = arith.constant 0 : index
    %13 = vector.load %arg5[%c0_8, %c0_9, %c0_10] : memref<1x16x32xbf16, #tpu.memory_space<vmem>>, vector<1x16x32xbf16>
    %14 = vector.shape_cast %13 : vector<1x16x32xbf16> to vector<16x32xbf16>
    %15 = vector.shape_cast %12 : vector<16x32xbf16> to vector<1x16x32xbf16>
    tpu.vector_store %arg5[%c0_8, %c0_9, %c0_10], %15 {strides = array<i32>} : memref<1x16x32xbf16, #tpu.memory_space<vmem>>, vector<1x16x32xbf16>,
    return
  }
  func.func @transform_0(%arg0: i32, %arg1: i32) -> (i32, i32, i32) {
    %c0_i32 = arith.constant 0 : i32
    %c0_i32_0 = arith.constant 0 : i32
    return %arg0, %c0_i32, %arg1 : i32, i32, i32
  }
  func.func @transform_1(%arg0: i32, %arg1: i32) -> (i32, i32) {
    %c0_i32 = arith.constant 0 : i32
    %c0_i32_0 = arith.constant 0 : i32
    %c0_i32_1 = arith.constant 0 : i32
    return %c0_i32, %c0_i32_0 : i32, i32
  }
  func.func @transform_2(%arg0: i32, %arg1: i32) -> (i32, i32) {
    %c0_i32 = arith.constant 0 : i32
    %c0_i32_0 = arith.constant 0 : i32
    %c0_i32_1 = arith.constant 0 : i32
    return %c0_i32, %c0_i32_0 : i32, i32
  }
  func.func @transform_3(%arg0: i32, %arg1: i32) -> (i32, i32, i32) {
    %c0_i32 = arith.constant 0 : i32
    %c0_i32_0 = arith.constant 0 : i32
    return %arg0, %c0_i32, %arg1 : i32, i32, i32
  }
}

module attributes {stable_mosaic.version = 11 : i64} {
  func.func @_conv_mm_kernel(%arg0: i32, %arg1: i32, %arg2: memref<1x432x256xbf16, #tpu.memory_space<vmem>>, %arg3: memref<8x432xbf16, #tpu.memory_space<vmem>>, %arg4: memref<8x1xf32, #tpu.memory_space<vmem>>, %arg5: memref<1x8x256xbf16, #tpu.memory_space<vmem>>) attributes {dimension_semantics = [#tpu.dimension_semantics<parallel>, #tpu.dimension_semantics<parallel>], iteration_bounds = array<i64: 2, 1>, scalar_prefetch = 0 : i64, scratch_operands = 0 : i64, tpu.core_type = #tpu.core_type<tc>, window_params = [{transform_indices = @transform_0, window_bounds = array<i64: 1, 432, 256>}, {pipeline_mode = #tpu.pipeline_mode<synchronous>, transform_indices = @transform_1, window_bounds = array<i64: 8, 432>}, {pipeline_mode = #tpu.pipeline_mode<synchronous>, transform_indices = @transform_2, window_bounds = array<i64: 8, 1>}, {transform_indices = @transform_3, window_bounds = array<i64: 1, 8, 256>}]} {
    %c0 = arith.constant 0 : index
    %c0_0 = arith.constant 0 : index
    %0 = vector.load %arg3[%c0, %c0_0] : memref<8x432xbf16, #tpu.memory_space<vmem>>, vector<8x432xbf16>
    %c0_1 = arith.constant 0 : index
    %c0_2 = arith.constant 0 : index
    %c0_3 = arith.constant 0 : index
    %1 = vector.load %arg2[%c0_1, %c0_2, %c0_3] : memref<1x432x256xbf16, #tpu.memory_space<vmem>>, vector<1x432x256xbf16>
    %2 = vector.shape_cast %1 : vector<1x432x256xbf16> to vector<432x256xbf16>
    %cst = arith.constant dense<0.000000e+00> : vector<8x256xf32>
    %3 = tpu.matmul %0, %2, %cst {dimension_numbers = #tpu.dot_dimension_numbers<[1], [0], [0], [1], [0, 0, 1, 1], [], []>} : vector<8x432xbf16>, vector<432x256xbf16>, vector<8x256xf32> -> vector<8x256xf32>
    %c0_4 = arith.constant 0 : index
    %c0_5 = arith.constant 0 : index
    %4 = vector.load %arg4[%c0_4, %c0_5] : memref<8x1xf32, #tpu.memory_space<vmem>>, vector<8x1xf32>
    %5 = vector.broadcast %4 : vector<8x1xf32> to vector<8x256xf32>
    %6 = arith.addf %3, %5 : vector<8x256xf32>
    %cst_6 = arith.constant 0.000000e+00 : f32
    %7 = vector.broadcast %cst_6 : f32 to vector<8x256xf32>
    %8 = arith.cmpf oge, %6, %7 : vector<8x256xf32>
    %cst_7 = arith.constant 0.00999999977 : f32
    %9 = vector.broadcast %cst_7 : f32 to vector<8x256xf32>
    %10 = arith.mulf %9, %6 : vector<8x256xf32>
    %11 = arith.select %8, %6, %10 : vector<8x256xi1>, vector<8x256xf32>
    %12 = arith.truncf %11 : vector<8x256xf32> to vector<8x256xbf16>
    %c0_8 = arith.constant 0 : index
    %c0_9 = arith.constant 0 : index
    %c0_10 = arith.constant 0 : index
    %13 = vector.load %arg5[%c0_8, %c0_9, %c0_10] : memref<1x8x256xbf16, #tpu.memory_space<vmem>>, vector<1x8x256xbf16>
    %14 = vector.shape_cast %13 : vector<1x8x256xbf16> to vector<8x256xbf16>
    %15 = vector.shape_cast %12 : vector<8x256xbf16> to vector<1x8x256xbf16>
    tpu.vector_store %arg5[%c0_8, %c0_9, %c0_10], %15 {strides = array<i32>} : memref<1x8x256xbf16, #tpu.memory_space<vmem>>, vector<1x8x256xbf16>,
    return
  }
  func.func @transform_0(%arg0: i32, %arg1: i32) -> (i32, i32, i32) {
    %c0_i32 = arith.constant 0 : i32
    %c0_i32_0 = arith.constant 0 : i32
    return %arg0, %c0_i32, %arg1 : i32, i32, i32
  }
  func.func @transform_1(%arg0: i32, %arg1: i32) -> (i32, i32) {
    %c0_i32 = arith.constant 0 : i32
    %c0_i32_0 = arith.constant 0 : i32
    %c0_i32_1 = arith.constant 0 : i32
    return %c0_i32, %c0_i32_0 : i32, i32
  }
  func.func @transform_2(%arg0: i32, %arg1: i32) -> (i32, i32) {
    %c0_i32 = arith.constant 0 : i32
    %c0_i32_0 = arith.constant 0 : i32
    %c0_i32_1 = arith.constant 0 : i32
    return %c0_i32, %c0_i32_0 : i32, i32
  }
  func.func @transform_3(%arg0: i32, %arg1: i32) -> (i32, i32, i32) {
    %c0_i32 = arith.constant 0 : i32
    %c0_i32_0 = arith.constant 0 : i32
    return %arg0, %c0_i32, %arg1 : i32, i32, i32
  }
}

module attributes {stable_mosaic.version = 11 : i64} {
  func.func @_conv_mm_fused_kernel(%arg0: i32, %arg1: i32, %arg2: memref<1x216x1024xbf16, #tpu.memory_space<vmem>>, %arg3: memref<8x216xbf16, #tpu.memory_space<vmem>>, %arg4: memref<8x1xf32, #tpu.memory_space<vmem>>, %arg5: memref<1x8xf32, #tpu.memory_space<vmem>>, %arg6: memref<1x1xf32, #tpu.memory_space<vmem>>, %arg7: memref<1x1x1024xf32, #tpu.memory_space<vmem>>) attributes {dimension_semantics = [#tpu.dimension_semantics<parallel>, #tpu.dimension_semantics<parallel>], iteration_bounds = array<i64: 2, 2>, scalar_prefetch = 0 : i64, scratch_operands = 0 : i64, tpu.core_type = #tpu.core_type<tc>, window_params = [{transform_indices = @transform_0, window_bounds = array<i64: 1, 216, 1024>}, {pipeline_mode = #tpu.pipeline_mode<synchronous>, transform_indices = @transform_1, window_bounds = array<i64: 8, 216>}, {pipeline_mode = #tpu.pipeline_mode<synchronous>, transform_indices = @transform_2, window_bounds = array<i64: 8, 1>}, {pipeline_mode = #tpu.pipeline_mode<synchronous>, transform_indices = @transform_3, window_bounds = array<i64: 1, 8>}, {pipeline_mode = #tpu.pipeline_mode<synchronous>, transform_indices = @transform_4, window_bounds = array<i64: 1, 1>}, {transform_indices = @transform_5, window_bounds = array<i64: 1, 1, 1024>}]} {
    %c0 = arith.constant 0 : index
    %c0_0 = arith.constant 0 : index
    %0 = vector.load %arg3[%c0, %c0_0] : memref<8x216xbf16, #tpu.memory_space<vmem>>, vector<8x216xbf16>
    %c0_1 = arith.constant 0 : index
    %c0_2 = arith.constant 0 : index
    %c0_3 = arith.constant 0 : index
    %1 = vector.load %arg2[%c0_1, %c0_2, %c0_3] : memref<1x216x1024xbf16, #tpu.memory_space<vmem>>, vector<1x216x1024xbf16>
    %2 = vector.shape_cast %1 : vector<1x216x1024xbf16> to vector<216x1024xbf16>
    %cst = arith.constant dense<0.000000e+00> : vector<8x1024xf32>
    %3 = tpu.matmul %0, %2, %cst {dimension_numbers = #tpu.dot_dimension_numbers<[1], [0], [0], [1], [0, 0, 1, 1], [], []>} : vector<8x216xbf16>, vector<216x1024xbf16>, vector<8x1024xf32> -> vector<8x1024xf32>
    %c0_4 = arith.constant 0 : index
    %c0_5 = arith.constant 0 : index
    %4 = vector.load %arg4[%c0_4, %c0_5] : memref<8x1xf32, #tpu.memory_space<vmem>>, vector<8x1xf32>
    %5 = vector.broadcast %4 : vector<8x1xf32> to vector<8x1024xf32>
    %6 = arith.addf %3, %5 : vector<8x1024xf32>
    %cst_6 = arith.constant 0.000000e+00 : f32
    %7 = vector.broadcast %cst_6 : f32 to vector<8x1024xf32>
    %8 = arith.cmpf oge, %6, %7 : vector<8x1024xf32>
    %cst_7 = arith.constant 0.00999999977 : f32
    %9 = vector.broadcast %cst_7 : f32 to vector<8x1024xf32>
    %10 = arith.mulf %9, %6 : vector<8x1024xf32>
    %11 = arith.select %8, %6, %10 : vector<8x1024xi1>, vector<8x1024xf32>
    %c0_8 = arith.constant 0 : index
    %c0_9 = arith.constant 0 : index
    %12 = vector.load %arg5[%c0_8, %c0_9] : memref<1x8xf32, #tpu.memory_space<vmem>>, vector<1x8xf32>
    %cst_10 = arith.constant dense<0.000000e+00> : vector<1x1024xf32>
    %13 = tpu.matmul %12, %11, %cst_10 {dimension_numbers = #tpu.dot_dimension_numbers<[1], [0], [0], [1], [0, 0, 1, 1], [], []>} : vector<1x8xf32>, vector<8x1024xf32>, vector<1x1024xf32> -> vector<1x1024xf32>
    %c0_11 = arith.constant 0 : index
    %c0_12 = arith.constant 0 : index
    %14 = vector.load %arg6[%c0_11, %c0_12] : memref<1x1xf32, #tpu.memory_space<vmem>>, vector<1x1xf32>
    %15 = vector.broadcast %14 : vector<1x1xf32> to vector<1x1024xf32>
    %16 = arith.addf %13, %15 : vector<1x1024xf32>
    %c0_13 = arith.constant 0 : index
    %c0_14 = arith.constant 0 : index
    %c0_15 = arith.constant 0 : index
    %17 = vector.load %arg7[%c0_13, %c0_14, %c0_15] : memref<1x1x1024xf32, #tpu.memory_space<vmem>>, vector<1x1x1024xf32>
    %18 = vector.shape_cast %17 : vector<1x1x1024xf32> to vector<1x1024xf32>
    %19 = vector.shape_cast %16 : vector<1x1024xf32> to vector<1x1x1024xf32>
    tpu.vector_store %arg7[%c0_13, %c0_14, %c0_15], %19 {strides = array<i32>} : memref<1x1x1024xf32, #tpu.memory_space<vmem>>, vector<1x1x1024xf32>,
    return
  }
  func.func @transform_0(%arg0: i32, %arg1: i32) -> (i32, i32, i32) {
    %c0_i32 = arith.constant 0 : i32
    %c0_i32_0 = arith.constant 0 : i32
    return %arg0, %c0_i32, %arg1 : i32, i32, i32
  }
  func.func @transform_1(%arg0: i32, %arg1: i32) -> (i32, i32) {
    %c0_i32 = arith.constant 0 : i32
    %c0_i32_0 = arith.constant 0 : i32
    %c0_i32_1 = arith.constant 0 : i32
    return %c0_i32, %c0_i32_0 : i32, i32
  }
  func.func @transform_2(%arg0: i32, %arg1: i32) -> (i32, i32) {
    %c0_i32 = arith.constant 0 : i32
    %c0_i32_0 = arith.constant 0 : i32
    %c0_i32_1 = arith.constant 0 : i32
    return %c0_i32, %c0_i32_0 : i32, i32
  }
  func.func @transform_3(%arg0: i32, %arg1: i32) -> (i32, i32) {
    %c0_i32 = arith.constant 0 : i32
    %c0_i32_0 = arith.constant 0 : i32
    %c0_i32_1 = arith.constant 0 : i32
    return %c0_i32, %c0_i32_0 : i32, i32
  }
  func.func @transform_4(%arg0: i32, %arg1: i32) -> (i32, i32) {
    %c0_i32 = arith.constant 0 : i32
    %c0_i32_0 = arith.constant 0 : i32
    %c0_i32_1 = arith.constant 0 : i32
    return %c0_i32, %c0_i32_0 : i32, i32
  }
  func.func @transform_5(%arg0: i32, %arg1: i32) -> (i32, i32, i32) {
    %c0_i32 = arith.constant 0 : i32
    %c0_i32_0 = arith.constant 0 : i32
    return %arg0, %c0_i32, %arg1 : i32, i32, i32
  }
}

</mosaic_0001>

<llo_original>
// kernel: seq2seq3d_forward.7
$region0: #{seq2seq3d_forward.7}
  #allocation0 [shape = 'u32[]', space=smem, size = 0x4, offset = 0x4, fixed_abs, tag = 'smem constant byte address 0x4 - core index']
  #allocation1 [shape = 'u32[72,128]{1,0:T(1,128)}', space=vmem, size = 0x9000, scoped, tag = 'internal scratch']
  %s0 = inlined_call_operand.vmem [shape: bf16[2,27,256], index: 0, kind: input, shape index: {}]
  %s1 = inlined_call_operand.hbm [shape: bf16[8,27], index: 1, kind: input, shape index: {}]
  %s2 = inlined_call_operand.vmem [shape: f32[8,1], index: 2, kind: input, shape index: {}]
  %s3 = inlined_call_operand.vmem [shape: bf16[2,8,256], index: 3, kind: output, shape index: {}]
  %s4 = sld [smem:[#allocation0]]
  $region49: #{seq2seq3d_forward.7} parent=0
    _
  %s6 = ssub.s32 1, %s4
  %s7 = scalar_select 0, %s6, %s4
  $region1: #{seq2seq3d_forward.7} parent=0
    #allocation2 [shape = 'u8[2048]{0}', space=vmem, size = 0x800, scoped, tag = 'input window, operand 1, single buffered']
    #allocation3 [shape = 's32[2]{0}', space=sflag, size = 0x8, scoped, tag = 'scoped memory for seq2seq3d_forward.7']
    %8 = vsyncpa [#allocation3], 0
    loop: start=0, step=1, limit=4
    $region2: #{seq2seq3d_forward.7} parent=1 // loop_pre_header
      _
    $region3: #{seq2seq3d_forward.7} parent=1 // loop_header
      %s10 = sphi 0, %s14
      %p11 = scmp.ge.s32.totalorder %s10, 4
      %s17 = sphi 0, %s29
      %s18 = sphi 0, %s25
      %s19 = sphi 0, %s17
      %s20 = sphi 0, %s18
      %s21 = sphi 0, %s19
      %s22 = sphi 0, %s20
      %s34 = sphi 0, %s36
      %s37 = sphi 0, %s34
      %s38 = sphi 0, %s37
      %s54 = sphi 0, %s38
      %s58 = sphi 0, %s58
      %s60 = sphi 0, %s58
      %s61 = sphi 0, %s60
      %s75 = sphi 0, %s61
      %s79 = sphi 0, %s79
      %s81 = sphi 0, %s79
      %s82 = sphi 0, %s81
      %s96 = sphi 0, %s82
      %s104 = sphi 0, %s106
      %s107 = sphi 0, %s104
      %s108 = sphi 0, %s107
      %s124 = sphi 0, %s108
    $region4: #{seq2seq3d_forward.7} parent=1 // loop_header_branch
      %13 = sbr.rel (%p11) target = $region8
    $region5: #{seq2seq3d_forward.7} parent=1 // loop_body
      %s15 = ssub.s32 %s10, 1
      %s16 = ssub.s32 %s10, 2
      %s23 = sadd.s32 1, %s18
      %p24 = scmp.ge.s32.totalorder %s23, 1
      %s25 = scalar_select %p24, 0, %s23
      %s26 = sadd.s32 1, %s17
      %s27 = scalar_select %p24, %s26, %s17
      %p28 = scmp.ge.s32.totalorder %s27, 2
      %s29 = scalar_select %p28, 0, %s27
      %s30 = ssub.s32 %s17, %s29
      %s31 = ssub.s32 %s18, %s25
      %s32 = sor.u32 %s30, %s31
      %p33 = scmp.eq.s32.totalorder %s32, 0
      %s35 = sadd.s32 %s34, 1
      %s36 = scalar_select %p33, %s34, %s35
      %p39 = pneg %p33
      %p40 = scmp.eq.s32.totalorder %s10, 1
      %p41 = por %p39, %p40
      %p42 = scmp.ne.s32.totalorder %s34, %s37
      %p43 = scmp.eq.s32.totalorder %s10, 0
      %p44 = por %p42, %p43
      %p45 = scmp.ne.s32.totalorder %s34, %s37
      %p46 = scmp.eq.s32.totalorder %s15, 1
      %p47 = por %p45, %p46
      %p48 = scmp.ne.s32.totalorder %s37, %s38
      %p49 = scmp.eq.s32.totalorder %s15, 0
      %p50 = por %p48, %p49
      %p51 = scmp.ne.s32.totalorder %s37, %s38
      %p52 = scmp.eq.s32.totalorder %s16, 1
      %p53 = por %p51, %p52
      %p55 = scmp.ne.s32.totalorder %s38, %s54
      %p56 = scmp.eq.s32.totalorder %s16, 0
      %p57 = por %p55, %p56
      %s59 = sadd.s32 %s58, 1
      %p62 = scmp.eq.s32.totalorder %s10, 1
      %p63 = scmp.ne.s32.totalorder %s58, %s60
      %p64 = scmp.eq.s32.totalorder %s10, 0
      %p65 = por %p63, %p64
      %p66 = scmp.ne.s32.totalorder %s58, %s60
      %p67 = scmp.eq.s32.totalorder %s15, 1
      %p68 = por %p66, %p67
      %p69 = scmp.ne.s32.totalorder %s60, %s61
      %p70 = scmp.eq.s32.totalorder %s15, 0
      %p71 = por %p69, %p70
      %p72 = scmp.ne.s32.totalorder %s60, %s61
      %p73 = scmp.eq.s32.totalorder %s16, 1
      %p74 = por %p72, %p73
      %p76 = scmp.ne.s32.totalorder %s61, %s75
      %p77 = scmp.eq.s32.totalorder %s16, 0
      %p78 = por %p76, %p77
      %s80 = sadd.s32 %s79, 1
      %p83 = scmp.eq.s32.totalorder %s10, 1
      %p84 = scmp.ne.s32.totalorder %s79, %s81
      %p85 = scmp.eq.s32.totalorder %s10, 0
      %p86 = por %p84, %p85
      %p87 = scmp.ne.s32.totalorder %s79, %s81
      %p88 = scmp.eq.s32.totalorder %s15, 1
      %p89 = por %p87, %p88
      %p90 = scmp.ne.s32.totalorder %s81, %s82
      %p91 = scmp.eq.s32.totalorder %s15, 0
      %p92 = por %p90, %p91
      %p93 = scmp.ne.s32.totalorder %s81, %s82
      %p94 = scmp.eq.s32.totalorder %s16, 1
      %p95 = por %p93, %p94
      %p97 = scmp.ne.s32.totalorder %s82, %s96
      %p98 = scmp.eq.s32.totalorder %s16, 0
      %p99 = por %p97, %p98
      %s100 = ssub.s32 %s17, %s29
      %s101 = ssub.s32 %s18, %s25
      %s102 = sor.u32 %s100, %s101
      %p103 = scmp.eq.s32.totalorder %s102, 0
      %s105 = sadd.s32 %s104, 1
      %s106 = scalar_select %p103, %s104, %s105
      %p109 = pneg %p103
      %p110 = scmp.eq.s32.totalorder %s10, 1
      %p111 = por %p109, %p110
      %p112 = scmp.ne.s32.totalorder %s104, %s107
      %p113 = scmp.eq.s32.totalorder %s10, 0
      %p114 = por %p112, %p113
      %p115 = scmp.ne.s32.totalorder %s104, %s107
      %p116 = scmp.eq.s32.totalorder %s15, 1
      %p117 = por %p115, %p116
      %p118 = scmp.ne.s32.totalorder %s107, %s108
      %p119 = scmp.eq.s32.totalorder %s15, 0
      %p120 = por %p118, %p119
      %p121 = scmp.ne.s32.totalorder %s107, %s108
      %p122 = scmp.eq.s32.totalorder %s16, 1
      %p123 = por %p121, %p122
      %p125 = scmp.ne.s32.totalorder %s108, %s124
      %p126 = scmp.eq.s32.totalorder %s16, 0
      %p127 = por %p125, %p126
      %p128 = scmp.le.s32.totalorder 1, %s10
      %p129 = scmp.lt.s32.totalorder %s10, 3
      %p130 = pnand %p128, %p129
      %p131 = pneg %p130
      // Predicated region
      $region9: #{seq2seq3d_forward.7} parent=5 // pred_check
        _
      $region10: #{seq2seq3d_forward.7} parent=5 // pred_check_branch
        %133 = sbr.rel (%p130) target = $region12
      $region11: #{seq2seq3d_forward.7} parent=5 // pred_region
        %s134 = ssub.s32 %s10, 1
        // Predicated region
        $region13: #{seq2seq3d_forward.7} parent=11 // pred_check
          %p135 = pneg %p71
        $region14: #{seq2seq3d_forward.7} parent=11 // pred_check_branch
          %137 = sbr.rel (%p135) target = $region16
        $region15: #{seq2seq3d_forward.7} parent=11 // pred_region
          %139 = vsyncadd [#allocation3], 0
          %s141 = sshll.u32 %s1, 4
          %s142 = int_to_ptr.hbm [resolvable:$true] %s141
          %s143 = sshll.u32 [#allocation2], 4
          %s144 = int_to_ptr.vmem [resolvable:$true] %s143
          %146 = dma.hbm_to_vmem [thread:$0]  %s142, 64, %s144, [#allocation3]
        $region16: #{seq2seq3d_forward.7} parent=11 // pred_fallthru
          _
        // Predicated region
        $region17: #{seq2seq3d_forward.7} parent=11 // pred_check
          %p147 = pneg %p92
        $region18: #{seq2seq3d_forward.7} parent=11 // pred_check_branch
          %149 = sbr.rel (%p147) target = $region20
        $region19: #{seq2seq3d_forward.7} parent=11 // pred_region
          _
        $region20: #{seq2seq3d_forward.7} parent=11 // pred_fallthru
          _
      $region12: #{seq2seq3d_forward.7} parent=5 // pred_fallthru
        _
      %p150 = scmp.lt.s32.totalorder %s10, 2
      // Predicated region
      $region21: #{seq2seq3d_forward.7} parent=5 // pred_check
        %p151 = pneg %p150
      $region22: #{seq2seq3d_forward.7} parent=5 // pred_check_branch
        %153 = sbr.rel (%p151) target = $region24
      $region23: #{seq2seq3d_forward.7} parent=5 // pred_region
        // Predicated region
        $region25: #{seq2seq3d_forward.7} parent=23 // pred_check
          %p154 = pneg %p44
        $region26: #{seq2seq3d_forward.7} parent=23 // pred_check_branch
          %156 = sbr.rel (%p154) target = $region28
        $region27: #{seq2seq3d_forward.7} parent=23 // pred_region
          %s157 = smul.u32 2, %s18
          %p158 = scmp.lt.s32.totalorder %s17, 1
          %s159 = scalar_select %p158, %s17, 1
          %p160 = scmp.lt.s32.totalorder %s157, 1
          %s161 = scalar_select %p160, %s157, 1
          %s162 = smul.addr %s159, 8
          %s163 = sadd.s32 %s161, %s162
          %s164 = smul.addr %s163, 4
          %s165 = scalar_lea.vmem %s0, %s164
          %s166 = smul.u32 2, %s18
        $region28: #{seq2seq3d_forward.7} parent=23 // pred_fallthru
          _
      $region24: #{seq2seq3d_forward.7} parent=5 // pred_fallthru
        _
      %p167 = scmp.le.s32.totalorder 1, %s10
      %p168 = scmp.lt.s32.totalorder %s10, 3
      %p169 = pnand %p167, %p168
      %p170 = pneg %p169
      // Predicated region
      $region29: #{seq2seq3d_forward.7} parent=5 // pred_check
        _
      $region30: #{seq2seq3d_forward.7} parent=5 // pred_check_branch
        %172 = sbr.rel (%p169) target = $region32
      $region31: #{seq2seq3d_forward.7} parent=5 // pred_region
        %s173 = ssub.s32 %s10, 1
        // Predicated region
        $region33: #{seq2seq3d_forward.7} parent=31 // pred_check
          %p174 = pneg %p71
        $region34: #{seq2seq3d_forward.7} parent=31 // pred_check_branch
          %176 = sbr.rel (%p174) target = $region36
        $region35: #{seq2seq3d_forward.7} parent=31 // pred_region
          %178 = dma.done [#allocation3], 64
        $region36: #{seq2seq3d_forward.7} parent=31 // pred_fallthru
          _
        %s179 = smul.u32 2, %s20
        %p180 = scmp.lt.s32.totalorder %s19, 1
        %s181 = scalar_select %p180, %s19, 1
        %p182 = scmp.lt.s32.totalorder %s179, 1
        %s183 = scalar_select %p182, %s179, 1
        %s184 = smul.addr %s181, 8
        %s185 = sadd.s32 %s183, %s184
        %s186 = smul.addr %s185, 4
        %s187 = scalar_lea.vmem %s0, %s186
        %p188 = pneg %p50
        %p189 = pneg %p47
        %p190 = pneg %p71
        %p191 = pneg %p68
        %p192 = pneg %p92
        %p193 = pneg %p89
        %p194 = pneg %p120
        %p195 = pneg %p117
        %s196 = smul.u32 2, %s20
        %p197 = scmp.lt.s32.totalorder %s19, 1
        %s198 = scalar_select %p197, %s19, 1
        %p199 = scmp.lt.s32.totalorder %s196, 1
        %s200 = scalar_select %p199, %s196, 1
        %s201 = smul.addr %s198, 2
        %s202 = sadd.s32 %s200, %s201
        %s203 = smul.addr %s202, 4
        %s204 = scalar_lea.vmem %s3, %s203
        %s205 = smul.u32 2, %s20
        %p206 = scmp.lt.s32.totalorder %s19, 1
        %s207 = scalar_select %p206, %s19, 1
        %p208 = scmp.lt.s32.totalorder %s205, 1
        %s209 = scalar_select %p208, %s205, 1
        %s210 = smul.addr %s207, 8
        %s211 = sadd.s32 %s209, %s210
        %s212 = smul.addr %s211, 4
        %s213 = scalar_lea.vmem %s0, %s212
        %s214 = smul.u32 2, %s20
        %s215 = smul.u32 2, %s20
        %p216 = scmp.lt.s32.totalorder %s19, 1
        %s217 = scalar_select %p216, %s19, 1
        %p218 = scmp.lt.s32.totalorder %s215, 1
        %s219 = scalar_select %p218, %s215, 1
        %s220 = smul.addr %s217, 2
        %s221 = sadd.s32 %s219, %s220
        %s222 = smul.addr %s221, 4
        %s223 = scalar_lea.vmem %s3, %s222
        %s224 = smul.u32 2, %s20
        %v226 = vld [vmem:[#allocation2] sm:$0xf]
        %v227 = vld [vmem:[%s213] sm:$0xff]
        %v228 = vld [vmem:[%s213 + $0x8] sm:$0xff]
        %v229 = vld [vmem:[%s213 + $0x10] sm:$0xff]
        %v230 = vld [vmem:[%s213 + $0x18] sm:$0x33]
        %v231 = vld [vmem:[%s2] sm:$0xff]
        %233 = vset.pattern.permute.xlu0 0
        %234 = vperm.xlu0 %233, %v231
        %v235 = vpop.permute.xlu0 %234
        %v241 = vunpack.c.l.b16 %v227
        %v242 = vunpack.c.h.b16 %v227
        %v243 = vunpack.c.l.b16 %v228
        %v244 = vunpack.c.h.b16 %v228
        %v245 = vunpack.c.l.b16 %v229
        %v246 = vunpack.c.h.b16 %v229
        %v247 = vunpack.c.l.b16 %v230
        %v248 = vunpack.c.h.b16 %v230
        %v249 = vpack.c.b16 %v243, %v241
        %v250 = vpack.c.b16 %v244, %v242
        %v251 = vpack.c.b16 %v247, %v245
        %v252 = vpack.c.b16 %v248, %v246
        %vm255 = vcmask 220160
        %v257 = vsel %vm255, %v226, 0
        %vm259 = vcmask 1044480
        %vm260 = vcmask 1045504
        %v261 = vsel %vm259, 4294967295, 65535
        %v262 = vsel %vm260, %v261, 0
        %v264 = vand.u32 %v251, %v262
        %v267 = vand.u32 %v252, %v262
        %269 = vmatpush.bf16.msra.mxu0 0
        %270 = vmatpush.bf16.msra.mxu0 0
        %271 = vmatpush.bf16.msra.mxu0 0
        %272 = vmatpush.bf16.msra.mxu0 0
        %273 = vmatpush.bf16.msra.mxu0 0
        %274 = vmatpush.bf16.msra.mxu0 0
        %275 = vmatpush.bf16.msra.mxu0 %v264
        %276 = vmatpush.bf16.msra.mxu0 %v249
        %277 = vmatmul.bf16.gmra.mxu0 %v257
        %v278 = vpop.f32.mrf.mxu0
        %v279 = vadd.f32 %v235, %v278
        %v280 = vpop.f32.mrf.mxu0
        %281 = vdwg.mxu0
        %282 = vmatpush.bf16.msra.mxu0 0
        %283 = vmatpush.bf16.msra.mxu0 0
        %284 = vmatpush.bf16.msra.mxu0 0
        %285 = vmatpush.bf16.msra.mxu0 0
        %286 = vmatpush.bf16.msra.mxu0 0
        %287 = vmatpush.bf16.msra.mxu0 0
        %288 = vmatpush.bf16.msra.mxu0 %v267
        %289 = vmatpush.bf16.msra.mxu0 %v250
        %290 = vmatmul.bf16.gmra.mxu0 %v257
        %v291 = vpop.f32.mrf.mxu0
        %v292 = vadd.f32 %v235, %v291
        %v293 = vpop.f32.mrf.mxu0
        %294 = vdwg.mxu0
        %vm295 = vcmp.ge.f32.partialorder %v279, 0.0
        %vm296 = vcmp.ge.f32.partialorder %v292, 0.0
        %v297 = vmul.f32 %v279, 0.01
        %v298 = vmul.f32 %v292, 0.01
        %v299 = vsel %vm295, %v279, %v297
        %v300 = vsel %vm296, %v292, %v298
        %v301 = vpack.c.bf16 %v300, %v299
        %302 = vst [vmem:[%s223] sm:$0xff] %v301
        %s303 = smul.u32 2, %s20
        %p304 = scmp.lt.s32.totalorder %s19, 1
        %s305 = scalar_select %p304, %s19, 1
        %p306 = scmp.lt.s32.totalorder %s303, 1
        %s307 = scalar_select %p306, %s303, 1
        %s308 = smul.addr %s305, 2
        %s309 = sadd.s32 %s307, %s308
        %s310 = smul.addr %s309, 4
        %s311 = scalar_lea.vmem %s3, %s310
        // Predicated region
        $region37: #{seq2seq3d_forward.7} parent=31 // pred_check
          %p312 = pneg %p117
        $region38: #{seq2seq3d_forward.7} parent=31 // pred_check_branch
          %314 = sbr.rel (%p312) target = $region40
        $region39: #{seq2seq3d_forward.7} parent=31 // pred_region
          %s315 = smul.u32 2, %s20
        $region40: #{seq2seq3d_forward.7} parent=31 // pred_fallthru
          _
      $region32: #{seq2seq3d_forward.7} parent=5 // pred_fallthru
        _
      %p316 = scmp.le.s32.totalorder 2, %s10
      // Predicated region
      $region41: #{seq2seq3d_forward.7} parent=5 // pred_check
        %p317 = pneg %p316
      $region42: #{seq2seq3d_forward.7} parent=5 // pred_check_branch
        %319 = sbr.rel (%p317) target = $region44
      $region43: #{seq2seq3d_forward.7} parent=5 // pred_region
        %s320 = ssub.s32 %s10, 2
        // Predicated region
        $region45: #{seq2seq3d_forward.7} parent=43 // pred_check
          %p321 = pneg %p123
        $region46: #{seq2seq3d_forward.7} parent=43 // pred_check_branch
          %323 = sbr.rel (%p321) target = $region48
        $region47: #{seq2seq3d_forward.7} parent=43 // pred_region
          %s324 = smul.u32 2, %s22
          %p325 = scmp.lt.s32.totalorder %s21, 1
          %s326 = scalar_select %p325, %s21, 1
          %p327 = scmp.lt.s32.totalorder %s324, 1
          %s328 = scalar_select %p327, %s324, 1
          %s329 = smul.addr %s326, 2
          %s330 = sadd.s32 %s328, %s329
          %s331 = smul.addr %s330, 4
          %s332 = scalar_lea.vmem %s3, %s331
        $region48: #{seq2seq3d_forward.7} parent=43 // pred_fallthru
          _
      $region44: #{seq2seq3d_forward.7} parent=5 // pred_fallthru
        _
    $region6: #{seq2seq3d_forward.7} parent=1 // loop_footer
      %s14 = sadd.s32 1, %s10
    $region7: #{seq2seq3d_forward.7} parent=1 // loop_footer_branch
      %9 = sbr.rel target = $region3
    $region8: #{seq2seq3d_forward.7} parent=1 // loop_exit
      _
    %333 = vsyncpa [#allocation3], 1
    %s334 = scalar_lea.sflag [#allocation3], 1
    %335 = vsyncpa %s334, 1

// kernel: seq2seq3d_forward.8
$region0: #{seq2seq3d_forward.8}
  #allocation0 [shape = 'u32[]', space=smem, size = 0x4, offset = 0x4, fixed_abs, tag = 'smem constant byte address 0x4 - core index']
  #allocation1 [shape = 'u32[72,128]{1,0:T(1,128)}', space=vmem, size = 0x9000, scoped, tag = 'internal scratch']
  %s0 = inlined_call_operand.vmem [shape: bf16[2,216,256], index: 0, kind: input, shape index: {}]
  %s1 = inlined_call_operand.vmem [shape: bf16[8,216], index: 1, kind: input, shape index: {}]
  %s2 = inlined_call_operand.vmem [shape: f32[8,1], index: 2, kind: input, shape index: {}]
  %s3 = inlined_call_operand.vmem [shape: bf16[2,8,256], index: 3, kind: output, shape index: {}]
  %s4 = sld [smem:[#allocation0]]
  $region45: #{seq2seq3d_forward.8} parent=0
    _
  %s6 = ssub.s32 1, %s4
  %s7 = scalar_select 0, %s6, %s4
  loop: start=0, step=1, limit=4
  $region2: #{seq2seq3d_forward.8} parent=0 // loop_pre_header
    _
  $region3: #{seq2seq3d_forward.8} parent=0 // loop_header
    %s9 = sphi 0, %s13
    %p10 = scmp.ge.s32.totalorder %s9, 4
    %s16 = sphi 0, %s28
    %s17 = sphi 0, %s24
    %s18 = sphi 0, %s16
    %s19 = sphi 0, %s17
    %s20 = sphi 0, %s18
    %s21 = sphi 0, %s19
    %s33 = sphi 0, %s35
    %s36 = sphi 0, %s33
    %s37 = sphi 0, %s36
    %s53 = sphi 0, %s37
    %s57 = sphi 0, %s57
    %s59 = sphi 0, %s57
    %s60 = sphi 0, %s59
    %s74 = sphi 0, %s60
    %s78 = sphi 0, %s78
    %s80 = sphi 0, %s78
    %s81 = sphi 0, %s80
    %s95 = sphi 0, %s81
    %s103 = sphi 0, %s105
    %s106 = sphi 0, %s103
    %s107 = sphi 0, %s106
    %s123 = sphi 0, %s107
  $region4: #{seq2seq3d_forward.8} parent=0 // loop_header_branch
    %12 = sbr.rel (%p10) target = $region8
  $region5: #{seq2seq3d_forward.8} parent=0 // loop_body
    %s14 = ssub.s32 %s9, 1
    %s15 = ssub.s32 %s9, 2
    %s22 = sadd.s32 1, %s17
    %p23 = scmp.ge.s32.totalorder %s22, 1
    %s24 = scalar_select %p23, 0, %s22
    %s25 = sadd.s32 1, %s16
    %s26 = scalar_select %p23, %s25, %s16
    %p27 = scmp.ge.s32.totalorder %s26, 2
    %s28 = scalar_select %p27, 0, %s26
    %s29 = ssub.s32 %s16, %s28
    %s30 = ssub.s32 %s17, %s24
    %s31 = sor.u32 %s29, %s30
    %p32 = scmp.eq.s32.totalorder %s31, 0
    %s34 = sadd.s32 %s33, 1
    %s35 = scalar_select %p32, %s33, %s34
    %p38 = pneg %p32
    %p39 = scmp.eq.s32.totalorder %s9, 1
    %p40 = por %p38, %p39
    %p41 = scmp.ne.s32.totalorder %s33, %s36
    %p42 = scmp.eq.s32.totalorder %s9, 0
    %p43 = por %p41, %p42
    %p44 = scmp.ne.s32.totalorder %s33, %s36
    %p45 = scmp.eq.s32.totalorder %s14, 1
    %p46 = por %p44, %p45
    %p47 = scmp.ne.s32.totalorder %s36, %s37
    %p48 = scmp.eq.s32.totalorder %s14, 0
    %p49 = por %p47, %p48
    %p50 = scmp.ne.s32.totalorder %s36, %s37
    %p51 = scmp.eq.s32.totalorder %s15, 1
    %p52 = por %p50, %p51
    %p54 = scmp.ne.s32.totalorder %s37, %s53
    %p55 = scmp.eq.s32.totalorder %s15, 0
    %p56 = por %p54, %p55
    %s58 = sadd.s32 %s57, 1
    %p61 = scmp.eq.s32.totalorder %s9, 1
    %p62 = scmp.ne.s32.totalorder %s57, %s59
    %p63 = scmp.eq.s32.totalorder %s9, 0
    %p64 = por %p62, %p63
    %p65 = scmp.ne.s32.totalorder %s57, %s59
    %p66 = scmp.eq.s32.totalorder %s14, 1
    %p67 = por %p65, %p66
    %p68 = scmp.ne.s32.totalorder %s59, %s60
    %p69 = scmp.eq.s32.totalorder %s14, 0
    %p70 = por %p68, %p69
    %p71 = scmp.ne.s32.totalorder %s59, %s60
    %p72 = scmp.eq.s32.totalorder %s15, 1
    %p73 = por %p71, %p72
    %p75 = scmp.ne.s32.totalorder %s60, %s74
    %p76 = scmp.eq.s32.totalorder %s15, 0
    %p77 = por %p75, %p76
    %s79 = sadd.s32 %s78, 1
    %p82 = scmp.eq.s32.totalorder %s9, 1
    %p83 = scmp.ne.s32.totalorder %s78, %s80
    %p84 = scmp.eq.s32.totalorder %s9, 0
    %p85 = por %p83, %p84
    %p86 = scmp.ne.s32.totalorder %s78, %s80
    %p87 = scmp.eq.s32.totalorder %s14, 1
    %p88 = por %p86, %p87
    %p89 = scmp.ne.s32.totalorder %s80, %s81
    %p90 = scmp.eq.s32.totalorder %s14, 0
    %p91 = por %p89, %p90
    %p92 = scmp.ne.s32.totalorder %s80, %s81
    %p93 = scmp.eq.s32.totalorder %s15, 1
    %p94 = por %p92, %p93
    %p96 = scmp.ne.s32.totalorder %s81, %s95
    %p97 = scmp.eq.s32.totalorder %s15, 0
    %p98 = por %p96, %p97
    %s99 = ssub.s32 %s16, %s28
    %s100 = ssub.s32 %s17, %s24
    %s101 = sor.u32 %s99, %s100
    %p102 = scmp.eq.s32.totalorder %s101, 0
    %s104 = sadd.s32 %s103, 1
    %s105 = scalar_select %p102, %s103, %s104
    %p108 = pneg %p102
    %p109 = scmp.eq.s32.totalorder %s9, 1
    %p110 = por %p108, %p109
    %p111 = scmp.ne.s32.totalorder %s103, %s106
    %p112 = scmp.eq.s32.totalorder %s9, 0
    %p113 = por %p111, %p112
    %p114 = scmp.ne.s32.totalorder %s103, %s106
    %p115 = scmp.eq.s32.totalorder %s14, 1
    %p116 = por %p114, %p115
    %p117 = scmp.ne.s32.totalorder %s106, %s107
    %p118 = scmp.eq.s32.totalorder %s14, 0
    %p119 = por %p117, %p118
    %p120 = scmp.ne.s32.totalorder %s106, %s107
    %p121 = scmp.eq.s32.totalorder %s15, 1
    %p122 = por %p120, %p121
    %p124 = scmp.ne.s32.totalorder %s107, %s123
    %p125 = scmp.eq.s32.totalorder %s15, 0
    %p126 = por %p124, %p125
    %p127 = scmp.le.s32.totalorder 1, %s9
    %p128 = scmp.lt.s32.totalorder %s9, 3
    %p129 = pnand %p127, %p128
    %p130 = pneg %p129
    // Predicated region
    $region9: #{seq2seq3d_forward.8} parent=5 // pred_check
      _
    $region10: #{seq2seq3d_forward.8} parent=5 // pred_check_branch
      %132 = sbr.rel (%p129) target = $region12
    $region11: #{seq2seq3d_forward.8} parent=5 // pred_region
      %s133 = ssub.s32 %s9, 1
      // Predicated region
      $region13: #{seq2seq3d_forward.8} parent=11 // pred_check
        %p134 = pneg %p70
      $region14: #{seq2seq3d_forward.8} parent=11 // pred_check_branch
        %136 = sbr.rel (%p134) target = $region16
      $region15: #{seq2seq3d_forward.8} parent=11 // pred_region
        _
      $region16: #{seq2seq3d_forward.8} parent=11 // pred_fallthru
        _
      // Predicated region
      $region17: #{seq2seq3d_forward.8} parent=11 // pred_check
        %p137 = pneg %p91
      $region18: #{seq2seq3d_forward.8} parent=11 // pred_check_branch
        %139 = sbr.rel (%p137) target = $region20
      $region19: #{seq2seq3d_forward.8} parent=11 // pred_region
        _
      $region20: #{seq2seq3d_forward.8} parent=11 // pred_fallthru
        _
    $region12: #{seq2seq3d_forward.8} parent=5 // pred_fallthru
      _
    %p140 = scmp.lt.s32.totalorder %s9, 2
    // Predicated region
    $region21: #{seq2seq3d_forward.8} parent=5 // pred_check
      %p141 = pneg %p140
    $region22: #{seq2seq3d_forward.8} parent=5 // pred_check_branch
      %143 = sbr.rel (%p141) target = $region24
    $region23: #{seq2seq3d_forward.8} parent=5 // pred_region
      // Predicated region
      $region25: #{seq2seq3d_forward.8} parent=23 // pred_check
        %p144 = pneg %p43
      $region26: #{seq2seq3d_forward.8} parent=23 // pred_check_branch
        %146 = sbr.rel (%p144) target = $region28
      $region27: #{seq2seq3d_forward.8} parent=23 // pred_region
        %s147 = smul.u32 2, %s17
        %p148 = scmp.lt.s32.totalorder %s16, 1
        %s149 = scalar_select %p148, %s16, 1
        %p150 = scmp.lt.s32.totalorder %s147, 1
        %s151 = scalar_select %p150, %s147, 1
        %s152 = smul.addr %s149, 54
        %s153 = sadd.s32 %s151, %s152
        %s154 = smul.addr %s153, 4
        %s155 = scalar_lea.vmem %s0, %s154
        %s156 = smul.u32 2, %s17
      $region28: #{seq2seq3d_forward.8} parent=23 // pred_fallthru
        _
    $region24: #{seq2seq3d_forward.8} parent=5 // pred_fallthru
      _
    %p157 = scmp.le.s32.totalorder 1, %s9
    %p158 = scmp.lt.s32.totalorder %s9, 3
    %p159 = pnand %p157, %p158
    %p160 = pneg %p159
    // Predicated region
    $region29: #{seq2seq3d_forward.8} parent=5 // pred_check
      _
    $region30: #{seq2seq3d_forward.8} parent=5 // pred_check_branch
      %162 = sbr.rel (%p159) target = $region32
    $region31: #{seq2seq3d_forward.8} parent=5 // pred_region
      %s163 = ssub.s32 %s9, 1
      %s164 = smul.u32 2, %s19
      %p165 = scmp.lt.s32.totalorder %s18, 1
      %s166 = scalar_select %p165, %s18, 1
      %p167 = scmp.lt.s32.totalorder %s164, 1
      %s168 = scalar_select %p167, %s164, 1
      %s169 = smul.addr %s166, 54
      %s170 = sadd.s32 %s168, %s169
      %s171 = smul.addr %s170, 4
      %s172 = scalar_lea.vmem %s0, %s171
      %p173 = pneg %p49
      %p174 = pneg %p46
      %p175 = pneg %p70
      %p176 = pneg %p67
      %p177 = pneg %p91
      %p178 = pneg %p88
      %p179 = pneg %p119
      %p180 = pneg %p116
      %s181 = smul.u32 2, %s19
      %p182 = scmp.lt.s32.totalorder %s18, 1
      %s183 = scalar_select %p182, %s18, 1
      %p184 = scmp.lt.s32.totalorder %s181, 1
      %s185 = scalar_select %p184, %s181, 1
      %s186 = smul.addr %s183, 2
      %s187 = sadd.s32 %s185, %s186
      %s188 = smul.addr %s187, 4
      %s189 = scalar_lea.vmem %s3, %s188
      %s190 = smul.u32 2, %s19
      %p191 = scmp.lt.s32.totalorder %s18, 1
      %s192 = scalar_select %p191, %s18, 1
      %p193 = scmp.lt.s32.totalorder %s190, 1
      %s194 = scalar_select %p193, %s190, 1
      %s195 = smul.addr %s192, 54
      %s196 = sadd.s32 %s194, %s195
      %s197 = smul.addr %s196, 4
      %s198 = scalar_lea.vmem %s0, %s197
      %s199 = smul.u32 2, %s19
      %s200 = smul.u32 2, %s19
      %p201 = scmp.lt.s32.totalorder %s18, 1
      %s202 = scalar_select %p201, %s18, 1
      %p203 = scmp.lt.s32.totalorder %s200, 1
      %s204 = scalar_select %p203, %s200, 1
      %s205 = smul.addr %s202, 2
      %s206 = sadd.s32 %s204, %s205
      %s207 = smul.addr %s206, 4
      %s208 = scalar_lea.vmem %s3, %s207
      %s209 = smul.u32 2, %s19
      %v211 = vld [vmem:[%s1] sm:$0xff]
      %v212 = vld [vmem:[%s198] sm:$0xff]
      %v213 = vld [vmem:[%s198 + $0x8] sm:$0xff]
      %v214 = vld [vmem:[%s198 + $0x10] sm:$0xff]
      %v215 = vld [vmem:[%s198 + $0x18] sm:$0xff]
      %v216 = vld [vmem:[%s198 + $0x20] sm:$0xff]
      %v217 = vld [vmem:[%s198 + $0x28] sm:$0xff]
      %v218 = vld [vmem:[%s198 + $0x30] sm:$0xff]
      %v219 = vld [vmem:[%s198 + $0x38] sm:$0xff]
      %v220 = vld [vmem:[%s198 + $0x40] sm:$0xff]
      %v221 = vld [vmem:[%s198 + $0x48] sm:$0xff]
      %v222 = vld [vmem:[%s198 + $0x50] sm:$0xff]
      %v223 = vld [vmem:[%s198 + $0x58] sm:$0xff]
      %v224 = vld [vmem:[%s198 + $0x60] sm:$0xff]
      %v225 = vld [vmem:[%s198 + $0x68] sm:$0xff]
      %v226 = vld [vmem:[%s198 + $0x70] sm:$0xff]
      %v227 = vld [vmem:[%s198 + $0x78] sm:$0xff]
      %v228 = vld [vmem:[%s198 + $0x80] sm:$0xff]
      %v229 = vld [vmem:[%s198 + $0x88] sm:$0xff]
      %v230 = vld [vmem:[%s198 + $0x90] sm:$0xff]
      %v231 = vld [vmem:[%s198 + $0x98] sm:$0xff]
      %v232 = vld [vmem:[%s198 + $0xa0] sm:$0xff]
      %v233 = vld [vmem:[%s198 + $0xa8] sm:$0xff]
      %v234 = vld [vmem:[%s198 + $0xb0] sm:$0xff]
      %v235 = vld [vmem:[%s198 + $0xb8] sm:$0xff]
      %v236 = vld [vmem:[%s198 + $0xc0] sm:$0xff]
      %v237 = vld [vmem:[%s198 + $0xc8] sm:$0xff]
      %v238 = vld [vmem:[%s198 + $0xd0] sm:$0xff]
      %v239 = vld [vmem:[%s2] sm:$0xff]
      %241 = vset.pattern.permute.xlu0 0
      %242 = vperm.xlu0 %241, %v239
      %v243 = vpop.permute.xlu0 %242
      %v246 = vunpack.c.l.b16 %v211
      %v247 = vunpack.c.h.b16 %v211
      %v248 = vpack.c.b16 %v246, %v246
      %v249 = vpack.c.b16 %v247, %v247
      %v278 = vunpack.c.l.b16 %v212
      %v279 = vunpack.c.h.b16 %v212
      %v280 = vunpack.c.l.b16 %v213
      %v281 = vunpack.c.h.b16 %v213
      %v282 = vunpack.c.l.b16 %v214
      %v283 = vunpack.c.h.b16 %v214
      %v284 = vunpack.c.l.b16 %v215
      %v285 = vunpack.c.h.b16 %v215
      %v286 = vunpack.c.l.b16 %v216
      %v287 = vunpack.c.h.b16 %v216
      %v288 = vunpack.c.l.b16 %v217
      %v289 = vunpack.c.h.b16 %v217
      %v290 = vunpack.c.l.b16 %v218
      %v291 = vunpack.c.h.b16 %v218
      %v292 = vunpack.c.l.b16 %v219
      %v293 = vunpack.c.h.b16 %v219
      %v294 = vunpack.c.l.b16 %v220
      %v295 = vunpack.c.h.b16 %v220
      %v296 = vunpack.c.l.b16 %v221
      %v297 = vunpack.c.h.b16 %v221
      %v298 = vunpack.c.l.b16 %v222
      %v299 = vunpack.c.h.b16 %v222
      %v300 = vunpack.c.l.b16 %v223
      %v301 = vunpack.c.h.b16 %v223
      %v302 = vunpack.c.l.b16 %v224
      %v303 = vunpack.c.h.b16 %v224
      %v304 = vunpack.c.l.b16 %v225
      %v305 = vunpack.c.h.b16 %v225
      %v306 = vunpack.c.l.b16 %v226
      %v307 = vunpack.c.h.b16 %v226
      %v308 = vunpack.c.l.b16 %v227
      %v309 = vunpack.c.h.b16 %v227
      %v310 = vunpack.c.l.b16 %v228
      %v311 = vunpack.c.h.b16 %v228
      %v312 = vunpack.c.l.b16 %v229
      %v313 = vunpack.c.h.b16 %v229
      %v314 = vunpack.c.l.b16 %v230
      %v315 = vunpack.c.h.b16 %v230
      %v316 = vunpack.c.l.b16 %v231
      %v317 = vunpack.c.h.b16 %v231
      %v318 = vunpack.c.l.b16 %v232
      %v319 = vunpack.c.h.b16 %v232
      %v320 = vunpack.c.l.b16 %v233
      %v321 = vunpack.c.h.b16 %v233
      %v322 = vunpack.c.l.b16 %v234
      %v323 = vunpack.c.h.b16 %v234
      %v324 = vunpack.c.l.b16 %v235
      %v325 = vunpack.c.h.b16 %v235
      %v326 = vunpack.c.l.b16 %v236
      %v327 = vunpack.c.h.b16 %v236
      %v328 = vunpack.c.l.b16 %v237
      %v329 = vunpack.c.h.b16 %v237
      %v330 = vunpack.c.l.b16 %v238
      %v331 = vunpack.c.h.b16 %v238
      %v332 = vpack.c.b16 %v280, %v278
      %v333 = vpack.c.b16 %v281, %v279
      %v334 = vpack.c.b16 %v284, %v282
      %v335 = vpack.c.b16 %v285, %v283
      %v336 = vpack.c.b16 %v288, %v286
      %v337 = vpack.c.b16 %v289, %v287
      %v338 = vpack.c.b16 %v292, %v290
      %v339 = vpack.c.b16 %v293, %v291
      %v340 = vpack.c.b16 %v296, %v294
      %v341 = vpack.c.b16 %v297, %v295
      %v342 = vpack.c.b16 %v300, %v298
      %v343 = vpack.c.b16 %v301, %v299
      %v344 = vpack.c.b16 %v304, %v302
      %v345 = vpack.c.b16 %v305, %v303
      %v346 = vpack.c.b16 %v308, %v306
      %v347 = vpack.c.b16 %v309, %v307
      %v348 = vpack.c.b16 %v312, %v310
      %v349 = vpack.c.b16 %v313, %v311
      %v350 = vpack.c.b16 %v316, %v314
      %v351 = vpack.c.b16 %v317, %v315
      %v352 = vpack.c.b16 %v320, %v318
      %v353 = vpack.c.b16 %v321, %v319
      %v354 = vpack.c.b16 %v324, %v322
      %v355 = vpack.c.b16 %v325, %v323
      %v356 = vpack.c.b16 %v328, %v326
      %v357 = vpack.c.b16 %v329, %v327
      %v358 = vpack.c.b16 %v330, %v330
      %v359 = vpack.c.b16 %v331, %v331
      %vm386 = vcmask 719872
      %v388 = vsel %vm386, %v249, 0
      %vm390 = vcmask 1043456
      %v392 = vsel %vm390, %v358, 0
      %v395 = vsel %vm390, %v359, 0
      %397 = vmatpush.bf16.msra.mxu0 %v346
      %398 = vmatpush.bf16.msra.mxu0 %v344
      %399 = vmatpush.bf16.msra.mxu0 %v342
      %400 = vmatpush.bf16.msra.mxu0 %v340
      %401 = vmatpush.bf16.msra.mxu0 %v338
      %402 = vmatpush.bf16.msra.mxu0 %v336
      %403 = vmatpush.bf16.msra.mxu0 %v334
      %404 = vmatpush.bf16.msra.mxu0 %v332
      %405 = vmatmul.bf16.gmra.mxu0 %v248
      %v406 = vpop.f32.mrf.mxu0
      %v407 = vadd.f32 %v243, %v406
      %v408 = vpop.f32.mrf.mxu0
      %409 = vdwg.mxu0
      %410 = vmatpush.bf16.msra.mxu0 0
      %411 = vmatpush.bf16.msra.mxu0 0
      %412 = vmatpush.bf16.msra.mxu0 %v392
      %413 = vmatpush.bf16.msra.mxu0 %v356
      %414 = vmatpush.bf16.msra.mxu0 %v354
      %415 = vmatpush.bf16.msra.mxu0 %v352
      %416 = vmatpush.bf16.msra.mxu0 %v350
      %417 = vmatpush.bf16.msra.mxu0 %v348
      %418 = vmatmul.bf16.gmra.mxu0 %v388
      %v419 = vpop.f32.mrf.mxu0
      %v420 = vadd.f32 %v407, %v419
      %v421 = vpop.f32.mrf.mxu0
      %422 = vdwg.mxu0
      %423 = vmatpush.bf16.msra.mxu0 %v347
      %424 = vmatpush.bf16.msra.mxu0 %v345
      %425 = vmatpush.bf16.msra.mxu0 %v343
      %426 = vmatpush.bf16.msra.mxu0 %v341
      %427 = vmatpush.bf16.msra.mxu0 %v339
      %428 = vmatpush.bf16.msra.mxu0 %v337
      %429 = vmatpush.bf16.msra.mxu0 %v335
      %430 = vmatpush.bf16.msra.mxu0 %v333
      %431 = vmatmul.bf16.gmra.mxu0 %v248
      %v432 = vpop.f32.mrf.mxu0
      %v433 = vadd.f32 %v243, %v432
      %v434 = vpop.f32.mrf.mxu0
      %435 = vdwg.mxu0
      %436 = vmatpush.bf16.msra.mxu0 0
      %437 = vmatpush.bf16.msra.mxu0 0
      %438 = vmatpush.bf16.msra.mxu0 %v395
      %439 = vmatpush.bf16.msra.mxu0 %v357
      %440 = vmatpush.bf16.msra.mxu0 %v355
      %441 = vmatpush.bf16.msra.mxu0 %v353
      %442 = vmatpush.bf16.msra.mxu0 %v351
      %443 = vmatpush.bf16.msra.mxu0 %v349
      %444 = vmatmul.bf16.gmra.mxu0 %v388
      %v445 = vpop.f32.mrf.mxu0
      %v446 = vadd.f32 %v433, %v445
      %v447 = vpop.f32.mrf.mxu0
      %448 = vdwg.mxu0
      %vm449 = vcmp.ge.f32.partialorder %v420, 0.0
      %vm450 = vcmp.ge.f32.partialorder %v446, 0.0
      %v451 = vmul.f32 %v420, 0.01
      %v452 = vmul.f32 %v446, 0.01
      %v453 = vsel %vm449, %v420, %v451
      %v454 = vsel %vm450, %v446, %v452
      %v455 = vpack.c.bf16 %v454, %v453
      %456 = vst [vmem:[%s208] sm:$0xff] %v455
      %s457 = smul.u32 2, %s19
      %p458 = scmp.lt.s32.totalorder %s18, 1
      %s459 = scalar_select %p458, %s18, 1
      %p460 = scmp.lt.s32.totalorder %s457, 1
      %s461 = scalar_select %p460, %s457, 1
      %s462 = smul.addr %s459, 2
      %s463 = sadd.s32 %s461, %s462
      %s464 = smul.addr %s463, 4
      %s465 = scalar_lea.vmem %s3, %s464
      // Predicated region
      $region33: #{seq2seq3d_forward.8} parent=31 // pred_check
        %p466 = pneg %p116
      $region34: #{seq2seq3d_forward.8} parent=31 // pred_check_branch
        %468 = sbr.rel (%p466) target = $region36
      $region35: #{seq2seq3d_forward.8} parent=31 // pred_region
        %s469 = smul.u32 2, %s19
      $region36: #{seq2seq3d_forward.8} parent=31 // pred_fallthru
        _
    $region32: #{seq2seq3d_forward.8} parent=5 // pred_fallthru
      _
    %p470 = scmp.le.s32.totalorder 2, %s9
    // Predicated region
    $region37: #{seq2seq3d_forward.8} parent=5 // pred_check
      %p471 = pneg %p470
    $region38: #{seq2seq3d_forward.8} parent=5 // pred_check_branch
      %473 = sbr.rel (%p471) target = $region40
    $region39: #{seq2seq3d_forward.8} parent=5 // pred_region
      %s474 = ssub.s32 %s9, 2
      // Predicated region
      $region41: #{seq2seq3d_forward.8} parent=39 // pred_check
        %p475 = pneg %p122
      $region42: #{seq2seq3d_forward.8} parent=39 // pred_check_branch
        %477 = sbr.rel (%p475) target = $region44
      $region43: #{seq2seq3d_forward.8} parent=39 // pred_region
        %s478 = smul.u32 2, %s21
        %p479 = scmp.lt.s32.totalorder %s20, 1
        %s480 = scalar_select %p479, %s20, 1
        %p481 = scmp.lt.s32.totalorder %s478, 1
        %s482 = scalar_select %p481, %s478, 1
        %s483 = smul.addr %s480, 2
        %s484 = sadd.s32 %s482, %s483
        %s485 = smul.addr %s484, 4
        %s486 = scalar_lea.vmem %s3, %s485
      $region44: #{seq2seq3d_forward.8} parent=39 // pred_fallthru
        _
    $region40: #{seq2seq3d_forward.8} parent=5 // pred_fallthru
      _
  $region6: #{seq2seq3d_forward.8} parent=0 // loop_footer
    %s13 = sadd.s32 1, %s9
  $region7: #{seq2seq3d_forward.8} parent=0 // loop_footer_branch
    %8 = sbr.rel target = $region3
  $region8: #{seq2seq3d_forward.8} parent=0 // loop_exit
    _

// kernel: seq2seq3d_forward.9
$region0: #{seq2seq3d_forward.9}
  #allocation0 [shape = 'u32[]', space=smem, size = 0x4, offset = 0x4, fixed_abs, tag = 'smem constant byte address 0x4 - core index']
  #allocation1 [shape = 'u32[72,128]{1,0:T(1,128)}', space=vmem, size = 0x9000, scoped, tag = 'internal scratch']
  %s0 = inlined_call_operand.vmem [shape: bf16[2,216,32], index: 0, kind: input, shape index: {}]
  %s1 = inlined_call_operand.vmem [shape: bf16[16,216], index: 1, kind: input, shape index: {}]
  %s2 = inlined_call_operand.vmem [shape: f32[16,1], index: 2, kind: input, shape index: {}]
  %s3 = inlined_call_operand.vmem [shape: bf16[2,16,32], index: 3, kind: output, shape index: {}]
  %s4 = sld [smem:[#allocation0]]
  $region45: #{seq2seq3d_forward.9} parent=0
    _
  %s6 = ssub.s32 1, %s4
  %s7 = scalar_select 0, %s6, %s4
  loop: start=0, step=1, limit=4
  $region2: #{seq2seq3d_forward.9} parent=0 // loop_pre_header
    _
  $region3: #{seq2seq3d_forward.9} parent=0 // loop_header
    %s9 = sphi 0, %s13
    %p10 = scmp.ge.s32.totalorder %s9, 4
    %s16 = sphi 0, %s28
    %s17 = sphi 0, %s24
    %s18 = sphi 0, %s16
    %s19 = sphi 0, %s17
    %s20 = sphi 0, %s18
    %s21 = sphi 0, %s19
    %s33 = sphi 0, %s35
    %s36 = sphi 0, %s33
    %s37 = sphi 0, %s36
    %s53 = sphi 0, %s37
    %s57 = sphi 0, %s57
    %s59 = sphi 0, %s57
    %s60 = sphi 0, %s59
    %s74 = sphi 0, %s60
    %s78 = sphi 0, %s78
    %s80 = sphi 0, %s78
    %s81 = sphi 0, %s80
    %s95 = sphi 0, %s81
    %s103 = sphi 0, %s105
    %s106 = sphi 0, %s103
    %s107 = sphi 0, %s106
    %s123 = sphi 0, %s107
  $region4: #{seq2seq3d_forward.9} parent=0 // loop_header_branch
    %12 = sbr.rel (%p10) target = $region8
  $region5: #{seq2seq3d_forward.9} parent=0 // loop_body
    %s14 = ssub.s32 %s9, 1
    %s15 = ssub.s32 %s9, 2
    %s22 = sadd.s32 1, %s17
    %p23 = scmp.ge.s32.totalorder %s22, 1
    %s24 = scalar_select %p23, 0, %s22
    %s25 = sadd.s32 1, %s16
    %s26 = scalar_select %p23, %s25, %s16
    %p27 = scmp.ge.s32.totalorder %s26, 2
    %s28 = scalar_select %p27, 0, %s26
    %s29 = ssub.s32 %s16, %s28
    %s30 = ssub.s32 %s17, %s24
    %s31 = sor.u32 %s29, %s30
    %p32 = scmp.eq.s32.totalorder %s31, 0
    %s34 = sadd.s32 %s33, 1
    %s35 = scalar_select %p32, %s33, %s34
    %p38 = pneg %p32
    %p39 = scmp.eq.s32.totalorder %s9, 1
    %p40 = por %p38, %p39
    %p41 = scmp.ne.s32.totalorder %s33, %s36
    %p42 = scmp.eq.s32.totalorder %s9, 0
    %p43 = por %p41, %p42
    %p44 = scmp.ne.s32.totalorder %s33, %s36
    %p45 = scmp.eq.s32.totalorder %s14, 1
    %p46 = por %p44, %p45
    %p47 = scmp.ne.s32.totalorder %s36, %s37
    %p48 = scmp.eq.s32.totalorder %s14, 0
    %p49 = por %p47, %p48
    %p50 = scmp.ne.s32.totalorder %s36, %s37
    %p51 = scmp.eq.s32.totalorder %s15, 1
    %p52 = por %p50, %p51
    %p54 = scmp.ne.s32.totalorder %s37, %s53
    %p55 = scmp.eq.s32.totalorder %s15, 0
    %p56 = por %p54, %p55
    %s58 = sadd.s32 %s57, 1
    %p61 = scmp.eq.s32.totalorder %s9, 1
    %p62 = scmp.ne.s32.totalorder %s57, %s59
    %p63 = scmp.eq.s32.totalorder %s9, 0
    %p64 = por %p62, %p63
    %p65 = scmp.ne.s32.totalorder %s57, %s59
    %p66 = scmp.eq.s32.totalorder %s14, 1
    %p67 = por %p65, %p66
    %p68 = scmp.ne.s32.totalorder %s59, %s60
    %p69 = scmp.eq.s32.totalorder %s14, 0
    %p70 = por %p68, %p69
    %p71 = scmp.ne.s32.totalorder %s59, %s60
    %p72 = scmp.eq.s32.totalorder %s15, 1
    %p73 = por %p71, %p72
    %p75 = scmp.ne.s32.totalorder %s60, %s74
    %p76 = scmp.eq.s32.totalorder %s15, 0
    %p77 = por %p75, %p76
    %s79 = sadd.s32 %s78, 1
    %p82 = scmp.eq.s32.totalorder %s9, 1
    %p83 = scmp.ne.s32.totalorder %s78, %s80
    %p84 = scmp.eq.s32.totalorder %s9, 0
    %p85 = por %p83, %p84
    %p86 = scmp.ne.s32.totalorder %s78, %s80
    %p87 = scmp.eq.s32.totalorder %s14, 1
    %p88 = por %p86, %p87
    %p89 = scmp.ne.s32.totalorder %s80, %s81
    %p90 = scmp.eq.s32.totalorder %s14, 0
    %p91 = por %p89, %p90
    %p92 = scmp.ne.s32.totalorder %s80, %s81
    %p93 = scmp.eq.s32.totalorder %s15, 1
    %p94 = por %p92, %p93
    %p96 = scmp.ne.s32.totalorder %s81, %s95
    %p97 = scmp.eq.s32.totalorder %s15, 0
    %p98 = por %p96, %p97
    %s99 = ssub.s32 %s16, %s28
    %s100 = ssub.s32 %s17, %s24
    %s101 = sor.u32 %s99, %s100
    %p102 = scmp.eq.s32.totalorder %s101, 0
    %s104 = sadd.s32 %s103, 1
    %s105 = scalar_select %p102, %s103, %s104
    %p108 = pneg %p102
    %p109 = scmp.eq.s32.totalorder %s9, 1
    %p110 = por %p108, %p109
    %p111 = scmp.ne.s32.totalorder %s103, %s106
    %p112 = scmp.eq.s32.totalorder %s9, 0
    %p113 = por %p111, %p112
    %p114 = scmp.ne.s32.totalorder %s103, %s106
    %p115 = scmp.eq.s32.totalorder %s14, 1
    %p116 = por %p114, %p115
    %p117 = scmp.ne.s32.totalorder %s106, %s107
    %p118 = scmp.eq.s32.totalorder %s14, 0
    %p119 = por %p117, %p118
    %p120 = scmp.ne.s32.totalorder %s106, %s107
    %p121 = scmp.eq.s32.totalorder %s15, 1
    %p122 = por %p120, %p121
    %p124 = scmp.ne.s32.totalorder %s107, %s123
    %p125 = scmp.eq.s32.totalorder %s15, 0
    %p126 = por %p124, %p125
    %p127 = scmp.le.s32.totalorder 1, %s9
    %p128 = scmp.lt.s32.totalorder %s9, 3
    %p129 = pnand %p127, %p128
    %p130 = pneg %p129
    // Predicated region
    $region9: #{seq2seq3d_forward.9} parent=5 // pred_check
      _
    $region10: #{seq2seq3d_forward.9} parent=5 // pred_check_branch
      %132 = sbr.rel (%p129) target = $region12
    $region11: #{seq2seq3d_forward.9} parent=5 // pred_region
      %s133 = ssub.s32 %s9, 1
      // Predicated region
      $region13: #{seq2seq3d_forward.9} parent=11 // pred_check
        %p134 = pneg %p70
      $region14: #{seq2seq3d_forward.9} parent=11 // pred_check_branch
        %136 = sbr.rel (%p134) target = $region16
      $region15: #{seq2seq3d_forward.9} parent=11 // pred_region
        _
      $region16: #{seq2seq3d_forward.9} parent=11 // pred_fallthru
        _
      // Predicated region
      $region17: #{seq2seq3d_forward.9} parent=11 // pred_check
        %p137 = pneg %p91
      $region18: #{seq2seq3d_forward.9} parent=11 // pred_check_branch
        %139 = sbr.rel (%p137) target = $region20
      $region19: #{seq2seq3d_forward.9} parent=11 // pred_region
        _
      $region20: #{seq2seq3d_forward.9} parent=11 // pred_fallthru
        _
    $region12: #{seq2seq3d_forward.9} parent=5 // pred_fallthru
      _
    %p140 = scmp.lt.s32.totalorder %s9, 2
    // Predicated region
    $region21: #{seq2seq3d_forward.9} parent=5 // pred_check
      %p141 = pneg %p140
    $region22: #{seq2seq3d_forward.9} parent=5 // pred_check_branch
      %143 = sbr.rel (%p141) target = $region24
    $region23: #{seq2seq3d_forward.9} parent=5 // pred_region
      // Predicated region
      $region25: #{seq2seq3d_forward.9} parent=23 // pred_check
        %p144 = pneg %p43
      $region26: #{seq2seq3d_forward.9} parent=23 // pred_check_branch
        %146 = sbr.rel (%p144) target = $region28
      $region27: #{seq2seq3d_forward.9} parent=23 // pred_region
        %p147 = scmp.lt.s32.totalorder %s16, 1
        %s148 = scalar_select %p147, %s16, 1
        %p149 = scmp.lt.s32.totalorder %s17, 0
        %s150 = scalar_select %p149, %s17, 0
        %s151 = smul.addr %s148, 27
        %s152 = sadd.s32 %s150, %s151
        %s153 = smul.addr %s152, 4
        %s154 = scalar_lea.vmem %s0, %s153
      $region28: #{seq2seq3d_forward.9} parent=23 // pred_fallthru
        _
    $region24: #{seq2seq3d_forward.9} parent=5 // pred_fallthru
      _
    %p155 = scmp.le.s32.totalorder 1, %s9
    %p156 = scmp.lt.s32.totalorder %s9, 3
    %p157 = pnand %p155, %p156
    %p158 = pneg %p157
    // Predicated region
    $region29: #{seq2seq3d_forward.9} parent=5 // pred_check
      _
    $region30: #{seq2seq3d_forward.9} parent=5 // pred_check_branch
      %160 = sbr.rel (%p157) target = $region32
    $region31: #{seq2seq3d_forward.9} parent=5 // pred_region
      %s161 = ssub.s32 %s9, 1
      %p162 = scmp.lt.s32.totalorder %s18, 1
      %s163 = scalar_select %p162, %s18, 1
      %p164 = scmp.lt.s32.totalorder %s19, 0
      %s165 = scalar_select %p164, %s19, 0
      %s166 = smul.addr %s163, 27
      %s167 = sadd.s32 %s165, %s166
      %s168 = smul.addr %s167, 4
      %s169 = scalar_lea.vmem %s0, %s168
      %p170 = pneg %p49
      %p171 = pneg %p46
      %p172 = pneg %p70
      %p173 = pneg %p67
      %p174 = pneg %p91
      %p175 = pneg %p88
      %p176 = pneg %p119
      %p177 = pneg %p116
      %p178 = scmp.lt.s32.totalorder %s18, 1
      %s179 = scalar_select %p178, %s18, 1
      %p180 = scmp.lt.s32.totalorder %s19, 0
      %s181 = scalar_select %p180, %s19, 0
      %s182 = smul.addr %s179, 2
      %s183 = sadd.s32 %s181, %s182
      %s184 = smul.addr %s183, 4
      %s185 = scalar_lea.vmem %s3, %s184
      %p186 = scmp.lt.s32.totalorder %s18, 1
      %s187 = scalar_select %p186, %s18, 1
      %p188 = scmp.lt.s32.totalorder %s19, 0
      %s189 = scalar_select %p188, %s19, 0
      %s190 = smul.addr %s187, 27
      %s191 = sadd.s32 %s189, %s190
      %s192 = smul.addr %s191, 4
      %s193 = scalar_lea.vmem %s0, %s192
      %p194 = scmp.lt.s32.totalorder %s18, 1
      %s195 = scalar_select %p194, %s18, 1
      %p196 = scmp.lt.s32.totalorder %s19, 0
      %s197 = scalar_select %p196, %s19, 0
      %s198 = smul.addr %s195, 2
      %s199 = sadd.s32 %s197, %s198
      %s200 = smul.addr %s199, 4
      %s201 = scalar_lea.vmem %s3, %s200
      %v203 = vld [vmem:[%s1] sm:$0xff]
      %v204 = vld [vmem:[%s1 + $0x8] sm:$0xff]
      %v205 = vld [vmem:[%s193] sm:$0xf]
      %v206 = vld [vmem:[%s193 + $0x4] sm:$0xf]
      %v207 = vld [vmem:[%s193 + $0x8] sm:$0xf]
      %v208 = vld [vmem:[%s193 + $0xc] sm:$0xf]
      %v209 = vld [vmem:[%s193 + $0x10] sm:$0xf]
      %v210 = vld [vmem:[%s193 + $0x14] sm:$0xf]
      %v211 = vld [vmem:[%s193 + $0x18] sm:$0xf]
      %v212 = vld [vmem:[%s193 + $0x1c] sm:$0xf]
      %v213 = vld [vmem:[%s193 + $0x20] sm:$0xf]
      %v214 = vld [vmem:[%s193 + $0x24] sm:$0xf]
      %v215 = vld [vmem:[%s193 + $0x28] sm:$0xf]
      %v216 = vld [vmem:[%s193 + $0x2c] sm:$0xf]
      %v217 = vld [vmem:[%s193 + $0x30] sm:$0xf]
      %v218 = vld [vmem:[%s193 + $0x34] sm:$0xf]
      %v219 = vld [vmem:[%s193 + $0x38] sm:$0xf]
      %v220 = vld [vmem:[%s193 + $0x3c] sm:$0xf]
      %v221 = vld [vmem:[%s193 + $0x40] sm:$0xf]
      %v222 = vld [vmem:[%s193 + $0x44] sm:$0xf]
      %v223 = vld [vmem:[%s193 + $0x48] sm:$0xf]
      %v224 = vld [vmem:[%s193 + $0x4c] sm:$0xf]
      %v225 = vld [vmem:[%s193 + $0x50] sm:$0xf]
      %v226 = vld [vmem:[%s193 + $0x54] sm:$0xf]
      %v227 = vld [vmem:[%s193 + $0x58] sm:$0xf]
      %v228 = vld [vmem:[%s193 + $0x5c] sm:$0xf]
      %v229 = vld [vmem:[%s193 + $0x60] sm:$0xf]
      %v230 = vld [vmem:[%s193 + $0x64] sm:$0xf]
      %v231 = vld [vmem:[%s193 + $0x68] sm:$0xf]
      %v232 = vld [vmem:[%s2] sm:$0xff]
      %v233 = vld [vmem:[%s2 + $0x8] sm:$0xff]
      %235 = vset.pattern.permute.xlu0 0
      %236 = vperm.xlu0 %235, %v232
      %v237 = vpop.permute.xlu0 %236
      %240 = vset.pattern.permute.xlu0 0
      %241 = vperm.xlu0 %240, %v233
      %v242 = vpop.permute.xlu0 %241
      %v246 = vunpack.c.l.b16 %v203
      %v247 = vunpack.c.h.b16 %v203
      %v248 = vunpack.c.l.b16 %v204
      %v249 = vunpack.c.h.b16 %v204
      %v250 = vpack.c.b16 %v248, %v246
      %v251 = vpack.c.b16 %v249, %v247
      %v280 = vunpack.c.l.b16 %v205
      %v281 = vunpack.c.l.b16 %v206
      %v282 = vunpack.c.l.b16 %v207
      %v283 = vunpack.c.l.b16 %v208
      %v284 = vunpack.c.l.b16 %v209
      %v285 = vunpack.c.l.b16 %v210
      %v286 = vunpack.c.l.b16 %v211
      %v287 = vunpack.c.l.b16 %v212
      %v288 = vunpack.c.l.b16 %v213
      %v289 = vunpack.c.l.b16 %v214
      %v290 = vunpack.c.l.b16 %v215
      %v291 = vunpack.c.l.b16 %v216
      %v292 = vunpack.c.l.b16 %v217
      %v293 = vunpack.c.l.b16 %v218
      %v294 = vunpack.c.l.b16 %v219
      %v295 = vunpack.c.l.b16 %v220
      %v296 = vunpack.c.l.b16 %v221
      %v297 = vunpack.c.l.b16 %v222
      %v298 = vunpack.c.l.b16 %v223
      %v299 = vunpack.c.l.b16 %v224
      %v300 = vunpack.c.l.b16 %v225
      %v301 = vunpack.c.l.b16 %v226
      %v302 = vunpack.c.l.b16 %v227
      %v303 = vunpack.c.l.b16 %v228
      %v304 = vunpack.c.l.b16 %v229
      %v305 = vunpack.c.l.b16 %v230
      %v306 = vunpack.c.l.b16 %v231
      %v307 = vpack.c.b16 %v281, %v280
      %v308 = vpack.c.b16 %v283, %v282
      %v309 = vpack.c.b16 %v285, %v284
      %v310 = vpack.c.b16 %v287, %v286
      %v311 = vpack.c.b16 %v289, %v288
      %v312 = vpack.c.b16 %v291, %v290
      %v313 = vpack.c.b16 %v293, %v292
      %v314 = vpack.c.b16 %v295, %v294
      %v315 = vpack.c.b16 %v297, %v296
      %v316 = vpack.c.b16 %v299, %v298
      %v317 = vpack.c.b16 %v301, %v300
      %v318 = vpack.c.b16 %v303, %v302
      %v319 = vpack.c.b16 %v305, %v304
      %v320 = vpack.c.b16 %v306, %v306
      %vm334 = vcmask 719872
      %v336 = vsel %vm334, %v251, 0
      %vm338 = vcmask 1043456
      %v340 = vsel %vm338, %v320, 0
      %342 = vmatpush.bf16.msra.mxu0 %v314
      %343 = vmatpush.bf16.msra.mxu0 %v313
      %344 = vmatpush.bf16.msra.mxu0 %v312
      %345 = vmatpush.bf16.msra.mxu0 %v311
      %346 = vmatpush.bf16.msra.mxu0 %v310
      %347 = vmatpush.bf16.msra.mxu0 %v309
      %348 = vmatpush.bf16.msra.mxu0 %v308
      %349 = vmatpush.bf16.msra.mxu0 %v307
      %350 = vmatmul.bf16.gmra.mxu0 %v250
      %v351 = vpop.f32.mrf.mxu0
      %v352 = vadd.f32 %v237, %v351
      %v353 = vpop.f32.mrf.mxu0
      %v354 = vadd.f32 %v242, %v353
      %355 = vdwg.mxu0
      %356 = vmatpush.bf16.msra.mxu0 0
      %357 = vmatpush.bf16.msra.mxu0 0
      %358 = vmatpush.bf16.msra.mxu0 %v340
      %359 = vmatpush.bf16.msra.mxu0 %v319
      %360 = vmatpush.bf16.msra.mxu0 %v318
      %361 = vmatpush.bf16.msra.mxu0 %v317
      %362 = vmatpush.bf16.msra.mxu0 %v316
      %363 = vmatpush.bf16.msra.mxu0 %v315
      %364 = vmatmul.bf16.gmra.mxu0 %v336
      %v365 = vpop.f32.mrf.mxu0
      %v366 = vadd.f32 %v352, %v365
      %v367 = vpop.f32.mrf.mxu0
      %v368 = vadd.f32 %v354, %v367
      %369 = vdwg.mxu0
      %vm370 = vcmp.ge.f32.partialorder %v366, 0.0
      %vm371 = vcmp.ge.f32.partialorder %v368, 0.0
      %v372 = vmul.f32 %v366, 0.01
      %v373 = vmul.f32 %v368, 0.01
      %v374 = vsel %vm370, %v366, %v372
      %v375 = vsel %vm371, %v368, %v373
      %v376 = vpack.c.bf16 %v374, %v374
      %v377 = vpack.c.bf16 %v375, %v375
      %vm378 = vcmask 257024
      %379 = vst.msk [vmem:[%s201] sm:$0xf] %vm378, %v376
      %380 = vst.msk [vmem:[%s201 + $0x4] sm:$0xf] %vm378, %v377
      %p381 = scmp.lt.s32.totalorder %s18, 1
      %s382 = scalar_select %p381, %s18, 1
      %p383 = scmp.lt.s32.totalorder %s19, 0
      %s384 = scalar_select %p383, %s19, 0
      %s385 = smul.addr %s382, 2
      %s386 = sadd.s32 %s384, %s385
      %s387 = smul.addr %s386, 4
      %s388 = scalar_lea.vmem %s3, %s387
      // Predicated region
      $region33: #{seq2seq3d_forward.9} parent=31 // pred_check
        %p389 = pneg %p116
      $region34: #{seq2seq3d_forward.9} parent=31 // pred_check_branch
        %391 = sbr.rel (%p389) target = $region36
      $region35: #{seq2seq3d_forward.9} parent=31 // pred_region
        _
      $region36: #{seq2seq3d_forward.9} parent=31 // pred_fallthru
        _
    $region32: #{seq2seq3d_forward.9} parent=5 // pred_fallthru
      _
    %p392 = scmp.le.s32.totalorder 2, %s9
    // Predicated region
    $region37: #{seq2seq3d_forward.9} parent=5 // pred_check
      %p393 = pneg %p392
    $region38: #{seq2seq3d_forward.9} parent=5 // pred_check_branch
      %395 = sbr.rel (%p393) target = $region40
    $region39: #{seq2seq3d_forward.9} parent=5 // pred_region
      %s396 = ssub.s32 %s9, 2
      // Predicated region
      $region41: #{seq2seq3d_forward.9} parent=39 // pred_check
        %p397 = pneg %p122
      $region42: #{seq2seq3d_forward.9} parent=39 // pred_check_branch
        %399 = sbr.rel (%p397) target = $region44
      $region43: #{seq2seq3d_forward.9} parent=39 // pred_region
        %p400 = scmp.lt.s32.totalorder %s20, 1
        %s401 = scalar_select %p400, %s20, 1
        %p402 = scmp.lt.s32.totalorder %s21, 0
        %s403 = scalar_select %p402, %s21, 0
        %s404 = smul.addr %s401, 2
        %s405 = sadd.s32 %s403, %s404
        %s406 = smul.addr %s405, 4
        %s407 = scalar_lea.vmem %s3, %s406
      $region44: #{seq2seq3d_forward.9} parent=39 // pred_fallthru
        _
    $region40: #{seq2seq3d_forward.9} parent=5 // pred_fallthru
      _
  $region6: #{seq2seq3d_forward.9} parent=0 // loop_footer
    %s13 = sadd.s32 1, %s9
  $region7: #{seq2seq3d_forward.9} parent=0 // loop_footer_branch
    %8 = sbr.rel target = $region3
  $region8: #{seq2seq3d_forward.9} parent=0 // loop_exit
    _

// kernel: seq2seq3d_forward.10
$region0: #{seq2seq3d_forward.10}
  #allocation0 [shape = 'u32[]', space=smem, size = 0x4, offset = 0x4, fixed_abs, tag = 'smem constant byte address 0x4 - core index']
  #allocation1 [shape = 'u32[72,128]{1,0:T(1,128)}', space=vmem, size = 0x9000, scoped, tag = 'internal scratch']
  %s0 = inlined_call_operand.vmem [shape: bf16[2,432,32], index: 0, kind: input, shape index: {}]
  %s1 = inlined_call_operand.vmem [shape: bf16[16,432], index: 1, kind: input, shape index: {}]
  %s2 = inlined_call_operand.vmem [shape: f32[16,1], index: 2, kind: input, shape index: {}]
  %s3 = inlined_call_operand.vmem [shape: f32[8,16], index: 3, kind: input, shape index: {}]
  %s4 = inlined_call_operand.vmem [shape: f32[8,1], index: 4, kind: input, shape index: {}]
  %s5 = inlined_call_operand.vmem [shape: bf16[2,8,32], index: 5, kind: output, shape index: {}]
  %s6 = sld [smem:[#allocation0]]
  $region53: #{seq2seq3d_forward.10} parent=0
    _
  %s8 = ssub.s32 1, %s6
  %s9 = scalar_select 0, %s8, %s6
  loop: start=0, step=1, limit=4
  $region2: #{seq2seq3d_forward.10} parent=0 // loop_pre_header
    _
  $region3: #{seq2seq3d_forward.10} parent=0 // loop_header
    %s11 = sphi 0, %s15
    %p12 = scmp.ge.s32.totalorder %s11, 4
    %s18 = sphi 0, %s30
    %s19 = sphi 0, %s26
    %s20 = sphi 0, %s18
    %s21 = sphi 0, %s19
    %s22 = sphi 0, %s20
    %s23 = sphi 0, %s21
    %s35 = sphi 0, %s37
    %s38 = sphi 0, %s35
    %s39 = sphi 0, %s38
    %s55 = sphi 0, %s39
    %s59 = sphi 0, %s59
    %s61 = sphi 0, %s59
    %s62 = sphi 0, %s61
    %s76 = sphi 0, %s62
    %s80 = sphi 0, %s80
    %s82 = sphi 0, %s80
    %s83 = sphi 0, %s82
    %s97 = sphi 0, %s83
    %s101 = sphi 0, %s101
    %s103 = sphi 0, %s101
    %s104 = sphi 0, %s103
    %s118 = sphi 0, %s104
    %s122 = sphi 0, %s122
    %s124 = sphi 0, %s122
    %s125 = sphi 0, %s124
    %s139 = sphi 0, %s125
    %s147 = sphi 0, %s149
    %s150 = sphi 0, %s147
    %s151 = sphi 0, %s150
    %s167 = sphi 0, %s151
  $region4: #{seq2seq3d_forward.10} parent=0 // loop_header_branch
    %14 = sbr.rel (%p12) target = $region8
  $region5: #{seq2seq3d_forward.10} parent=0 // loop_body
    %s16 = ssub.s32 %s11, 1
    %s17 = ssub.s32 %s11, 2
    %s24 = sadd.s32 1, %s19
    %p25 = scmp.ge.s32.totalorder %s24, 1
    %s26 = scalar_select %p25, 0, %s24
    %s27 = sadd.s32 1, %s18
    %s28 = scalar_select %p25, %s27, %s18
    %p29 = scmp.ge.s32.totalorder %s28, 2
    %s30 = scalar_select %p29, 0, %s28
    %s31 = ssub.s32 %s18, %s30
    %s32 = ssub.s32 %s19, %s26
    %s33 = sor.u32 %s31, %s32
    %p34 = scmp.eq.s32.totalorder %s33, 0
    %s36 = sadd.s32 %s35, 1
    %s37 = scalar_select %p34, %s35, %s36
    %p40 = pneg %p34
    %p41 = scmp.eq.s32.totalorder %s11, 1
    %p42 = por %p40, %p41
    %p43 = scmp.ne.s32.totalorder %s35, %s38
    %p44 = scmp.eq.s32.totalorder %s11, 0
    %p45 = por %p43, %p44
    %p46 = scmp.ne.s32.totalorder %s35, %s38
    %p47 = scmp.eq.s32.totalorder %s16, 1
    %p48 = por %p46, %p47
    %p49 = scmp.ne.s32.totalorder %s38, %s39
    %p50 = scmp.eq.s32.totalorder %s16, 0
    %p51 = por %p49, %p50
    %p52 = scmp.ne.s32.totalorder %s38, %s39
    %p53 = scmp.eq.s32.totalorder %s17, 1
    %p54 = por %p52, %p53
    %p56 = scmp.ne.s32.totalorder %s39, %s55
    %p57 = scmp.eq.s32.totalorder %s17, 0
    %p58 = por %p56, %p57
    %s60 = sadd.s32 %s59, 1
    %p63 = scmp.eq.s32.totalorder %s11, 1
    %p64 = scmp.ne.s32.totalorder %s59, %s61
    %p65 = scmp.eq.s32.totalorder %s11, 0
    %p66 = por %p64, %p65
    %p67 = scmp.ne.s32.totalorder %s59, %s61
    %p68 = scmp.eq.s32.totalorder %s16, 1
    %p69 = por %p67, %p68
    %p70 = scmp.ne.s32.totalorder %s61, %s62
    %p71 = scmp.eq.s32.totalorder %s16, 0
    %p72 = por %p70, %p71
    %p73 = scmp.ne.s32.totalorder %s61, %s62
    %p74 = scmp.eq.s32.totalorder %s17, 1
    %p75 = por %p73, %p74
    %p77 = scmp.ne.s32.totalorder %s62, %s76
    %p78 = scmp.eq.s32.totalorder %s17, 0
    %p79 = por %p77, %p78
    %s81 = sadd.s32 %s80, 1
    %p84 = scmp.eq.s32.totalorder %s11, 1
    %p85 = scmp.ne.s32.totalorder %s80, %s82
    %p86 = scmp.eq.s32.totalorder %s11, 0
    %p87 = por %p85, %p86
    %p88 = scmp.ne.s32.totalorder %s80, %s82
    %p89 = scmp.eq.s32.totalorder %s16, 1
    %p90 = por %p88, %p89
    %p91 = scmp.ne.s32.totalorder %s82, %s83
    %p92 = scmp.eq.s32.totalorder %s16, 0
    %p93 = por %p91, %p92
    %p94 = scmp.ne.s32.totalorder %s82, %s83
    %p95 = scmp.eq.s32.totalorder %s17, 1
    %p96 = por %p94, %p95
    %p98 = scmp.ne.s32.totalorder %s83, %s97
    %p99 = scmp.eq.s32.totalorder %s17, 0
    %p100 = por %p98, %p99
    %s102 = sadd.s32 %s101, 1
    %p105 = scmp.eq.s32.totalorder %s11, 1
    %p106 = scmp.ne.s32.totalorder %s101, %s103
    %p107 = scmp.eq.s32.totalorder %s11, 0
    %p108 = por %p106, %p107
    %p109 = scmp.ne.s32.totalorder %s101, %s103
    %p110 = scmp.eq.s32.totalorder %s16, 1
    %p111 = por %p109, %p110
    %p112 = scmp.ne.s32.totalorder %s103, %s104
    %p113 = scmp.eq.s32.totalorder %s16, 0
    %p114 = por %p112, %p113
    %p115 = scmp.ne.s32.totalorder %s103, %s104
    %p116 = scmp.eq.s32.totalorder %s17, 1
    %p117 = por %p115, %p116
    %p119 = scmp.ne.s32.totalorder %s104, %s118
    %p120 = scmp.eq.s32.totalorder %s17, 0
    %p121 = por %p119, %p120
    %s123 = sadd.s32 %s122, 1
    %p126 = scmp.eq.s32.totalorder %s11, 1
    %p127 = scmp.ne.s32.totalorder %s122, %s124
    %p128 = scmp.eq.s32.totalorder %s11, 0
    %p129 = por %p127, %p128
    %p130 = scmp.ne.s32.totalorder %s122, %s124
    %p131 = scmp.eq.s32.totalorder %s16, 1
    %p132 = por %p130, %p131
    %p133 = scmp.ne.s32.totalorder %s124, %s125
    %p134 = scmp.eq.s32.totalorder %s16, 0
    %p135 = por %p133, %p134
    %p136 = scmp.ne.s32.totalorder %s124, %s125
    %p137 = scmp.eq.s32.totalorder %s17, 1
    %p138 = por %p136, %p137
    %p140 = scmp.ne.s32.totalorder %s125, %s139
    %p141 = scmp.eq.s32.totalorder %s17, 0
    %p142 = por %p140, %p141
    %s143 = ssub.s32 %s18, %s30
    %s144 = ssub.s32 %s19, %s26
    %s145 = sor.u32 %s143, %s144
    %p146 = scmp.eq.s32.totalorder %s145, 0
    %s148 = sadd.s32 %s147, 1
    %s149 = scalar_select %p146, %s147, %s148
    %p152 = pneg %p146
    %p153 = scmp.eq.s32.totalorder %s11, 1
    %p154 = por %p152, %p153
    %p155 = scmp.ne.s32.totalorder %s147, %s150
    %p156 = scmp.eq.s32.totalorder %s11, 0
    %p157 = por %p155, %p156
    %p158 = scmp.ne.s32.totalorder %s147, %s150
    %p159 = scmp.eq.s32.totalorder %s16, 1
    %p160 = por %p158, %p159
    %p161 = scmp.ne.s32.totalorder %s150, %s151
    %p162 = scmp.eq.s32.totalorder %s16, 0
    %p163 = por %p161, %p162
    %p164 = scmp.ne.s32.totalorder %s150, %s151
    %p165 = scmp.eq.s32.totalorder %s17, 1
    %p166 = por %p164, %p165
    %p168 = scmp.ne.s32.totalorder %s151, %s167
    %p169 = scmp.eq.s32.totalorder %s17, 0
    %p170 = por %p168, %p169
    %p171 = scmp.le.s32.totalorder 1, %s11
    %p172 = scmp.lt.s32.totalorder %s11, 3
    %p173 = pnand %p171, %p172
    %p174 = pneg %p173
    // Predicated region
    $region9: #{seq2seq3d_forward.10} parent=5 // pred_check
      _
    $region10: #{seq2seq3d_forward.10} parent=5 // pred_check_branch
      %176 = sbr.rel (%p173) target = $region12
    $region11: #{seq2seq3d_forward.10} parent=5 // pred_region
      %s177 = ssub.s32 %s11, 1
      // Predicated region
      $region13: #{seq2seq3d_forward.10} parent=11 // pred_check
        %p178 = pneg %p72
      $region14: #{seq2seq3d_forward.10} parent=11 // pred_check_branch
        %180 = sbr.rel (%p178) target = $region16
      $region15: #{seq2seq3d_forward.10} parent=11 // pred_region
        _
      $region16: #{seq2seq3d_forward.10} parent=11 // pred_fallthru
        _
      // Predicated region
      $region17: #{seq2seq3d_forward.10} parent=11 // pred_check
        %p181 = pneg %p93
      $region18: #{seq2seq3d_forward.10} parent=11 // pred_check_branch
        %183 = sbr.rel (%p181) target = $region20
      $region19: #{seq2seq3d_forward.10} parent=11 // pred_region
        _
      $region20: #{seq2seq3d_forward.10} parent=11 // pred_fallthru
        _
      // Predicated region
      $region21: #{seq2seq3d_forward.10} parent=11 // pred_check
        %p184 = pneg %p114
      $region22: #{seq2seq3d_forward.10} parent=11 // pred_check_branch
        %186 = sbr.rel (%p184) target = $region24
      $region23: #{seq2seq3d_forward.10} parent=11 // pred_region
        _
      $region24: #{seq2seq3d_forward.10} parent=11 // pred_fallthru
        _
      // Predicated region
      $region25: #{seq2seq3d_forward.10} parent=11 // pred_check
        %p187 = pneg %p135
      $region26: #{seq2seq3d_forward.10} parent=11 // pred_check_branch
        %189 = sbr.rel (%p187) target = $region28
      $region27: #{seq2seq3d_forward.10} parent=11 // pred_region
        _
      $region28: #{seq2seq3d_forward.10} parent=11 // pred_fallthru
        _
    $region12: #{seq2seq3d_forward.10} parent=5 // pred_fallthru
      _
    %p190 = scmp.lt.s32.totalorder %s11, 2
    // Predicated region
    $region29: #{seq2seq3d_forward.10} parent=5 // pred_check
      %p191 = pneg %p190
    $region30: #{seq2seq3d_forward.10} parent=5 // pred_check_branch
      %193 = sbr.rel (%p191) target = $region32
    $region31: #{seq2seq3d_forward.10} parent=5 // pred_region
      // Predicated region
      $region33: #{seq2seq3d_forward.10} parent=31 // pred_check
        %p194 = pneg %p45
      $region34: #{seq2seq3d_forward.10} parent=31 // pred_check_branch
        %196 = sbr.rel (%p194) target = $region36
      $region35: #{seq2seq3d_forward.10} parent=31 // pred_region
        %p197 = scmp.lt.s32.totalorder %s18, 1
        %s198 = scalar_select %p197, %s18, 1
        %p199 = scmp.lt.s32.totalorder %s19, 0
        %s200 = scalar_select %p199, %s19, 0
        %s201 = smul.addr %s198, 54
        %s202 = sadd.s32 %s200, %s201
        %s203 = smul.addr %s202, 4
        %s204 = scalar_lea.vmem %s0, %s203
      $region36: #{seq2seq3d_forward.10} parent=31 // pred_fallthru
        _
    $region32: #{seq2seq3d_forward.10} parent=5 // pred_fallthru
      _
    %p205 = scmp.le.s32.totalorder 1, %s11
    %p206 = scmp.lt.s32.totalorder %s11, 3
    %p207 = pnand %p205, %p206
    %p208 = pneg %p207
    // Predicated region
    $region37: #{seq2seq3d_forward.10} parent=5 // pred_check
      _
    $region38: #{seq2seq3d_forward.10} parent=5 // pred_check_branch
      %210 = sbr.rel (%p207) target = $region40
    $region39: #{seq2seq3d_forward.10} parent=5 // pred_region
      %s211 = ssub.s32 %s11, 1
      %p212 = scmp.lt.s32.totalorder %s20, 1
      %s213 = scalar_select %p212, %s20, 1
      %p214 = scmp.lt.s32.totalorder %s21, 0
      %s215 = scalar_select %p214, %s21, 0
      %s216 = smul.addr %s213, 54
      %s217 = sadd.s32 %s215, %s216
      %s218 = smul.addr %s217, 4
      %s219 = scalar_lea.vmem %s0, %s218
      %p220 = pneg %p51
      %p221 = pneg %p48
      %p222 = pneg %p72
      %p223 = pneg %p69
      %p224 = pneg %p93
      %p225 = pneg %p90
      %p226 = pneg %p114
      %p227 = pneg %p111
      %p228 = pneg %p135
      %p229 = pneg %p132
      %p230 = pneg %p163
      %p231 = pneg %p160
      %p232 = scmp.lt.s32.totalorder %s20, 1
      %s233 = scalar_select %p232, %s20, 1
      %p234 = scmp.lt.s32.totalorder %s21, 0
      %s235 = scalar_select %p234, %s21, 0
      %s236 = sadd.s32 %s235, %s233
      %s237 = smul.addr %s236, 4
      %s238 = scalar_lea.vmem %s5, %s237
      %p239 = scmp.lt.s32.totalorder %s20, 1
      %s240 = scalar_select %p239, %s20, 1
      %p241 = scmp.lt.s32.totalorder %s21, 0
      %s242 = scalar_select %p241, %s21, 0
      %s243 = smul.addr %s240, 54
      %s244 = sadd.s32 %s242, %s243
      %s245 = smul.addr %s244, 4
      %s246 = scalar_lea.vmem %s0, %s245
      %p247 = scmp.lt.s32.totalorder %s20, 1
      %s248 = scalar_select %p247, %s20, 1
      %p249 = scmp.lt.s32.totalorder %s21, 0
      %s250 = scalar_select %p249, %s21, 0
      %s251 = sadd.s32 %s250, %s248
      %s252 = smul.addr %s251, 4
      %s253 = scalar_lea.vmem %s5, %s252
      %v255 = vld [vmem:[%s1] sm:$0xff]
      %v256 = vld [vmem:[%s1 + $0x8] sm:$0xff]
      %v257 = vld [vmem:[%s1 + $0x10] sm:$0xff]
      %v258 = vld [vmem:[%s1 + $0x18] sm:$0xff]
      %v259 = vld [vmem:[%s246] sm:$0xf]
      %v260 = vld [vmem:[%s246 + $0x4] sm:$0xf]
      %v261 = vld [vmem:[%s246 + $0x8] sm:$0xf]
      %v262 = vld [vmem:[%s246 + $0xc] sm:$0xf]
      %v263 = vld [vmem:[%s246 + $0x10] sm:$0xf]
      %v264 = vld [vmem:[%s246 + $0x14] sm:$0xf]
      %v265 = vld [vmem:[%s246 + $0x18] sm:$0xf]
      %v266 = vld [vmem:[%s246 + $0x1c] sm:$0xf]
      %v267 = vld [vmem:[%s246 + $0x20] sm:$0xf]
      %v268 = vld [vmem:[%s246 + $0x24] sm:$0xf]
      %v269 = vld [vmem:[%s246 + $0x28] sm:$0xf]
      %v270 = vld [vmem:[%s246 + $0x2c] sm:$0xf]
      %v271 = vld [vmem:[%s246 + $0x30] sm:$0xf]
      %v272 = vld [vmem:[%s246 + $0x34] sm:$0xf]
      %v273 = vld [vmem:[%s246 + $0x38] sm:$0xf]
      %v274 = vld [vmem:[%s246 + $0x3c] sm:$0xf]
      %v275 = vld [vmem:[%s246 + $0x40] sm:$0xf]
      %v276 = vld [vmem:[%s246 + $0x44] sm:$0xf]
      %v277 = vld [vmem:[%s246 + $0x48] sm:$0xf]
      %v278 = vld [vmem:[%s246 + $0x4c] sm:$0xf]
      %v279 = vld [vmem:[%s246 + $0x50] sm:$0xf]
      %v280 = vld [vmem:[%s246 + $0x54] sm:$0xf]
      %v281 = vld [vmem:[%s246 + $0x58] sm:$0xf]
      %v282 = vld [vmem:[%s246 + $0x5c] sm:$0xf]
      %v283 = vld [vmem:[%s246 + $0x60] sm:$0xf]
      %v284 = vld [vmem:[%s246 + $0x64] sm:$0xf]
      %v285 = vld [vmem:[%s246 + $0x68] sm:$0xf]
      %v286 = vld [vmem:[%s246 + $0x6c] sm:$0xf]
      %v287 = vld [vmem:[%s246 + $0x70] sm:$0xf]
      %v288 = vld [vmem:[%s246 + $0x74] sm:$0xf]
      %v289 = vld [vmem:[%s246 + $0x78] sm:$0xf]
      %v290 = vld [vmem:[%s246 + $0x7c] sm:$0xf]
      %v291 = vld [vmem:[%s246 + $0x80] sm:$0xf]
      %v292 = vld [vmem:[%s246 + $0x84] sm:$0xf]
      %v293 = vld [vmem:[%s246 + $0x88] sm:$0xf]
      %v294 = vld [vmem:[%s246 + $0x8c] sm:$0xf]
      %v295 = vld [vmem:[%s246 + $0x90] sm:$0xf]
      %v296 = vld [vmem:[%s246 + $0x94] sm:$0xf]
      %v297 = vld [vmem:[%s246 + $0x98] sm:$0xf]
      %v298 = vld [vmem:[%s246 + $0x9c] sm:$0xf]
      %v299 = vld [vmem:[%s246 + $0xa0] sm:$0xf]
      %v300 = vld [vmem:[%s246 + $0xa4] sm:$0xf]
      %v301 = vld [vmem:[%s246 + $0xa8] sm:$0xf]
      %v302 = vld [vmem:[%s246 + $0xac] sm:$0xf]
      %v303 = vld [vmem:[%s246 + $0xb0] sm:$0xf]
      %v304 = vld [vmem:[%s246 + $0xb4] sm:$0xf]
      %v305 = vld [vmem:[%s246 + $0xb8] sm:$0xf]
      %v306 = vld [vmem:[%s246 + $0xbc] sm:$0xf]
      %v307 = vld [vmem:[%s246 + $0xc0] sm:$0xf]
      %v308 = vld [vmem:[%s246 + $0xc4] sm:$0xf]
      %v309 = vld [vmem:[%s246 + $0xc8] sm:$0xf]
      %v310 = vld [vmem:[%s246 + $0xcc] sm:$0xf]
      %v311 = vld [vmem:[%s246 + $0xd0] sm:$0xf]
      %v312 = vld [vmem:[%s246 + $0xd4] sm:$0xf]
      %v313 = vld [vmem:[%s2] sm:$0xff]
      %v314 = vld [vmem:[%s2 + $0x8] sm:$0xff]
      %316 = vset.pattern.permute.xlu0 0
      %317 = vperm.xlu0 %316, %v313
      %v318 = vpop.permute.xlu0 %317
      %321 = vset.pattern.permute.xlu0 0
      %322 = vperm.xlu0 %321, %v314
      %v323 = vpop.permute.xlu0 %322
      %v329 = vunpack.c.l.b16 %v255
      %v330 = vunpack.c.h.b16 %v255
      %v331 = vunpack.c.l.b16 %v256
      %v332 = vunpack.c.h.b16 %v256
      %v333 = vunpack.c.l.b16 %v257
      %v334 = vunpack.c.h.b16 %v257
      %v335 = vunpack.c.l.b16 %v258
      %v336 = vunpack.c.h.b16 %v258
      %v337 = vpack.c.b16 %v333, %v329
      %v338 = vpack.c.b16 %v334, %v330
      %v339 = vpack.c.b16 %v335, %v331
      %v340 = vpack.c.b16 %v336, %v332
      %v398 = vunpack.c.l.b16 %v259
      %v399 = vunpack.c.l.b16 %v260
      %v400 = vunpack.c.l.b16 %v261
      %v401 = vunpack.c.l.b16 %v262
      %v402 = vunpack.c.l.b16 %v263
      %v403 = vunpack.c.l.b16 %v264
      %v404 = vunpack.c.l.b16 %v265
      %v405 = vunpack.c.l.b16 %v266
      %v406 = vunpack.c.l.b16 %v267
      %v407 = vunpack.c.l.b16 %v268
      %v408 = vunpack.c.l.b16 %v269
      %v409 = vunpack.c.l.b16 %v270
      %v410 = vunpack.c.l.b16 %v271
      %v411 = vunpack.c.l.b16 %v272
      %v412 = vunpack.c.l.b16 %v273
      %v413 = vunpack.c.l.b16 %v274
      %v414 = vunpack.c.l.b16 %v275
      %v415 = vunpack.c.l.b16 %v276
      %v416 = vunpack.c.l.b16 %v277
      %v417 = vunpack.c.l.b16 %v278
      %v418 = vunpack.c.l.b16 %v279
      %v419 = vunpack.c.l.b16 %v280
      %v420 = vunpack.c.l.b16 %v281
      %v421 = vunpack.c.l.b16 %v282
      %v422 = vunpack.c.l.b16 %v283
      %v423 = vunpack.c.l.b16 %v284
      %v424 = vunpack.c.l.b16 %v285
      %v425 = vunpack.c.l.b16 %v286
      %v426 = vunpack.c.l.b16 %v287
      %v427 = vunpack.c.l.b16 %v288
      %v428 = vunpack.c.l.b16 %v289
      %v429 = vunpack.c.l.b16 %v290
      %v430 = vunpack.c.l.b16 %v291
      %v431 = vunpack.c.l.b16 %v292
      %v432 = vunpack.c.l.b16 %v293
      %v433 = vunpack.c.l.b16 %v294
      %v434 = vunpack.c.l.b16 %v295
      %v435 = vunpack.c.l.b16 %v296
      %v436 = vunpack.c.l.b16 %v297
      %v437 = vunpack.c.l.b16 %v298
      %v438 = vunpack.c.l.b16 %v299
      %v439 = vunpack.c.l.b16 %v300
      %v440 = vunpack.c.l.b16 %v301
      %v441 = vunpack.c.l.b16 %v302
      %v442 = vunpack.c.l.b16 %v303
      %v443 = vunpack.c.l.b16 %v304
      %v444 = vunpack.c.l.b16 %v305
      %v445 = vunpack.c.l.b16 %v306
      %v446 = vunpack.c.l.b16 %v307
      %v447 = vunpack.c.l.b16 %v308
      %v448 = vunpack.c.l.b16 %v309
      %v449 = vunpack.c.l.b16 %v310
      %v450 = vunpack.c.l.b16 %v311
      %v451 = vunpack.c.l.b16 %v312
      %v452 = vpack.c.b16 %v399, %v398
      %v453 = vpack.c.b16 %v401, %v400
      %v454 = vpack.c.b16 %v403, %v402
      %v455 = vpack.c.b16 %v405, %v404
      %v456 = vpack.c.b16 %v407, %v406
      %v457 = vpack.c.b16 %v409, %v408
      %v458 = vpack.c.b16 %v411, %v410
      %v459 = vpack.c.b16 %v413, %v412
      %v460 = vpack.c.b16 %v415, %v414
      %v461 = vpack.c.b16 %v417, %v416
      %v462 = vpack.c.b16 %v419, %v418
      %v463 = vpack.c.b16 %v421, %v420
      %v464 = vpack.c.b16 %v423, %v422
      %v465 = vpack.c.b16 %v425, %v424
      %v466 = vpack.c.b16 %v427, %v426
      %v467 = vpack.c.b16 %v429, %v428
      %v468 = vpack.c.b16 %v431, %v430
      %v469 = vpack.c.b16 %v433, %v432
      %v470 = vpack.c.b16 %v435, %v434
      %v471 = vpack.c.b16 %v437, %v436
      %v472 = vpack.c.b16 %v439, %v438
      %v473 = vpack.c.b16 %v441, %v440
      %v474 = vpack.c.b16 %v443, %v442
      %v475 = vpack.c.b16 %v445, %v444
      %v476 = vpack.c.b16 %v447, %v446
      %v477 = vpack.c.b16 %v449, %v448
      %v478 = vpack.c.b16 %v451, %v450
      %vm506 = vcmask 392192
      %v508 = vsel %vm506, %v340, 0
      %510 = vmatpush.bf16.msra.mxu0 %v459
      %511 = vmatpush.bf16.msra.mxu0 %v458
      %512 = vmatpush.bf16.msra.mxu0 %v457
      %513 = vmatpush.bf16.msra.mxu0 %v456
      %514 = vmatpush.bf16.msra.mxu0 %v455
      %515 = vmatpush.bf16.msra.mxu0 %v454
      %516 = vmatpush.bf16.msra.mxu0 %v453
      %517 = vmatpush.bf16.msra.mxu0 %v452
      %518 = vmatmul.bf16.gmra.mxu0 %v337
      %v519 = vpop.f32.mrf.mxu0
      %v520 = vadd.f32 %v318, %v519
      %v521 = vpop.f32.mrf.mxu0
      %v522 = vadd.f32 %v323, %v521
      %523 = vdwg.mxu0
      %524 = vmatpush.bf16.msra.mxu0 %v467
      %525 = vmatpush.bf16.msra.mxu0 %v466
      %526 = vmatpush.bf16.msra.mxu0 %v465
      %527 = vmatpush.bf16.msra.mxu0 %v464
      %528 = vmatpush.bf16.msra.mxu0 %v463
      %529 = vmatpush.bf16.msra.mxu0 %v462
      %530 = vmatpush.bf16.msra.mxu0 %v461
      %531 = vmatpush.bf16.msra.mxu0 %v460
      %532 = vmatmul.bf16.gmra.mxu0 %v338
      %v533 = vpop.f32.mrf.mxu0
      %v534 = vadd.f32 %v520, %v533
      %v535 = vpop.f32.mrf.mxu0
      %v536 = vadd.f32 %v522, %v535
      %537 = vdwg.mxu0
      %538 = vmatpush.bf16.msra.mxu0 %v475
      %539 = vmatpush.bf16.msra.mxu0 %v474
      %540 = vmatpush.bf16.msra.mxu0 %v473
      %541 = vmatpush.bf16.msra.mxu0 %v472
      %542 = vmatpush.bf16.msra.mxu0 %v471
      %543 = vmatpush.bf16.msra.mxu0 %v470
      %544 = vmatpush.bf16.msra.mxu0 %v469
      %545 = vmatpush.bf16.msra.mxu0 %v468
      %546 = vmatmul.bf16.gmra.mxu0 %v339
      %v547 = vpop.f32.mrf.mxu0
      %v548 = vadd.f32 %v534, %v547
      %v549 = vpop.f32.mrf.mxu0
      %v550 = vadd.f32 %v536, %v549
      %551 = vdwg.mxu0
      %552 = vmatpush.bf16.msra.mxu0 0
      %553 = vmatpush.bf16.msra.mxu0 0
      %554 = vmatpush.bf16.msra.mxu0 0
      %555 = vmatpush.bf16.msra.mxu0 0
      %556 = vmatpush.bf16.msra.mxu0 0
      %557 = vmatpush.bf16.msra.mxu0 %v478
      %558 = vmatpush.bf16.msra.mxu0 %v477
      %559 = vmatpush.bf16.msra.mxu0 %v476
      %560 = vmatmul.bf16.gmra.mxu0 %v508
      %v561 = vpop.f32.mrf.mxu0
      %v562 = vadd.f32 %v548, %v561
      %v563 = vpop.f32.mrf.mxu0
      %v564 = vadd.f32 %v550, %v563
      %565 = vdwg.mxu0
      %vm566 = vcmp.ge.f32.partialorder %v562, 0.0
      %vm567 = vcmp.ge.f32.partialorder %v564, 0.0
      %v568 = vmul.f32 %v562, 0.01
      %v569 = vmul.f32 %v564, 0.01
      %v570 = vsel %vm566, %v562, %v568
      %v571 = vsel %vm567, %v564, %v569
      %v572 = vld [vmem:[%s3] sm:$0xff]
      %v573 = vld [vmem:[%s4] sm:$0xff]
      %575 = vset.pattern.permute.xlu0 0
      %576 = vperm.xlu0 %575, %v573
      %v577 = vpop.permute.xlu0 %576
      %vm579 = vcmask 130048
      %v581 = vsel %vm579, %v572, 0
      %583 = vmatpush.msra.mxu0 0.0
      %584 = vmatpush.msra.mxu0 0.0
      %585 = vmatpush.msra.mxu0 0.0
      %586 = vmatpush.msra.mxu0 0.0
      %587 = vmatpush.msra.mxu0 0.0
      %588 = vmatpush.msra.mxu0 0.0
      %589 = vmatpush.msra.mxu0 0.0
      %590 = vmatpush.msra.mxu0 0.0
      %591 = vmatpush.msra.mxu0 0.0
      %592 = vmatpush.msra.mxu0 0.0
      %593 = vmatpush.msra.mxu0 0.0
      %594 = vmatpush.msra.mxu0 0.0
      %595 = vmatpush.msra.mxu0 0.0
      %596 = vmatpush.msra.mxu0 0.0
      %597 = vmatpush.msra.mxu0 %v571
      %598 = vmatpush.msra.mxu0 %v570
      %599 = vmatmul.f32.gmra.mxu0 %v581
      %v600 = vpop.f32.mrf.mxu0
      %v601 = vadd.f32 %v577, %v600
      %602 = vdwg.mxu0
      %v603 = vpack.c.bf16 %v601, %v601
      %vm604 = vcmask 257024
      %605 = vst.msk [vmem:[%s253] sm:$0xf] %vm604, %v603
      %p606 = scmp.lt.s32.totalorder %s20, 1
      %s607 = scalar_select %p606, %s20, 1
      %p608 = scmp.lt.s32.totalorder %s21, 0
      %s609 = scalar_select %p608, %s21, 0
      %s610 = sadd.s32 %s609, %s607
      %s611 = smul.addr %s610, 4
      %s612 = scalar_lea.vmem %s5, %s611
      // Predicated region
      $region41: #{seq2seq3d_forward.10} parent=39 // pred_check
        %p613 = pneg %p160
      $region42: #{seq2seq3d_forward.10} parent=39 // pred_check_branch
        %615 = sbr.rel (%p613) target = $region44
      $region43: #{seq2seq3d_forward.10} parent=39 // pred_region
        _
      $region44: #{seq2seq3d_forward.10} parent=39 // pred_fallthru
        _
    $region40: #{seq2seq3d_forward.10} parent=5 // pred_fallthru
      _
    %p616 = scmp.le.s32.totalorder 2, %s11
    // Predicated region
    $region45: #{seq2seq3d_forward.10} parent=5 // pred_check
      %p617 = pneg %p616
    $region46: #{seq2seq3d_forward.10} parent=5 // pred_check_branch
      %619 = sbr.rel (%p617) target = $region48
    $region47: #{seq2seq3d_forward.10} parent=5 // pred_region
      %s620 = ssub.s32 %s11, 2
      // Predicated region
      $region49: #{seq2seq3d_forward.10} parent=47 // pred_check
        %p621 = pneg %p166
      $region50: #{seq2seq3d_forward.10} parent=47 // pred_check_branch
        %623 = sbr.rel (%p621) target = $region52
      $region51: #{seq2seq3d_forward.10} parent=47 // pred_region
        %p624 = scmp.lt.s32.totalorder %s22, 1
        %s625 = scalar_select %p624, %s22, 1
        %p626 = scmp.lt.s32.totalorder %s23, 0
        %s627 = scalar_select %p626, %s23, 0
        %s628 = sadd.s32 %s627, %s625
        %s629 = smul.addr %s628, 4
        %s630 = scalar_lea.vmem %s5, %s629
      $region52: #{seq2seq3d_forward.10} parent=47 // pred_fallthru
        _
    $region48: #{seq2seq3d_forward.10} parent=5 // pred_fallthru
      _
  $region6: #{seq2seq3d_forward.10} parent=0 // loop_footer
    %s15 = sadd.s32 1, %s11
  $region7: #{seq2seq3d_forward.10} parent=0 // loop_footer_branch
    %10 = sbr.rel target = $region3
  $region8: #{seq2seq3d_forward.10} parent=0 // loop_exit
    _

// kernel: seq2seq3d_forward.11
$region0: #{seq2seq3d_forward.11}
  #allocation0 [shape = 'u32[]', space=smem, size = 0x4, offset = 0x4, fixed_abs, tag = 'smem constant byte address 0x4 - core index']
  #allocation1 [shape = 'u32[72,128]{1,0:T(1,128)}', space=vmem, size = 0x9000, scoped, tag = 'internal scratch']
  %s0 = inlined_call_operand.vmem [shape: bf16[2,8,32], index: 0, kind: input, shape index: {}]
  %s1 = inlined_call_operand.vmem [shape: bf16[16,8], index: 1, kind: input, shape index: {}]
  %s2 = inlined_call_operand.vmem [shape: f32[16,1], index: 2, kind: input, shape index: {}]
  %s3 = inlined_call_operand.vmem [shape: bf16[2,16,32], index: 3, kind: output, shape index: {}]
  %s4 = sld [smem:[#allocation0]]
  $region45: #{seq2seq3d_forward.11} parent=0
    _
  %s6 = ssub.s32 1, %s4
  %s7 = scalar_select 0, %s6, %s4
  loop: start=0, step=1, limit=4
  $region2: #{seq2seq3d_forward.11} parent=0 // loop_pre_header
    _
  $region3: #{seq2seq3d_forward.11} parent=0 // loop_header
    %s9 = sphi 0, %s13
    %p10 = scmp.ge.s32.totalorder %s9, 4
    %s16 = sphi 0, %s28
    %s17 = sphi 0, %s24
    %s18 = sphi 0, %s16
    %s19 = sphi 0, %s17
    %s20 = sphi 0, %s18
    %s21 = sphi 0, %s19
    %s33 = sphi 0, %s35
    %s36 = sphi 0, %s33
    %s37 = sphi 0, %s36
    %s53 = sphi 0, %s37
    %s57 = sphi 0, %s57
    %s59 = sphi 0, %s57
    %s60 = sphi 0, %s59
    %s74 = sphi 0, %s60
    %s78 = sphi 0, %s78
    %s80 = sphi 0, %s78
    %s81 = sphi 0, %s80
    %s95 = sphi 0, %s81
    %s103 = sphi 0, %s105
    %s106 = sphi 0, %s103
    %s107 = sphi 0, %s106
    %s123 = sphi 0, %s107
  $region4: #{seq2seq3d_forward.11} parent=0 // loop_header_branch
    %12 = sbr.rel (%p10) target = $region8
  $region5: #{seq2seq3d_forward.11} parent=0 // loop_body
    %s14 = ssub.s32 %s9, 1
    %s15 = ssub.s32 %s9, 2
    %s22 = sadd.s32 1, %s17
    %p23 = scmp.ge.s32.totalorder %s22, 1
    %s24 = scalar_select %p23, 0, %s22
    %s25 = sadd.s32 1, %s16
    %s26 = scalar_select %p23, %s25, %s16
    %p27 = scmp.ge.s32.totalorder %s26, 2
    %s28 = scalar_select %p27, 0, %s26
    %s29 = ssub.s32 %s16, %s28
    %s30 = ssub.s32 %s17, %s24
    %s31 = sor.u32 %s29, %s30
    %p32 = scmp.eq.s32.totalorder %s31, 0
    %s34 = sadd.s32 %s33, 1
    %s35 = scalar_select %p32, %s33, %s34
    %p38 = pneg %p32
    %p39 = scmp.eq.s32.totalorder %s9, 1
    %p40 = por %p38, %p39
    %p41 = scmp.ne.s32.totalorder %s33, %s36
    %p42 = scmp.eq.s32.totalorder %s9, 0
    %p43 = por %p41, %p42
    %p44 = scmp.ne.s32.totalorder %s33, %s36
    %p45 = scmp.eq.s32.totalorder %s14, 1
    %p46 = por %p44, %p45
    %p47 = scmp.ne.s32.totalorder %s36, %s37
    %p48 = scmp.eq.s32.totalorder %s14, 0
    %p49 = por %p47, %p48
    %p50 = scmp.ne.s32.totalorder %s36, %s37
    %p51 = scmp.eq.s32.totalorder %s15, 1
    %p52 = por %p50, %p51
    %p54 = scmp.ne.s32.totalorder %s37, %s53
    %p55 = scmp.eq.s32.totalorder %s15, 0
    %p56 = por %p54, %p55
    %s58 = sadd.s32 %s57, 1
    %p61 = scmp.eq.s32.totalorder %s9, 1
    %p62 = scmp.ne.s32.totalorder %s57, %s59
    %p63 = scmp.eq.s32.totalorder %s9, 0
    %p64 = por %p62, %p63
    %p65 = scmp.ne.s32.totalorder %s57, %s59
    %p66 = scmp.eq.s32.totalorder %s14, 1
    %p67 = por %p65, %p66
    %p68 = scmp.ne.s32.totalorder %s59, %s60
    %p69 = scmp.eq.s32.totalorder %s14, 0
    %p70 = por %p68, %p69
    %p71 = scmp.ne.s32.totalorder %s59, %s60
    %p72 = scmp.eq.s32.totalorder %s15, 1
    %p73 = por %p71, %p72
    %p75 = scmp.ne.s32.totalorder %s60, %s74
    %p76 = scmp.eq.s32.totalorder %s15, 0
    %p77 = por %p75, %p76
    %s79 = sadd.s32 %s78, 1
    %p82 = scmp.eq.s32.totalorder %s9, 1
    %p83 = scmp.ne.s32.totalorder %s78, %s80
    %p84 = scmp.eq.s32.totalorder %s9, 0
    %p85 = por %p83, %p84
    %p86 = scmp.ne.s32.totalorder %s78, %s80
    %p87 = scmp.eq.s32.totalorder %s14, 1
    %p88 = por %p86, %p87
    %p89 = scmp.ne.s32.totalorder %s80, %s81
    %p90 = scmp.eq.s32.totalorder %s14, 0
    %p91 = por %p89, %p90
    %p92 = scmp.ne.s32.totalorder %s80, %s81
    %p93 = scmp.eq.s32.totalorder %s15, 1
    %p94 = por %p92, %p93
    %p96 = scmp.ne.s32.totalorder %s81, %s95
    %p97 = scmp.eq.s32.totalorder %s15, 0
    %p98 = por %p96, %p97
    %s99 = ssub.s32 %s16, %s28
    %s100 = ssub.s32 %s17, %s24
    %s101 = sor.u32 %s99, %s100
    %p102 = scmp.eq.s32.totalorder %s101, 0
    %s104 = sadd.s32 %s103, 1
    %s105 = scalar_select %p102, %s103, %s104
    %p108 = pneg %p102
    %p109 = scmp.eq.s32.totalorder %s9, 1
    %p110 = por %p108, %p109
    %p111 = scmp.ne.s32.totalorder %s103, %s106
    %p112 = scmp.eq.s32.totalorder %s9, 0
    %p113 = por %p111, %p112
    %p114 = scmp.ne.s32.totalorder %s103, %s106
    %p115 = scmp.eq.s32.totalorder %s14, 1
    %p116 = por %p114, %p115
    %p117 = scmp.ne.s32.totalorder %s106, %s107
    %p118 = scmp.eq.s32.totalorder %s14, 0
    %p119 = por %p117, %p118
    %p120 = scmp.ne.s32.totalorder %s106, %s107
    %p121 = scmp.eq.s32.totalorder %s15, 1
    %p122 = por %p120, %p121
    %p124 = scmp.ne.s32.totalorder %s107, %s123
    %p125 = scmp.eq.s32.totalorder %s15, 0
    %p126 = por %p124, %p125
    %p127 = scmp.le.s32.totalorder 1, %s9
    %p128 = scmp.lt.s32.totalorder %s9, 3
    %p129 = pnand %p127, %p128
    %p130 = pneg %p129
    // Predicated region
    $region9: #{seq2seq3d_forward.11} parent=5 // pred_check
      _
    $region10: #{seq2seq3d_forward.11} parent=5 // pred_check_branch
      %132 = sbr.rel (%p129) target = $region12
    $region11: #{seq2seq3d_forward.11} parent=5 // pred_region
      %s133 = ssub.s32 %s9, 1
      // Predicated region
      $region13: #{seq2seq3d_forward.11} parent=11 // pred_check
        %p134 = pneg %p70
      $region14: #{seq2seq3d_forward.11} parent=11 // pred_check_branch
        %136 = sbr.rel (%p134) target = $region16
      $region15: #{seq2seq3d_forward.11} parent=11 // pred_region
        _
      $region16: #{seq2seq3d_forward.11} parent=11 // pred_fallthru
        _
      // Predicated region
      $region17: #{seq2seq3d_forward.11} parent=11 // pred_check
        %p137 = pneg %p91
      $region18: #{seq2seq3d_forward.11} parent=11 // pred_check_branch
        %139 = sbr.rel (%p137) target = $region20
      $region19: #{seq2seq3d_forward.11} parent=11 // pred_region
        _
      $region20: #{seq2seq3d_forward.11} parent=11 // pred_fallthru
        _
    $region12: #{seq2seq3d_forward.11} parent=5 // pred_fallthru
      _
    %p140 = scmp.lt.s32.totalorder %s9, 2
    // Predicated region
    $region21: #{seq2seq3d_forward.11} parent=5 // pred_check
      %p141 = pneg %p140
    $region22: #{seq2seq3d_forward.11} parent=5 // pred_check_branch
      %143 = sbr.rel (%p141) target = $region24
    $region23: #{seq2seq3d_forward.11} parent=5 // pred_region
      // Predicated region
      $region25: #{seq2seq3d_forward.11} parent=23 // pred_check
        %p144 = pneg %p43
      $region26: #{seq2seq3d_forward.11} parent=23 // pred_check_branch
        %146 = sbr.rel (%p144) target = $region28
      $region27: #{seq2seq3d_forward.11} parent=23 // pred_region
        %p147 = scmp.lt.s32.totalorder %s16, 1
        %s148 = scalar_select %p147, %s16, 1
        %p149 = scmp.lt.s32.totalorder %s17, 0
        %s150 = scalar_select %p149, %s17, 0
        %s151 = sadd.s32 %s150, %s148
        %s152 = smul.addr %s151, 4
        %s153 = scalar_lea.vmem %s0, %s152
      $region28: #{seq2seq3d_forward.11} parent=23 // pred_fallthru
        _
    $region24: #{seq2seq3d_forward.11} parent=5 // pred_fallthru
      _
    %p154 = scmp.le.s32.totalorder 1, %s9
    %p155 = scmp.lt.s32.totalorder %s9, 3
    %p156 = pnand %p154, %p155
    %p157 = pneg %p156
    // Predicated region
    $region29: #{seq2seq3d_forward.11} parent=5 // pred_check
      _
    $region30: #{seq2seq3d_forward.11} parent=5 // pred_check_branch
      %159 = sbr.rel (%p156) target = $region32
    $region31: #{seq2seq3d_forward.11} parent=5 // pred_region
      %s160 = ssub.s32 %s9, 1
      %p161 = scmp.lt.s32.totalorder %s18, 1
      %s162 = scalar_select %p161, %s18, 1
      %p163 = scmp.lt.s32.totalorder %s19, 0
      %s164 = scalar_select %p163, %s19, 0
      %s165 = sadd.s32 %s164, %s162
      %s166 = smul.addr %s165, 4
      %s167 = scalar_lea.vmem %s0, %s166
      %p168 = pneg %p49
      %p169 = pneg %p46
      %p170 = pneg %p70
      %p171 = pneg %p67
      %p172 = pneg %p91
      %p173 = pneg %p88
      %p174 = pneg %p119
      %p175 = pneg %p116
      %p176 = scmp.lt.s32.totalorder %s18, 1
      %s177 = scalar_select %p176, %s18, 1
      %p178 = scmp.lt.s32.totalorder %s19, 0
      %s179 = scalar_select %p178, %s19, 0
      %s180 = smul.addr %s177, 2
      %s181 = sadd.s32 %s179, %s180
      %s182 = smul.addr %s181, 4
      %s183 = scalar_lea.vmem %s3, %s182
      %p184 = scmp.lt.s32.totalorder %s18, 1
      %s185 = scalar_select %p184, %s18, 1
      %p186 = scmp.lt.s32.totalorder %s19, 0
      %s187 = scalar_select %p186, %s19, 0
      %s188 = sadd.s32 %s187, %s185
      %s189 = smul.addr %s188, 4
      %s190 = scalar_lea.vmem %s0, %s189
      %p191 = scmp.lt.s32.totalorder %s18, 1
      %s192 = scalar_select %p191, %s18, 1
      %p193 = scmp.lt.s32.totalorder %s19, 0
      %s194 = scalar_select %p193, %s19, 0
      %s195 = smul.addr %s192, 2
      %s196 = sadd.s32 %s194, %s195
      %s197 = smul.addr %s196, 4
      %s198 = scalar_lea.vmem %s3, %s197
      %v200 = vld [vmem:[%s1] sm:$0xf]
      %v201 = vld [vmem:[%s1 + $0x4] sm:$0xf]
      %v202 = vld [vmem:[%s190] sm:$0xf]
      %v203 = vld [vmem:[%s2] sm:$0xff]
      %v204 = vld [vmem:[%s2 + $0x8] sm:$0xff]
      %206 = vset.pattern.permute.xlu0 0
      %207 = vperm.xlu0 %206, %v203
      %v208 = vpop.permute.xlu0 %207
      %211 = vset.pattern.permute.xlu0 0
      %212 = vperm.xlu0 %211, %v204
      %v213 = vpop.permute.xlu0 %212
      %v217 = vunpack.c.l.b16 %v200
      %v218 = vunpack.c.l.b16 %v201
      %v219 = vpack.c.b16 %v218, %v217
      %vm220 = vcmask 64512
      %v222 = vsel %vm220, %v219, 0
      %vm224 = vcmask 1043456
      %v226 = vsel %vm224, %v202, 0
      %228 = vmatpush.bf16.msra.mxu0 0
      %229 = vmatpush.bf16.msra.mxu0 0
      %230 = vmatpush.bf16.msra.mxu0 0
      %231 = vmatpush.bf16.msra.mxu0 0
      %232 = vmatpush.bf16.msra.mxu0 0
      %233 = vmatpush.bf16.msra.mxu0 0
      %234 = vmatpush.bf16.msra.mxu0 0
      %235 = vmatpush.bf16.msra.mxu0 %v226
      %236 = vmatmul.bf16.gmra.mxu0 %v222
      %v237 = vpop.f32.mrf.mxu0
      %v238 = vadd.f32 %v208, %v237
      %v239 = vpop.f32.mrf.mxu0
      %v240 = vadd.f32 %v213, %v239
      %241 = vdwg.mxu0
      %vm242 = vcmp.ge.f32.partialorder %v238, 0.0
      %vm243 = vcmp.ge.f32.partialorder %v240, 0.0
      %v244 = vmul.f32 %v238, 0.01
      %v245 = vmul.f32 %v240, 0.01
      %v246 = vsel %vm242, %v238, %v244
      %v247 = vsel %vm243, %v240, %v245
      %v248 = vpack.c.bf16 %v246, %v246
      %v249 = vpack.c.bf16 %v247, %v247
      %vm250 = vcmask 257024
      %251 = vst.msk [vmem:[%s198] sm:$0xf] %vm250, %v248
      %252 = vst.msk [vmem:[%s198 + $0x4] sm:$0xf] %vm250, %v249
      %p253 = scmp.lt.s32.totalorder %s18, 1
      %s254 = scalar_select %p253, %s18, 1
      %p255 = scmp.lt.s32.totalorder %s19, 0
      %s256 = scalar_select %p255, %s19, 0
      %s257 = smul.addr %s254, 2
      %s258 = sadd.s32 %s256, %s257
      %s259 = smul.addr %s258, 4
      %s260 = scalar_lea.vmem %s3, %s259
      // Predicated region
      $region33: #{seq2seq3d_forward.11} parent=31 // pred_check
        %p261 = pneg %p116
      $region34: #{seq2seq3d_forward.11} parent=31 // pred_check_branch
        %263 = sbr.rel (%p261) target = $region36
      $region35: #{seq2seq3d_forward.11} parent=31 // pred_region
        _
      $region36: #{seq2seq3d_forward.11} parent=31 // pred_fallthru
        _
    $region32: #{seq2seq3d_forward.11} parent=5 // pred_fallthru
      _
    %p264 = scmp.le.s32.totalorder 2, %s9
    // Predicated region
    $region37: #{seq2seq3d_forward.11} parent=5 // pred_check
      %p265 = pneg %p264
    $region38: #{seq2seq3d_forward.11} parent=5 // pred_check_branch
      %267 = sbr.rel (%p265) target = $region40
    $region39: #{seq2seq3d_forward.11} parent=5 // pred_region
      %s268 = ssub.s32 %s9, 2
      // Predicated region
      $region41: #{seq2seq3d_forward.11} parent=39 // pred_check
        %p269 = pneg %p122
      $region42: #{seq2seq3d_forward.11} parent=39 // pred_check_branch
        %271 = sbr.rel (%p269) target = $region44
      $region43: #{seq2seq3d_forward.11} parent=39 // pred_region
        %p272 = scmp.lt.s32.totalorder %s20, 1
        %s273 = scalar_select %p272, %s20, 1
        %p274 = scmp.lt.s32.totalorder %s21, 0
        %s275 = scalar_select %p274, %s21, 0
        %s276 = smul.addr %s273, 2
        %s277 = sadd.s32 %s275, %s276
        %s278 = smul.addr %s277, 4
        %s279 = scalar_lea.vmem %s3, %s278
      $region44: #{seq2seq3d_forward.11} parent=39 // pred_fallthru
        _
    $region40: #{seq2seq3d_forward.11} parent=5 // pred_fallthru
      _
  $region6: #{seq2seq3d_forward.11} parent=0 // loop_footer
    %s13 = sadd.s32 1, %s9
  $region7: #{seq2seq3d_forward.11} parent=0 // loop_footer_branch
    %8 = sbr.rel target = $region3
  $region8: #{seq2seq3d_forward.11} parent=0 // loop_exit
    _

// kernel: seq2seq3d_forward.12
$region0: #{seq2seq3d_forward.12}
  #allocation0 [shape = 'u32[]', space=smem, size = 0x4, offset = 0x4, fixed_abs, tag = 'smem constant byte address 0x4 - core index']
  #allocation1 [shape = 'u32[72,128]{1,0:T(1,128)}', space=vmem, size = 0x9000, scoped, tag = 'internal scratch']
  %s0 = inlined_call_operand.vmem [shape: bf16[2,432,256], index: 0, kind: input, shape index: {}]
  %s1 = inlined_call_operand.vmem [shape: bf16[8,432], index: 1, kind: input, shape index: {}]
  %s2 = inlined_call_operand.vmem [shape: f32[8,1], index: 2, kind: input, shape index: {}]
  %s3 = inlined_call_operand.vmem [shape: bf16[2,8,256], index: 3, kind: output, shape index: {}]
  %s4 = sld [smem:[#allocation0]]
  $region45: #{seq2seq3d_forward.12} parent=0
    _
  %s6 = ssub.s32 1, %s4
  %s7 = scalar_select 0, %s6, %s4
  loop: start=0, step=1, limit=4
  $region2: #{seq2seq3d_forward.12} parent=0 // loop_pre_header
    _
  $region3: #{seq2seq3d_forward.12} parent=0 // loop_header
    %s9 = sphi 0, %s13
    %p10 = scmp.ge.s32.totalorder %s9, 4
    %s16 = sphi 0, %s28
    %s17 = sphi 0, %s24
    %s18 = sphi 0, %s16
    %s19 = sphi 0, %s17
    %s20 = sphi 0, %s18
    %s21 = sphi 0, %s19
    %s33 = sphi 0, %s35
    %s36 = sphi 0, %s33
    %s37 = sphi 0, %s36
    %s53 = sphi 0, %s37
    %s57 = sphi 0, %s57
    %s59 = sphi 0, %s57
    %s60 = sphi 0, %s59
    %s74 = sphi 0, %s60
    %s78 = sphi 0, %s78
    %s80 = sphi 0, %s78
    %s81 = sphi 0, %s80
    %s95 = sphi 0, %s81
    %s103 = sphi 0, %s105
    %s106 = sphi 0, %s103
    %s107 = sphi 0, %s106
    %s123 = sphi 0, %s107
  $region4: #{seq2seq3d_forward.12} parent=0 // loop_header_branch
    %12 = sbr.rel (%p10) target = $region8
  $region5: #{seq2seq3d_forward.12} parent=0 // loop_body
    %s14 = ssub.s32 %s9, 1
    %s15 = ssub.s32 %s9, 2
    %s22 = sadd.s32 1, %s17
    %p23 = scmp.ge.s32.totalorder %s22, 1
    %s24 = scalar_select %p23, 0, %s22
    %s25 = sadd.s32 1, %s16
    %s26 = scalar_select %p23, %s25, %s16
    %p27 = scmp.ge.s32.totalorder %s26, 2
    %s28 = scalar_select %p27, 0, %s26
    %s29 = ssub.s32 %s16, %s28
    %s30 = ssub.s32 %s17, %s24
    %s31 = sor.u32 %s29, %s30
    %p32 = scmp.eq.s32.totalorder %s31, 0
    %s34 = sadd.s32 %s33, 1
    %s35 = scalar_select %p32, %s33, %s34
    %p38 = pneg %p32
    %p39 = scmp.eq.s32.totalorder %s9, 1
    %p40 = por %p38, %p39
    %p41 = scmp.ne.s32.totalorder %s33, %s36
    %p42 = scmp.eq.s32.totalorder %s9, 0
    %p43 = por %p41, %p42
    %p44 = scmp.ne.s32.totalorder %s33, %s36
    %p45 = scmp.eq.s32.totalorder %s14, 1
    %p46 = por %p44, %p45
    %p47 = scmp.ne.s32.totalorder %s36, %s37
    %p48 = scmp.eq.s32.totalorder %s14, 0
    %p49 = por %p47, %p48
    %p50 = scmp.ne.s32.totalorder %s36, %s37
    %p51 = scmp.eq.s32.totalorder %s15, 1
    %p52 = por %p50, %p51
    %p54 = scmp.ne.s32.totalorder %s37, %s53
    %p55 = scmp.eq.s32.totalorder %s15, 0
    %p56 = por %p54, %p55
    %s58 = sadd.s32 %s57, 1
    %p61 = scmp.eq.s32.totalorder %s9, 1
    %p62 = scmp.ne.s32.totalorder %s57, %s59
    %p63 = scmp.eq.s32.totalorder %s9, 0
    %p64 = por %p62, %p63
    %p65 = scmp.ne.s32.totalorder %s57, %s59
    %p66 = scmp.eq.s32.totalorder %s14, 1
    %p67 = por %p65, %p66
    %p68 = scmp.ne.s32.totalorder %s59, %s60
    %p69 = scmp.eq.s32.totalorder %s14, 0
    %p70 = por %p68, %p69
    %p71 = scmp.ne.s32.totalorder %s59, %s60
    %p72 = scmp.eq.s32.totalorder %s15, 1
    %p73 = por %p71, %p72
    %p75 = scmp.ne.s32.totalorder %s60, %s74
    %p76 = scmp.eq.s32.totalorder %s15, 0
    %p77 = por %p75, %p76
    %s79 = sadd.s32 %s78, 1
    %p82 = scmp.eq.s32.totalorder %s9, 1
    %p83 = scmp.ne.s32.totalorder %s78, %s80
    %p84 = scmp.eq.s32.totalorder %s9, 0
    %p85 = por %p83, %p84
    %p86 = scmp.ne.s32.totalorder %s78, %s80
    %p87 = scmp.eq.s32.totalorder %s14, 1
    %p88 = por %p86, %p87
    %p89 = scmp.ne.s32.totalorder %s80, %s81
    %p90 = scmp.eq.s32.totalorder %s14, 0
    %p91 = por %p89, %p90
    %p92 = scmp.ne.s32.totalorder %s80, %s81
    %p93 = scmp.eq.s32.totalorder %s15, 1
    %p94 = por %p92, %p93
    %p96 = scmp.ne.s32.totalorder %s81, %s95
    %p97 = scmp.eq.s32.totalorder %s15, 0
    %p98 = por %p96, %p97
    %s99 = ssub.s32 %s16, %s28
    %s100 = ssub.s32 %s17, %s24
    %s101 = sor.u32 %s99, %s100
    %p102 = scmp.eq.s32.totalorder %s101, 0
    %s104 = sadd.s32 %s103, 1
    %s105 = scalar_select %p102, %s103, %s104
    %p108 = pneg %p102
    %p109 = scmp.eq.s32.totalorder %s9, 1
    %p110 = por %p108, %p109
    %p111 = scmp.ne.s32.totalorder %s103, %s106
    %p112 = scmp.eq.s32.totalorder %s9, 0
    %p113 = por %p111, %p112
    %p114 = scmp.ne.s32.totalorder %s103, %s106
    %p115 = scmp.eq.s32.totalorder %s14, 1
    %p116 = por %p114, %p115
    %p117 = scmp.ne.s32.totalorder %s106, %s107
    %p118 = scmp.eq.s32.totalorder %s14, 0
    %p119 = por %p117, %p118
    %p120 = scmp.ne.s32.totalorder %s106, %s107
    %p121 = scmp.eq.s32.totalorder %s15, 1
    %p122 = por %p120, %p121
    %p124 = scmp.ne.s32.totalorder %s107, %s123
    %p125 = scmp.eq.s32.totalorder %s15, 0
    %p126 = por %p124, %p125
    %p127 = scmp.le.s32.totalorder 1, %s9
    %p128 = scmp.lt.s32.totalorder %s9, 3
    %p129 = pnand %p127, %p128
    %p130 = pneg %p129
    // Predicated region
    $region9: #{seq2seq3d_forward.12} parent=5 // pred_check
      _
    $region10: #{seq2seq3d_forward.12} parent=5 // pred_check_branch
      %132 = sbr.rel (%p129) target = $region12
    $region11: #{seq2seq3d_forward.12} parent=5 // pred_region
      %s133 = ssub.s32 %s9, 1
      // Predicated region
      $region13: #{seq2seq3d_forward.12} parent=11 // pred_check
        %p134 = pneg %p70
      $region14: #{seq2seq3d_forward.12} parent=11 // pred_check_branch
        %136 = sbr.rel (%p134) target = $region16
      $region15: #{seq2seq3d_forward.12} parent=11 // pred_region
        _
      $region16: #{seq2seq3d_forward.12} parent=11 // pred_fallthru
        _
      // Predicated region
      $region17: #{seq2seq3d_forward.12} parent=11 // pred_check
        %p137 = pneg %p91
      $region18: #{seq2seq3d_forward.12} parent=11 // pred_check_branch
        %139 = sbr.rel (%p137) target = $region20
      $region19: #{seq2seq3d_forward.12} parent=11 // pred_region
        _
      $region20: #{seq2seq3d_forward.12} parent=11 // pred_fallthru
        _
    $region12: #{seq2seq3d_forward.12} parent=5 // pred_fallthru
      _
    %p140 = scmp.lt.s32.totalorder %s9, 2
    // Predicated region
    $region21: #{seq2seq3d_forward.12} parent=5 // pred_check
      %p141 = pneg %p140
    $region22: #{seq2seq3d_forward.12} parent=5 // pred_check_branch
      %143 = sbr.rel (%p141) target = $region24
    $region23: #{seq2seq3d_forward.12} parent=5 // pred_region
      // Predicated region
      $region25: #{seq2seq3d_forward.12} parent=23 // pred_check
        %p144 = pneg %p43
      $region26: #{seq2seq3d_forward.12} parent=23 // pred_check_branch
        %146 = sbr.rel (%p144) target = $region28
      $region27: #{seq2seq3d_forward.12} parent=23 // pred_region
        %s147 = smul.u32 2, %s17
        %p148 = scmp.lt.s32.totalorder %s16, 1
        %s149 = scalar_select %p148, %s16, 1
        %p150 = scmp.lt.s32.totalorder %s147, 1
        %s151 = scalar_select %p150, %s147, 1
        %s152 = smul.addr %s149, 108
        %s153 = sadd.s32 %s151, %s152
        %s154 = smul.addr %s153, 4
        %s155 = scalar_lea.vmem %s0, %s154
        %s156 = smul.u32 2, %s17
      $region28: #{seq2seq3d_forward.12} parent=23 // pred_fallthru
        _
    $region24: #{seq2seq3d_forward.12} parent=5 // pred_fallthru
      _
    %p157 = scmp.le.s32.totalorder 1, %s9
    %p158 = scmp.lt.s32.totalorder %s9, 3
    %p159 = pnand %p157, %p158
    %p160 = pneg %p159
    // Predicated region
    $region29: #{seq2seq3d_forward.12} parent=5 // pred_check
      _
    $region30: #{seq2seq3d_forward.12} parent=5 // pred_check_branch
      %162 = sbr.rel (%p159) target = $region32
    $region31: #{seq2seq3d_forward.12} parent=5 // pred_region
      %s163 = ssub.s32 %s9, 1
      %s164 = smul.u32 2, %s19
      %p165 = scmp.lt.s32.totalorder %s18, 1
      %s166 = scalar_select %p165, %s18, 1
      %p167 = scmp.lt.s32.totalorder %s164, 1
      %s168 = scalar_select %p167, %s164, 1
      %s169 = smul.addr %s166, 108
      %s170 = sadd.s32 %s168, %s169
      %s171 = smul.addr %s170, 4
      %s172 = scalar_lea.vmem %s0, %s171
      %p173 = pneg %p49
      %p174 = pneg %p46
      %p175 = pneg %p70
      %p176 = pneg %p67
      %p177 = pneg %p91
      %p178 = pneg %p88
      %p179 = pneg %p119
      %p180 = pneg %p116
      %s181 = smul.u32 2, %s19
      %p182 = scmp.lt.s32.totalorder %s18, 1
      %s183 = scalar_select %p182, %s18, 1
      %p184 = scmp.lt.s32.totalorder %s181, 1
      %s185 = scalar_select %p184, %s181, 1
      %s186 = smul.addr %s183, 2
      %s187 = sadd.s32 %s185, %s186
      %s188 = smul.addr %s187, 4
      %s189 = scalar_lea.vmem %s3, %s188
      %s190 = smul.u32 2, %s19
      %p191 = scmp.lt.s32.totalorder %s18, 1
      %s192 = scalar_select %p191, %s18, 1
      %p193 = scmp.lt.s32.totalorder %s190, 1
      %s194 = scalar_select %p193, %s190, 1
      %s195 = smul.addr %s192, 108
      %s196 = sadd.s32 %s194, %s195
      %s197 = smul.addr %s196, 4
      %s198 = scalar_lea.vmem %s0, %s197
      %s199 = smul.u32 2, %s19
      %s200 = smul.u32 2, %s19
      %p201 = scmp.lt.s32.totalorder %s18, 1
      %s202 = scalar_select %p201, %s18, 1
      %p203 = scmp.lt.s32.totalorder %s200, 1
      %s204 = scalar_select %p203, %s200, 1
      %s205 = smul.addr %s202, 2
      %s206 = sadd.s32 %s204, %s205
      %s207 = smul.addr %s206, 4
      %s208 = scalar_lea.vmem %s3, %s207
      %s209 = smul.u32 2, %s19
      %v211 = vld [vmem:[%s1] sm:$0xff]
      %v212 = vld [vmem:[%s1 + $0x8] sm:$0xff]
      %v213 = vld [vmem:[%s198] sm:$0xff]
      %v214 = vld [vmem:[%s198 + $0x8] sm:$0xff]
      %v215 = vld [vmem:[%s198 + $0x10] sm:$0xff]
      %v216 = vld [vmem:[%s198 + $0x18] sm:$0xff]
      %v217 = vld [vmem:[%s198 + $0x20] sm:$0xff]
      %v218 = vld [vmem:[%s198 + $0x28] sm:$0xff]
      %v219 = vld [vmem:[%s198 + $0x30] sm:$0xff]
      %v220 = vld [vmem:[%s198 + $0x38] sm:$0xff]
      %v221 = vld [vmem:[%s198 + $0x40] sm:$0xff]
      %v222 = vld [vmem:[%s198 + $0x48] sm:$0xff]
      %v223 = vld [vmem:[%s198 + $0x50] sm:$0xff]
      %v224 = vld [vmem:[%s198 + $0x58] sm:$0xff]
      %v225 = vld [vmem:[%s198 + $0x60] sm:$0xff]
      %v226 = vld [vmem:[%s198 + $0x68] sm:$0xff]
      %v227 = vld [vmem:[%s198 + $0x70] sm:$0xff]
      %v228 = vld [vmem:[%s198 + $0x78] sm:$0xff]
      %v229 = vld [vmem:[%s198 + $0x80] sm:$0xff]
      %v230 = vld [vmem:[%s198 + $0x88] sm:$0xff]
      %v231 = vld [vmem:[%s198 + $0x90] sm:$0xff]
      %v232 = vld [vmem:[%s198 + $0x98] sm:$0xff]
      %v233 = vld [vmem:[%s198 + $0xa0] sm:$0xff]
      %v234 = vld [vmem:[%s198 + $0xa8] sm:$0xff]
      %v235 = vld [vmem:[%s198 + $0xb0] sm:$0xff]
      %v236 = vld [vmem:[%s198 + $0xb8] sm:$0xff]
      %v237 = vld [vmem:[%s198 + $0xc0] sm:$0xff]
      %v238 = vld [vmem:[%s198 + $0xc8] sm:$0xff]
      %v239 = vld [vmem:[%s198 + $0xd0] sm:$0xff]
      %v240 = vld [vmem:[%s198 + $0xd8] sm:$0xff]
      %v241 = vld [vmem:[%s198 + $0xe0] sm:$0xff]
      %v242 = vld [vmem:[%s198 + $0xe8] sm:$0xff]
      %v243 = vld [vmem:[%s198 + $0xf0] sm:$0xff]
      %v244 = vld [vmem:[%s198 + $0xf8] sm:$0xff]
      %v245 = vld [vmem:[%s198 + $0x100] sm:$0xff]
      %v246 = vld [vmem:[%s198 + $0x108] sm:$0xff]
      %v247 = vld [vmem:[%s198 + $0x110] sm:$0xff]
      %v248 = vld [vmem:[%s198 + $0x118] sm:$0xff]
      %v249 = vld [vmem:[%s198 + $0x120] sm:$0xff]
      %v250 = vld [vmem:[%s198 + $0x128] sm:$0xff]
      %v251 = vld [vmem:[%s198 + $0x130] sm:$0xff]
      %v252 = vld [vmem:[%s198 + $0x138] sm:$0xff]
      %v253 = vld [vmem:[%s198 + $0x140] sm:$0xff]
      %v254 = vld [vmem:[%s198 + $0x148] sm:$0xff]
      %v255 = vld [vmem:[%s198 + $0x150] sm:$0xff]
      %v256 = vld [vmem:[%s198 + $0x158] sm:$0xff]
      %v257 = vld [vmem:[%s198 + $0x160] sm:$0xff]
      %v258 = vld [vmem:[%s198 + $0x168] sm:$0xff]
      %v259 = vld [vmem:[%s198 + $0x170] sm:$0xff]
      %v260 = vld [vmem:[%s198 + $0x178] sm:$0xff]
      %v261 = vld [vmem:[%s198 + $0x180] sm:$0xff]
      %v262 = vld [vmem:[%s198 + $0x188] sm:$0xff]
      %v263 = vld [vmem:[%s198 + $0x190] sm:$0xff]
      %v264 = vld [vmem:[%s198 + $0x198] sm:$0xff]
      %v265 = vld [vmem:[%s198 + $0x1a0] sm:$0xff]
      %v266 = vld [vmem:[%s198 + $0x1a8] sm:$0xff]
      %v267 = vld [vmem:[%s2] sm:$0xff]
      %269 = vset.pattern.permute.xlu0 0
      %270 = vperm.xlu0 %269, %v267
      %v271 = vpop.permute.xlu0 %270
      %v275 = vunpack.c.l.b16 %v211
      %v276 = vunpack.c.h.b16 %v211
      %v277 = vunpack.c.l.b16 %v212
      %v278 = vunpack.c.h.b16 %v212
      %v279 = vpack.c.b16 %v275, %v275
      %v280 = vpack.c.b16 %v276, %v276
      %v281 = vpack.c.b16 %v277, %v277
      %v282 = vpack.c.b16 %v278, %v278
      %v340 = vunpack.c.l.b16 %v213
      %v341 = vunpack.c.h.b16 %v213
      %v342 = vunpack.c.l.b16 %v214
      %v343 = vunpack.c.h.b16 %v214
      %v344 = vunpack.c.l.b16 %v215
      %v345 = vunpack.c.h.b16 %v215
      %v346 = vunpack.c.l.b16 %v216
      %v347 = vunpack.c.h.b16 %v216
      %v348 = vunpack.c.l.b16 %v217
      %v349 = vunpack.c.h.b16 %v217
      %v350 = vunpack.c.l.b16 %v218
      %v351 = vunpack.c.h.b16 %v218
      %v352 = vunpack.c.l.b16 %v219
      %v353 = vunpack.c.h.b16 %v219
      %v354 = vunpack.c.l.b16 %v220
      %v355 = vunpack.c.h.b16 %v220
      %v356 = vunpack.c.l.b16 %v221
      %v357 = vunpack.c.h.b16 %v221
      %v358 = vunpack.c.l.b16 %v222
      %v359 = vunpack.c.h.b16 %v222
      %v360 = vunpack.c.l.b16 %v223
      %v361 = vunpack.c.h.b16 %v223
      %v362 = vunpack.c.l.b16 %v224
      %v363 = vunpack.c.h.b16 %v224
      %v364 = vunpack.c.l.b16 %v225
      %v365 = vunpack.c.h.b16 %v225
      %v366 = vunpack.c.l.b16 %v226
      %v367 = vunpack.c.h.b16 %v226
      %v368 = vunpack.c.l.b16 %v227
      %v369 = vunpack.c.h.b16 %v227
      %v370 = vunpack.c.l.b16 %v228
      %v371 = vunpack.c.h.b16 %v228
      %v372 = vunpack.c.l.b16 %v229
      %v373 = vunpack.c.h.b16 %v229
      %v374 = vunpack.c.l.b16 %v230
      %v375 = vunpack.c.h.b16 %v230
      %v376 = vunpack.c.l.b16 %v231
      %v377 = vunpack.c.h.b16 %v231
      %v378 = vunpack.c.l.b16 %v232
      %v379 = vunpack.c.h.b16 %v232
      %v380 = vunpack.c.l.b16 %v233
      %v381 = vunpack.c.h.b16 %v233
      %v382 = vunpack.c.l.b16 %v234
      %v383 = vunpack.c.h.b16 %v234
      %v384 = vunpack.c.l.b16 %v235
      %v385 = vunpack.c.h.b16 %v235
      %v386 = vunpack.c.l.b16 %v236
      %v387 = vunpack.c.h.b16 %v236
      %v388 = vunpack.c.l.b16 %v237
      %v389 = vunpack.c.h.b16 %v237
      %v390 = vunpack.c.l.b16 %v238
      %v391 = vunpack.c.h.b16 %v238
      %v392 = vunpack.c.l.b16 %v239
      %v393 = vunpack.c.h.b16 %v239
      %v394 = vunpack.c.l.b16 %v240
      %v395 = vunpack.c.h.b16 %v240
      %v396 = vunpack.c.l.b16 %v241
      %v397 = vunpack.c.h.b16 %v241
      %v398 = vunpack.c.l.b16 %v242
      %v399 = vunpack.c.h.b16 %v242
      %v400 = vunpack.c.l.b16 %v243
      %v401 = vunpack.c.h.b16 %v243
      %v402 = vunpack.c.l.b16 %v244
      %v403 = vunpack.c.h.b16 %v244
      %v404 = vunpack.c.l.b16 %v245
      %v405 = vunpack.c.h.b16 %v245
      %v406 = vunpack.c.l.b16 %v246
      %v407 = vunpack.c.h.b16 %v246
      %v408 = vunpack.c.l.b16 %v247
      %v409 = vunpack.c.h.b16 %v247
      %v410 = vunpack.c.l.b16 %v248
      %v411 = vunpack.c.h.b16 %v248
      %v412 = vunpack.c.l.b16 %v249
      %v413 = vunpack.c.h.b16 %v249
      %v414 = vunpack.c.l.b16 %v250
      %v415 = vunpack.c.h.b16 %v250
      %v416 = vunpack.c.l.b16 %v251
      %v417 = vunpack.c.h.b16 %v251
      %v418 = vunpack.c.l.b16 %v252
      %v419 = vunpack.c.h.b16 %v252
      %v420 = vunpack.c.l.b16 %v253
      %v421 = vunpack.c.h.b16 %v253
      %v422 = vunpack.c.l.b16 %v254
      %v423 = vunpack.c.h.b16 %v254
      %v424 = vunpack.c.l.b16 %v255
      %v425 = vunpack.c.h.b16 %v255
      %v426 = vunpack.c.l.b16 %v256
      %v427 = vunpack.c.h.b16 %v256
      %v428 = vunpack.c.l.b16 %v257
      %v429 = vunpack.c.h.b16 %v257
      %v430 = vunpack.c.l.b16 %v258
      %v431 = vunpack.c.h.b16 %v258
      %v432 = vunpack.c.l.b16 %v259
      %v433 = vunpack.c.h.b16 %v259
      %v434 = vunpack.c.l.b16 %v260
      %v435 = vunpack.c.h.b16 %v260
      %v436 = vunpack.c.l.b16 %v261
      %v437 = vunpack.c.h.b16 %v261
      %v438 = vunpack.c.l.b16 %v262
      %v439 = vunpack.c.h.b16 %v262
      %v440 = vunpack.c.l.b16 %v263
      %v441 = vunpack.c.h.b16 %v263
      %v442 = vunpack.c.l.b16 %v264
      %v443 = vunpack.c.h.b16 %v264
      %v444 = vunpack.c.l.b16 %v265
      %v445 = vunpack.c.h.b16 %v265
      %v446 = vunpack.c.l.b16 %v266
      %v447 = vunpack.c.h.b16 %v266
      %v448 = vpack.c.b16 %v342, %v340
      %v449 = vpack.c.b16 %v343, %v341
      %v450 = vpack.c.b16 %v346, %v344
      %v451 = vpack.c.b16 %v347, %v345
      %v452 = vpack.c.b16 %v350, %v348
      %v453 = vpack.c.b16 %v351, %v349
      %v454 = vpack.c.b16 %v354, %v352
      %v455 = vpack.c.b16 %v355, %v353
      %v456 = vpack.c.b16 %v358, %v356
      %v457 = vpack.c.b16 %v359, %v357
      %v458 = vpack.c.b16 %v362, %v360
      %v459 = vpack.c.b16 %v363, %v361
      %v460 = vpack.c.b16 %v366, %v364
      %v461 = vpack.c.b16 %v367, %v365
      %v462 = vpack.c.b16 %v370, %v368
      %v463 = vpack.c.b16 %v371, %v369
      %v464 = vpack.c.b16 %v374, %v372
      %v465 = vpack.c.b16 %v375, %v373
      %v466 = vpack.c.b16 %v378, %v376
      %v467 = vpack.c.b16 %v379, %v377
      %v468 = vpack.c.b16 %v382, %v380
      %v469 = vpack.c.b16 %v383, %v381
      %v470 = vpack.c.b16 %v386, %v384
      %v471 = vpack.c.b16 %v387, %v385
      %v472 = vpack.c.b16 %v390, %v388
      %v473 = vpack.c.b16 %v391, %v389
      %v474 = vpack.c.b16 %v394, %v392
      %v475 = vpack.c.b16 %v395, %v393
      %v476 = vpack.c.b16 %v398, %v396
      %v477 = vpack.c.b16 %v399, %v397
      %v478 = vpack.c.b16 %v402, %v400
      %v479 = vpack.c.b16 %v403, %v401
      %v480 = vpack.c.b16 %v406, %v404
      %v481 = vpack.c.b16 %v407, %v405
      %v482 = vpack.c.b16 %v410, %v408
      %v483 = vpack.c.b16 %v411, %v409
      %v484 = vpack.c.b16 %v414, %v412
      %v485 = vpack.c.b16 %v415, %v413
      %v486 = vpack.c.b16 %v418, %v416
      %v487 = vpack.c.b16 %v419, %v417
      %v488 = vpack.c.b16 %v422, %v420
      %v489 = vpack.c.b16 %v423, %v421
      %v490 = vpack.c.b16 %v426, %v424
      %v491 = vpack.c.b16 %v427, %v425
      %v492 = vpack.c.b16 %v430, %v428
      %v493 = vpack.c.b16 %v431, %v429
      %v494 = vpack.c.b16 %v434, %v432
      %v495 = vpack.c.b16 %v435, %v433
      %v496 = vpack.c.b16 %v438, %v436
      %v497 = vpack.c.b16 %v439, %v437
      %v498 = vpack.c.b16 %v442, %v440
      %v499 = vpack.c.b16 %v443, %v441
      %v500 = vpack.c.b16 %v446, %v444
      %v501 = vpack.c.b16 %v447, %v445
      %vm556 = vcmask 392192
      %v558 = vsel %vm556, %v282, 0
      %560 = vmatpush.bf16.msra.mxu0 %v462
      %561 = vmatpush.bf16.msra.mxu0 %v460
      %562 = vmatpush.bf16.msra.mxu0 %v458
      %563 = vmatpush.bf16.msra.mxu0 %v456
      %564 = vmatpush.bf16.msra.mxu0 %v454
      %565 = vmatpush.bf16.msra.mxu0 %v452
      %566 = vmatpush.bf16.msra.mxu0 %v450
      %567 = vmatpush.bf16.msra.mxu0 %v448
      %568 = vmatmul.bf16.gmra.mxu0 %v279
      %v569 = vpop.f32.mrf.mxu0
      %v570 = vadd.f32 %v271, %v569
      %v571 = vpop.f32.mrf.mxu0
      %572 = vdwg.mxu0
      %573 = vmatpush.bf16.msra.mxu0 %v478
      %574 = vmatpush.bf16.msra.mxu0 %v476
      %575 = vmatpush.bf16.msra.mxu0 %v474
      %576 = vmatpush.bf16.msra.mxu0 %v472
      %577 = vmatpush.bf16.msra.mxu0 %v470
      %578 = vmatpush.bf16.msra.mxu0 %v468
      %579 = vmatpush.bf16.msra.mxu0 %v466
      %580 = vmatpush.bf16.msra.mxu0 %v464
      %581 = vmatmul.bf16.gmra.mxu0 %v280
      %v582 = vpop.f32.mrf.mxu0
      %v583 = vadd.f32 %v570, %v582
      %v584 = vpop.f32.mrf.mxu0
      %585 = vdwg.mxu0
      %586 = vmatpush.bf16.msra.mxu0 %v494
      %587 = vmatpush.bf16.msra.mxu0 %v492
      %588 = vmatpush.bf16.msra.mxu0 %v490
      %589 = vmatpush.bf16.msra.mxu0 %v488
      %590 = vmatpush.bf16.msra.mxu0 %v486
      %591 = vmatpush.bf16.msra.mxu0 %v484
      %592 = vmatpush.bf16.msra.mxu0 %v482
      %593 = vmatpush.bf16.msra.mxu0 %v480
      %594 = vmatmul.bf16.gmra.mxu0 %v281
      %v595 = vpop.f32.mrf.mxu0
      %v596 = vadd.f32 %v583, %v595
      %v597 = vpop.f32.mrf.mxu0
      %598 = vdwg.mxu0
      %599 = vmatpush.bf16.msra.mxu0 0
      %600 = vmatpush.bf16.msra.mxu0 0
      %601 = vmatpush.bf16.msra.mxu0 0
      %602 = vmatpush.bf16.msra.mxu0 0
      %603 = vmatpush.bf16.msra.mxu0 0
      %604 = vmatpush.bf16.msra.mxu0 %v500
      %605 = vmatpush.bf16.msra.mxu0 %v498
      %606 = vmatpush.bf16.msra.mxu0 %v496
      %607 = vmatmul.bf16.gmra.mxu0 %v558
      %v608 = vpop.f32.mrf.mxu0
      %v609 = vadd.f32 %v596, %v608
      %v610 = vpop.f32.mrf.mxu0
      %611 = vdwg.mxu0
      %612 = vmatpush.bf16.msra.mxu0 %v463
      %613 = vmatpush.bf16.msra.mxu0 %v461
      %614 = vmatpush.bf16.msra.mxu0 %v459
      %615 = vmatpush.bf16.msra.mxu0 %v457
      %616 = vmatpush.bf16.msra.mxu0 %v455
      %617 = vmatpush.bf16.msra.mxu0 %v453
      %618 = vmatpush.bf16.msra.mxu0 %v451
      %619 = vmatpush.bf16.msra.mxu0 %v449
      %620 = vmatmul.bf16.gmra.mxu0 %v279
      %v621 = vpop.f32.mrf.mxu0
      %v622 = vadd.f32 %v271, %v621
      %v623 = vpop.f32.mrf.mxu0
      %624 = vdwg.mxu0
      %625 = vmatpush.bf16.msra.mxu0 %v479
      %626 = vmatpush.bf16.msra.mxu0 %v477
      %627 = vmatpush.bf16.msra.mxu0 %v475
      %628 = vmatpush.bf16.msra.mxu0 %v473
      %629 = vmatpush.bf16.msra.mxu0 %v471
      %630 = vmatpush.bf16.msra.mxu0 %v469
      %631 = vmatpush.bf16.msra.mxu0 %v467
      %632 = vmatpush.bf16.msra.mxu0 %v465
      %633 = vmatmul.bf16.gmra.mxu0 %v280
      %v634 = vpop.f32.mrf.mxu0
      %v635 = vadd.f32 %v622, %v634
      %v636 = vpop.f32.mrf.mxu0
      %637 = vdwg.mxu0
      %638 = vmatpush.bf16.msra.mxu0 %v495
      %639 = vmatpush.bf16.msra.mxu0 %v493
      %640 = vmatpush.bf16.msra.mxu0 %v491
      %641 = vmatpush.bf16.msra.mxu0 %v489
      %642 = vmatpush.bf16.msra.mxu0 %v487
      %643 = vmatpush.bf16.msra.mxu0 %v485
      %644 = vmatpush.bf16.msra.mxu0 %v483
      %645 = vmatpush.bf16.msra.mxu0 %v481
      %646 = vmatmul.bf16.gmra.mxu0 %v281
      %v647 = vpop.f32.mrf.mxu0
      %v648 = vadd.f32 %v635, %v647
      %v649 = vpop.f32.mrf.mxu0
      %650 = vdwg.mxu0
      %651 = vmatpush.bf16.msra.mxu0 0
      %652 = vmatpush.bf16.msra.mxu0 0
      %653 = vmatpush.bf16.msra.mxu0 0
      %654 = vmatpush.bf16.msra.mxu0 0
      %655 = vmatpush.bf16.msra.mxu0 0
      %656 = vmatpush.bf16.msra.mxu0 %v501
      %657 = vmatpush.bf16.msra.mxu0 %v499
      %658 = vmatpush.bf16.msra.mxu0 %v497
      %659 = vmatmul.bf16.gmra.mxu0 %v558
      %v660 = vpop.f32.mrf.mxu0
      %v661 = vadd.f32 %v648, %v660
      %v662 = vpop.f32.mrf.mxu0
      %663 = vdwg.mxu0
      %vm664 = vcmp.ge.f32.partialorder %v609, 0.0
      %vm665 = vcmp.ge.f32.partialorder %v661, 0.0
      %v666 = vmul.f32 %v609, 0.01
      %v667 = vmul.f32 %v661, 0.01
      %v668 = vsel %vm664, %v609, %v666
      %v669 = vsel %vm665, %v661, %v667
      %v670 = vpack.c.bf16 %v669, %v668
      %671 = vst [vmem:[%s208] sm:$0xff] %v670
      %s672 = smul.u32 2, %s19
      %p673 = scmp.lt.s32.totalorder %s18, 1
      %s674 = scalar_select %p673, %s18, 1
      %p675 = scmp.lt.s32.totalorder %s672, 1
      %s676 = scalar_select %p675, %s672, 1
      %s677 = smul.addr %s674, 2
      %s678 = sadd.s32 %s676, %s677
      %s679 = smul.addr %s678, 4
      %s680 = scalar_lea.vmem %s3, %s679
      // Predicated region
      $region33: #{seq2seq3d_forward.12} parent=31 // pred_check
        %p681 = pneg %p116
      $region34: #{seq2seq3d_forward.12} parent=31 // pred_check_branch
        %683 = sbr.rel (%p681) target = $region36
      $region35: #{seq2seq3d_forward.12} parent=31 // pred_region
        %s684 = smul.u32 2, %s19
      $region36: #{seq2seq3d_forward.12} parent=31 // pred_fallthru
        _
    $region32: #{seq2seq3d_forward.12} parent=5 // pred_fallthru
      _
    %p685 = scmp.le.s32.totalorder 2, %s9
    // Predicated region
    $region37: #{seq2seq3d_forward.12} parent=5 // pred_check
      %p686 = pneg %p685
    $region38: #{seq2seq3d_forward.12} parent=5 // pred_check_branch
      %688 = sbr.rel (%p686) target = $region40
    $region39: #{seq2seq3d_forward.12} parent=5 // pred_region
      %s689 = ssub.s32 %s9, 2
      // Predicated region
      $region41: #{seq2seq3d_forward.12} parent=39 // pred_check
        %p690 = pneg %p122
      $region42: #{seq2seq3d_forward.12} parent=39 // pred_check_branch
        %692 = sbr.rel (%p690) target = $region44
      $region43: #{seq2seq3d_forward.12} parent=39 // pred_region
        %s693 = smul.u32 2, %s21
        %p694 = scmp.lt.s32.totalorder %s20, 1
        %s695 = scalar_select %p694, %s20, 1
        %p696 = scmp.lt.s32.totalorder %s693, 1
        %s697 = scalar_select %p696, %s693, 1
        %s698 = smul.addr %s695, 2
        %s699 = sadd.s32 %s697, %s698
        %s700 = smul.addr %s699, 4
        %s701 = scalar_lea.vmem %s3, %s700
      $region44: #{seq2seq3d_forward.12} parent=39 // pred_fallthru
        _
    $region40: #{seq2seq3d_forward.12} parent=5 // pred_fallthru
      _
  $region6: #{seq2seq3d_forward.12} parent=0 // loop_footer
    %s13 = sadd.s32 1, %s9
  $region7: #{seq2seq3d_forward.12} parent=0 // loop_footer_branch
    %8 = sbr.rel target = $region3
  $region8: #{seq2seq3d_forward.12} parent=0 // loop_exit
    _

// kernel: seq2seq3d_forward.13
$region0: #{seq2seq3d_forward.13}
  #allocation0 [shape = 'u32[]', space=smem, size = 0x4, offset = 0x4, fixed_abs, tag = 'smem constant byte address 0x4 - core index']
  #allocation1 [shape = 'u32[72,128]{1,0:T(1,128)}', space=vmem, size = 0x9000, scoped, tag = 'internal scratch']
  #allocation2 [shape = 'f32[1,1]{1,0:T(1,128)S(1)}', space=vmem, size = 0x200, scoped, tag = 'scoped memory for seq2seq3d_forward.13']
  %s0 = inlined_call_operand.vmem [shape: bf16[2,216,2048], index: 0, kind: input, shape index: {}]
  %s1 = inlined_call_operand.vmem [shape: bf16[8,216], index: 1, kind: input, shape index: {}]
  %s2 = inlined_call_operand.vmem [shape: f32[8,1], index: 2, kind: input, shape index: {}]
  %s3 = inlined_call_operand.vmem [shape: f32[1,8], index: 3, kind: input, shape index: {}]
  %s4 = inlined_call_operand.<no memory space> [shape: f32[1,1], index: 4, kind: input, shape index: {}]
  %s5 = inlined_call_operand.vmem [shape: f32[2,1,2048], index: 5, kind: output, shape index: {}]
  %s6 = sld [smem:[#allocation0]]
  $region76: #{seq2seq3d_forward.13} parent=0
    _
  %s8 = ssub.s32 1, %s6
  %s9 = scalar_select 0, %s8, %s6
  %v10 = vstv %s4
  %11 = vst [vmem:[#allocation2] sm:$0x1] %v10
  $region1: #{seq2seq3d_forward.13} parent=0
    #allocation3 [shape = 'u8[884736]{0}', space=vmem, size = 0xd8000, scoped, tag = 'input window, operand 0']
    loop: start=0, step=1, limit=6
    $region2: #{seq2seq3d_forward.13} parent=1 // loop_pre_header
      _
    $region3: #{seq2seq3d_forward.13} parent=1 // loop_header
      %s13 = sphi 0, %s17
      %p14 = scmp.ge.s32.totalorder %s13, 6
      %s20 = sphi 0, %s32
      %s21 = sphi 0, %s28
      %s22 = sphi 0, %s20
      %s23 = sphi 0, %s21
      %s24 = sphi 0, %s22
      %s25 = sphi 0, %s23
      %s37 = sphi 0, %s39
      %s40 = sphi 0, %s37
      %s41 = sphi 0, %s40
      %s57 = sphi 0, %s41
      %s61 = sphi 0, %s61
      %s63 = sphi 0, %s61
      %s64 = sphi 0, %s63
      %s78 = sphi 0, %s64
      %s82 = sphi 0, %s82
      %s84 = sphi 0, %s82
      %s85 = sphi 0, %s84
      %s99 = sphi 0, %s85
      %s103 = sphi 0, %s103
      %s105 = sphi 0, %s103
      %s106 = sphi 0, %s105
      %s120 = sphi 0, %s106
      %s124 = sphi 0, %s124
      %s126 = sphi 0, %s124
      %s127 = sphi 0, %s126
      %s141 = sphi 0, %s127
      %s149 = sphi 0, %s151
      %s152 = sphi 0, %s149
      %s153 = sphi 0, %s152
      %s169 = sphi 0, %s153
    $region4: #{seq2seq3d_forward.13} parent=1 // loop_header_branch
      %16 = sbr.rel (%p14) target = $region8
    $region5: #{seq2seq3d_forward.13} parent=1 // loop_body
      %s18 = ssub.s32 %s13, 1
      %s19 = ssub.s32 %s13, 2
      %s26 = sadd.s32 1, %s21
      %p27 = scmp.ge.s32.totalorder %s26, 2
      %s28 = scalar_select %p27, 0, %s26
      %s29 = sadd.s32 1, %s20
      %s30 = scalar_select %p27, %s29, %s20
      %p31 = scmp.ge.s32.totalorder %s30, 2
      %s32 = scalar_select %p31, 0, %s30
      %s33 = ssub.s32 %s20, %s32
      %s34 = ssub.s32 %s21, %s28
      %s35 = sor.u32 %s33, %s34
      %p36 = scmp.eq.s32.totalorder %s35, 0
      %s38 = sadd.s32 %s37, 1
      %s39 = scalar_select %p36, %s37, %s38
      %p42 = pneg %p36
      %p43 = scmp.eq.s32.totalorder %s13, 3
      %p44 = por %p42, %p43
      %p45 = scmp.ne.s32.totalorder %s37, %s40
      %p46 = scmp.eq.s32.totalorder %s13, 0
      %p47 = por %p45, %p46
      %p48 = scmp.ne.s32.totalorder %s37, %s40
      %p49 = scmp.eq.s32.totalorder %s18, 3
      %p50 = por %p48, %p49
      %p51 = scmp.ne.s32.totalorder %s40, %s41
      %p52 = scmp.eq.s32.totalorder %s18, 0
      %p53 = por %p51, %p52
      %p54 = scmp.ne.s32.totalorder %s40, %s41
      %p55 = scmp.eq.s32.totalorder %s19, 3
      %p56 = por %p54, %p55
      %p58 = scmp.ne.s32.totalorder %s41, %s57
      %p59 = scmp.eq.s32.totalorder %s19, 0
      %p60 = por %p58, %p59
      %s62 = sadd.s32 %s61, 1
      %p65 = scmp.eq.s32.totalorder %s13, 3
      %p66 = scmp.ne.s32.totalorder %s61, %s63
      %p67 = scmp.eq.s32.totalorder %s13, 0
      %p68 = por %p66, %p67
      %p69 = scmp.ne.s32.totalorder %s61, %s63
      %p70 = scmp.eq.s32.totalorder %s18, 3
      %p71 = por %p69, %p70
      %p72 = scmp.ne.s32.totalorder %s63, %s64
      %p73 = scmp.eq.s32.totalorder %s18, 0
      %p74 = por %p72, %p73
      %p75 = scmp.ne.s32.totalorder %s63, %s64
      %p76 = scmp.eq.s32.totalorder %s19, 3
      %p77 = por %p75, %p76
      %p79 = scmp.ne.s32.totalorder %s64, %s78
      %p80 = scmp.eq.s32.totalorder %s19, 0
      %p81 = por %p79, %p80
      %s83 = sadd.s32 %s82, 1
      %p86 = scmp.eq.s32.totalorder %s13, 3
      %p87 = scmp.ne.s32.totalorder %s82, %s84
      %p88 = scmp.eq.s32.totalorder %s13, 0
      %p89 = por %p87, %p88
      %p90 = scmp.ne.s32.totalorder %s82, %s84
      %p91 = scmp.eq.s32.totalorder %s18, 3
      %p92 = por %p90, %p91
      %p93 = scmp.ne.s32.totalorder %s84, %s85
      %p94 = scmp.eq.s32.totalorder %s18, 0
      %p95 = por %p93, %p94
      %p96 = scmp.ne.s32.totalorder %s84, %s85
      %p97 = scmp.eq.s32.totalorder %s19, 3
      %p98 = por %p96, %p97
      %p100 = scmp.ne.s32.totalorder %s85, %s99
      %p101 = scmp.eq.s32.totalorder %s19, 0
      %p102 = por %p100, %p101
      %s104 = sadd.s32 %s103, 1
      %p107 = scmp.eq.s32.totalorder %s13, 3
      %p108 = scmp.ne.s32.totalorder %s103, %s105
      %p109 = scmp.eq.s32.totalorder %s13, 0
      %p110 = por %p108, %p109
      %p111 = scmp.ne.s32.totalorder %s103, %s105
      %p112 = scmp.eq.s32.totalorder %s18, 3
      %p113 = por %p111, %p112
      %p114 = scmp.ne.s32.totalorder %s105, %s106
      %p115 = scmp.eq.s32.totalorder %s18, 0
      %p116 = por %p114, %p115
      %p117 = scmp.ne.s32.totalorder %s105, %s106
      %p118 = scmp.eq.s32.totalorder %s19, 3
      %p119 = por %p117, %p118
      %p121 = scmp.ne.s32.totalorder %s106, %s120
      %p122 = scmp.eq.s32.totalorder %s19, 0
      %p123 = por %p121, %p122
      %s125 = sadd.s32 %s124, 1
      %p128 = scmp.eq.s32.totalorder %s13, 3
      %p129 = scmp.ne.s32.totalorder %s124, %s126
      %p130 = scmp.eq.s32.totalorder %s13, 0
      %p131 = por %p129, %p130
      %p132 = scmp.ne.s32.totalorder %s124, %s126
      %p133 = scmp.eq.s32.totalorder %s18, 3
      %p134 = por %p132, %p133
      %p135 = scmp.ne.s32.totalorder %s126, %s127
      %p136 = scmp.eq.s32.totalorder %s18, 0
      %p137 = por %p135, %p136
      %p138 = scmp.ne.s32.totalorder %s126, %s127
      %p139 = scmp.eq.s32.totalorder %s19, 3
      %p140 = por %p138, %p139
      %p142 = scmp.ne.s32.totalorder %s127, %s141
      %p143 = scmp.eq.s32.totalorder %s19, 0
      %p144 = por %p142, %p143
      %s145 = ssub.s32 %s20, %s32
      %s146 = ssub.s32 %s21, %s28
      %s147 = sor.u32 %s145, %s146
      %p148 = scmp.eq.s32.totalorder %s147, 0
      %s150 = sadd.s32 %s149, 1
      %s151 = scalar_select %p148, %s149, %s150
      %p154 = pneg %p148
      %p155 = scmp.eq.s32.totalorder %s13, 3
      %p156 = por %p154, %p155
      %p157 = scmp.ne.s32.totalorder %s149, %s152
      %p158 = scmp.eq.s32.totalorder %s13, 0
      %p159 = por %p157, %p158
      %p160 = scmp.ne.s32.totalorder %s149, %s152
      %p161 = scmp.eq.s32.totalorder %s18, 3
      %p162 = por %p160, %p161
      %p163 = scmp.ne.s32.totalorder %s152, %s153
      %p164 = scmp.eq.s32.totalorder %s18, 0
      %p165 = por %p163, %p164
      %p166 = scmp.ne.s32.totalorder %s152, %s153
      %p167 = scmp.eq.s32.totalorder %s19, 3
      %p168 = por %p166, %p167
      %p170 = scmp.ne.s32.totalorder %s153, %s169
      %p171 = scmp.eq.s32.totalorder %s19, 0
      %p172 = por %p170, %p171
      %p173 = scmp.le.s32.totalorder 1, %s13
      %p174 = scmp.lt.s32.totalorder %s13, 5
      %p175 = pnand %p173, %p174
      %p176 = pneg %p175
      // Predicated region
      $region9: #{seq2seq3d_forward.13} parent=5 // pred_check
        _
      $region10: #{seq2seq3d_forward.13} parent=5 // pred_check_branch
        %178 = sbr.rel (%p175) target = $region12
      $region11: #{seq2seq3d_forward.13} parent=5 // pred_region
        %s179 = ssub.s32 %s13, 1
        // Predicated region
        $region13: #{seq2seq3d_forward.13} parent=11 // pred_check
          %p180 = pneg %p74
        $region14: #{seq2seq3d_forward.13} parent=11 // pred_check_branch
          %182 = sbr.rel (%p180) target = $region16
        $region15: #{seq2seq3d_forward.13} parent=11 // pred_region
          _
        $region16: #{seq2seq3d_forward.13} parent=11 // pred_fallthru
          _
        // Predicated region
        $region17: #{seq2seq3d_forward.13} parent=11 // pred_check
          %p183 = pneg %p95
        $region18: #{seq2seq3d_forward.13} parent=11 // pred_check_branch
          %185 = sbr.rel (%p183) target = $region20
        $region19: #{seq2seq3d_forward.13} parent=11 // pred_region
          _
        $region20: #{seq2seq3d_forward.13} parent=11 // pred_fallthru
          _
        // Predicated region
        $region21: #{seq2seq3d_forward.13} parent=11 // pred_check
          %p186 = pneg %p116
        $region22: #{seq2seq3d_forward.13} parent=11 // pred_check_branch
          %188 = sbr.rel (%p186) target = $region24
        $region23: #{seq2seq3d_forward.13} parent=11 // pred_region
          _
        $region24: #{seq2seq3d_forward.13} parent=11 // pred_fallthru
          _
        // Predicated region
        $region25: #{seq2seq3d_forward.13} parent=11 // pred_check
          %p189 = pneg %p137
        $region26: #{seq2seq3d_forward.13} parent=11 // pred_check_branch
          %191 = sbr.rel (%p189) target = $region28
        $region27: #{seq2seq3d_forward.13} parent=11 // pred_region
          _
        $region28: #{seq2seq3d_forward.13} parent=11 // pred_fallthru
          _
      $region12: #{seq2seq3d_forward.13} parent=5 // pred_fallthru
        _
      %p192 = scmp.lt.s32.totalorder %s13, 4
      // Predicated region
      $region29: #{seq2seq3d_forward.13} parent=5 // pred_check
        %p193 = pneg %p192
      $region30: #{seq2seq3d_forward.13} parent=5 // pred_check_branch
        %195 = sbr.rel (%p193) target = $region32
      $region31: #{seq2seq3d_forward.13} parent=5 // pred_region
        // Predicated region
        $region33: #{seq2seq3d_forward.13} parent=31 // pred_check
          %p196 = pneg %p47
        $region34: #{seq2seq3d_forward.13} parent=31 // pred_check_branch
          %198 = sbr.rel (%p196) target = $region36
        $region35: #{seq2seq3d_forward.13} parent=31 // pred_region
          %s199 = sand.u32 %s37, 1
          %s200 = sand.u32 %s37, 1
          %s201 = smul.addr %s200, 864
          %s202 = scalar_lea.vmem [#allocation3], %s201
          %s203 = smul.u32 8, %s21
          %s204 = smul.addr %s20, 432
          %s205 = sadd.s32 %s203, %s204
          %s206 = smul.addr %s205, 4
          %s207 = scalar_lea.vmem %s0, %s206
          // Predicated region
          $region37: #{seq2seq3d_forward.13} parent=35 // pred_check
            _
          $region38: #{seq2seq3d_forward.13} parent=35 // pred_check_branch
            %209 = sbr.rel (0) target = $region40
          $region39: #{seq2seq3d_forward.13} parent=35 // pred_region
            // Predicated region
            $region41: #{seq2seq3d_forward.13} parent=39 // pred_check
              _
            $region42: #{seq2seq3d_forward.13} parent=39 // pred_check_branch
              %211 = sbr.rel (0) target = $region44
            $region43: #{seq2seq3d_forward.13} parent=39 // pred_region
              loop: start=0, step=1, limit=1
              $region45: #{seq2seq3d_forward.13} parent=43 // loop_pre_header
                _
              $region46: #{seq2seq3d_forward.13} parent=43 // loop_header
                %s213 = sphi 0, %s217
                %p214 = scmp.ge.s32.totalorder %s213, 1
                %s218 = sphi %s207, %s207
                %s219 = sphi %s202, %s202
              $region47: #{seq2seq3d_forward.13} parent=43 // loop_header_branch
                %216 = sbr.rel (%p214) target = $region51
              $region48: #{seq2seq3d_forward.13} parent=43 // loop_body
                %v220 = vld [vmem:[%s218] sm:$0xff]
                %221 = vst [vmem:[%s219] sm:$0xff] %v220
                %v222 = vld [vmem:[%s218 + $0x8] sm:$0xff]
                %223 = vst [vmem:[%s219 + $0x8] sm:$0xff] %v222
                %v224 = vld [vmem:[%s218 + $0x10] sm:$0xff]
                %225 = vst [vmem:[%s219 + $0x10] sm:$0xff] %v224
                %v226 = vld [vmem:[%s218 + $0x18] sm:$0xff]
                %227 = vst [vmem:[%s219 + $0x18] sm:$0xff] %v226
                %v228 = vld [vmem:[%s218 + $0x40] sm:$0xff]
                %229 = vst [vmem:[%s219 + $0x20] sm:$0xff] %v228
                %v230 = vld [vmem:[%s218 + $0x48] sm:$0xff]
                %231 = vst [vmem:[%s219 + $0x28] sm:$0xff] %v230
                %v232 = vld [vmem:[%s218 + $0x50] sm:$0xff]
                %233 = vst [vmem:[%s219 + $0x30] sm:$0xff] %v232
                %v234 = vld [vmem:[%s218 + $0x58] sm:$0xff]
                %235 = vst [vmem:[%s219 + $0x38] sm:$0xff] %v234
                %v236 = vld [vmem:[%s218 + $0x80] sm:$0xff]
                %237 = vst [vmem:[%s219 + $0x40] sm:$0xff] %v236
                %v238 = vld [vmem:[%s218 + $0x88] sm:$0xff]
                %239 = vst [vmem:[%s219 + $0x48] sm:$0xff] %v238
                %v240 = vld [vmem:[%s218 + $0x90] sm:$0xff]
                %241 = vst [vmem:[%s219 + $0x50] sm:$0xff] %v240
                %v242 = vld [vmem:[%s218 + $0x98] sm:$0xff]
                %243 = vst [vmem:[%s219 + $0x58] sm:$0xff] %v242
                %v244 = vld [vmem:[%s218 + $0xc0] sm:$0xff]
                %245 = vst [vmem:[%s219 + $0x60] sm:$0xff] %v244
                %v246 = vld [vmem:[%s218 + $0xc8] sm:$0xff]
                %247 = vst [vmem:[%s219 + $0x68] sm:$0xff] %v246
                %v248 = vld [vmem:[%s218 + $0xd0] sm:$0xff]
                %249 = vst [vmem:[%s219 + $0x70] sm:$0xff] %v248
                %v250 = vld [vmem:[%s218 + $0xd8] sm:$0xff]
                %251 = vst [vmem:[%s219 + $0x78] sm:$0xff] %v250
                %v252 = vld [vmem:[%s218 + $0x100] sm:$0xff]
                %253 = vst [vmem:[%s219 + $0x80] sm:$0xff] %v252
                %v254 = vld [vmem:[%s218 + $0x108] sm:$0xff]
                %255 = vst [vmem:[%s219 + $0x88] sm:$0xff] %v254
                %v256 = vld [vmem:[%s218 + $0x110] sm:$0xff]
                %257 = vst [vmem:[%s219 + $0x90] sm:$0xff] %v256
                %v258 = vld [vmem:[%s218 + $0x118] sm:$0xff]
                %259 = vst [vmem:[%s219 + $0x98] sm:$0xff] %v258
                %v260 = vld [vmem:[%s218 + $0x140] sm:$0xff]
                %261 = vst [vmem:[%s219 + $0xa0] sm:$0xff] %v260
                %v262 = vld [vmem:[%s218 + $0x148] sm:$0xff]
                %263 = vst [vmem:[%s219 + $0xa8] sm:$0xff] %v262
                %v264 = vld [vmem:[%s218 + $0x150] sm:$0xff]
                %265 = vst [vmem:[%s219 + $0xb0] sm:$0xff] %v264
                %v266 = vld [vmem:[%s218 + $0x158] sm:$0xff]
                %267 = vst [vmem:[%s219 + $0xb8] sm:$0xff] %v266
                %v268 = vld [vmem:[%s218 + $0x180] sm:$0xff]
                %269 = vst [vmem:[%s219 + $0xc0] sm:$0xff] %v268
                %v270 = vld [vmem:[%s218 + $0x188] sm:$0xff]
                %271 = vst [vmem:[%s219 + $0xc8] sm:$0xff] %v270
                %v272 = vld [vmem:[%s218 + $0x190] sm:$0xff]
                %273 = vst [vmem:[%s219 + $0xd0] sm:$0xff] %v272
                %v274 = vld [vmem:[%s218 + $0x198] sm:$0xff]
                %275 = vst [vmem:[%s219 + $0xd8] sm:$0xff] %v274
                %v276 = vld [vmem:[%s218 + $0x1c0] sm:$0xff]
                %277 = vst [vmem:[%s219 + $0xe0] sm:$0xff] %v276
                %v278 = vld [vmem:[%s218 + $0x1c8] sm:$0xff]
                %279 = vst [vmem:[%s219 + $0xe8] sm:$0xff] %v278
                %v280 = vld [vmem:[%s218 + $0x1d0] sm:$0xff]
                %281 = vst [vmem:[%s219 + $0xf0] sm:$0xff] %v280
                %v282 = vld [vmem:[%s218 + $0x1d8] sm:$0xff]
                %283 = vst [vmem:[%s219 + $0xf8] sm:$0xff] %v282
                %v284 = vld [vmem:[%s218 + $0x200] sm:$0xff]
                %285 = vst [vmem:[%s219 + $0x100] sm:$0xff] %v284
                %v286 = vld [vmem:[%s218 + $0x208] sm:$0xff]
                %287 = vst [vmem:[%s219 + $0x108] sm:$0xff] %v286
                %v288 = vld [vmem:[%s218 + $0x210] sm:$0xff]
                %289 = vst [vmem:[%s219 + $0x110] sm:$0xff] %v288
                %v290 = vld [vmem:[%s218 + $0x218] sm:$0xff]
                %291 = vst [vmem:[%s219 + $0x118] sm:$0xff] %v290
                %v292 = vld [vmem:[%s218 + $0x240] sm:$0xff]
                %293 = vst [vmem:[%s219 + $0x120] sm:$0xff] %v292
                %v294 = vld [vmem:[%s218 + $0x248] sm:$0xff]
                %295 = vst [vmem:[%s219 + $0x128] sm:$0xff] %v294
                %v296 = vld [vmem:[%s218 + $0x250] sm:$0xff]
                %297 = vst [vmem:[%s219 + $0x130] sm:$0xff] %v296
                %v298 = vld [vmem:[%s218 + $0x258] sm:$0xff]
                %299 = vst [vmem:[%s219 + $0x138] sm:$0xff] %v298
                %v300 = vld [vmem:[%s218 + $0x280] sm:$0xff]
                %301 = vst [vmem:[%s219 + $0x140] sm:$0xff] %v300
                %v302 = vld [vmem:[%s218 + $0x288] sm:$0xff]
                %303 = vst [vmem:[%s219 + $0x148] sm:$0xff] %v302
                %v304 = vld [vmem:[%s218 + $0x290] sm:$0xff]
                %305 = vst [vmem:[%s219 + $0x150] sm:$0xff] %v304
                %v306 = vld [vmem:[%s218 + $0x298] sm:$0xff]
                %307 = vst [vmem:[%s219 + $0x158] sm:$0xff] %v306
                %v308 = vld [vmem:[%s218 + $0x2c0] sm:$0xff]
                %309 = vst [vmem:[%s219 + $0x160] sm:$0xff] %v308
                %v310 = vld [vmem:[%s218 + $0x2c8] sm:$0xff]
                %311 = vst [vmem:[%s219 + $0x168] sm:$0xff] %v310
                %v312 = vld [vmem:[%s218 + $0x2d0] sm:$0xff]
                %313 = vst [vmem:[%s219 + $0x170] sm:$0xff] %v312
                %v314 = vld [vmem:[%s218 + $0x2d8] sm:$0xff]
                %315 = vst [vmem:[%s219 + $0x178] sm:$0xff] %v314
                %v316 = vld [vmem:[%s218 + $0x300] sm:$0xff]
                %317 = vst [vmem:[%s219 + $0x180] sm:$0xff] %v316
                %v318 = vld [vmem:[%s218 + $0x308] sm:$0xff]
                %319 = vst [vmem:[%s219 + $0x188] sm:$0xff] %v318
                %v320 = vld [vmem:[%s218 + $0x310] sm:$0xff]
                %321 = vst [vmem:[%s219 + $0x190] sm:$0xff] %v320
                %v322 = vld [vmem:[%s218 + $0x318] sm:$0xff]
                %323 = vst [vmem:[%s219 + $0x198] sm:$0xff] %v322
                %v324 = vld [vmem:[%s218 + $0x340] sm:$0xff]
                %325 = vst [vmem:[%s219 + $0x1a0] sm:$0xff] %v324
                %v326 = vld [vmem:[%s218 + $0x348] sm:$0xff]
                %327 = vst [vmem:[%s219 + $0x1a8] sm:$0xff] %v326
                %v328 = vld [vmem:[%s218 + $0x350] sm:$0xff]
                %329 = vst [vmem:[%s219 + $0x1b0] sm:$0xff] %v328
                %v330 = vld [vmem:[%s218 + $0x358] sm:$0xff]
                %331 = vst [vmem:[%s219 + $0x1b8] sm:$0xff] %v330
                %v332 = vld [vmem:[%s218 + $0x380] sm:$0xff]
                %333 = vst [vmem:[%s219 + $0x1c0] sm:$0xff] %v332
                %v334 = vld [vmem:[%s218 + $0x388] sm:$0xff]
                %335 = vst [vmem:[%s219 + $0x1c8] sm:$0xff] %v334
                %v336 = vld [vmem:[%s218 + $0x390] sm:$0xff]
                %337 = vst [vmem:[%s219 + $0x1d0] sm:$0xff] %v336
                %v338 = vld [vmem:[%s218 + $0x398] sm:$0xff]
                %339 = vst [vmem:[%s219 + $0x1d8] sm:$0xff] %v338
                %v340 = vld [vmem:[%s218 + $0x3c0] sm:$0xff]
                %341 = vst [vmem:[%s219 + $0x1e0] sm:$0xff] %v340
                %v342 = vld [vmem:[%s218 + $0x3c8] sm:$0xff]
                %343 = vst [vmem:[%s219 + $0x1e8] sm:$0xff] %v342
                %v344 = vld [vmem:[%s218 + $0x3d0] sm:$0xff]
                %345 = vst [vmem:[%s219 + $0x1f0] sm:$0xff] %v344
                %v346 = vld [vmem:[%s218 + $0x3d8] sm:$0xff]
                %347 = vst [vmem:[%s219 + $0x1f8] sm:$0xff] %v346
                %v348 = vld [vmem:[%s218 + $0x400] sm:$0xff]
                %349 = vst [vmem:[%s219 + $0x200] sm:$0xff] %v348
                %v350 = vld [vmem:[%s218 + $0x408] sm:$0xff]
                %351 = vst [vmem:[%s219 + $0x208] sm:$0xff] %v350
                %v352 = vld [vmem:[%s218 + $0x410] sm:$0xff]
                %353 = vst [vmem:[%s219 + $0x210] sm:$0xff] %v352
                %v354 = vld [vmem:[%s218 + $0x418] sm:$0xff]
                %355 = vst [vmem:[%s219 + $0x218] sm:$0xff] %v354
                %v356 = vld [vmem:[%s218 + $0x440] sm:$0xff]
                %357 = vst [vmem:[%s219 + $0x220] sm:$0xff] %v356
                %v358 = vld [vmem:[%s218 + $0x448] sm:$0xff]
                %359 = vst [vmem:[%s219 + $0x228] sm:$0xff] %v358
                %v360 = vld [vmem:[%s218 + $0x450] sm:$0xff]
                %361 = vst [vmem:[%s219 + $0x230] sm:$0xff] %v360
                %v362 = vld [vmem:[%s218 + $0x458] sm:$0xff]
                %363 = vst [vmem:[%s219 + $0x238] sm:$0xff] %v362
                %v364 = vld [vmem:[%s218 + $0x480] sm:$0xff]
                %365 = vst [vmem:[%s219 + $0x240] sm:$0xff] %v364
                %v366 = vld [vmem:[%s218 + $0x488] sm:$0xff]
                %367 = vst [vmem:[%s219 + $0x248] sm:$0xff] %v366
                %v368 = vld [vmem:[%s218 + $0x490] sm:$0xff]
                %369 = vst [vmem:[%s219 + $0x250] sm:$0xff] %v368
                %v370 = vld [vmem:[%s218 + $0x498] sm:$0xff]
                %371 = vst [vmem:[%s219 + $0x258] sm:$0xff] %v370
                %v372 = vld [vmem:[%s218 + $0x4c0] sm:$0xff]
                %373 = vst [vmem:[%s219 + $0x260] sm:$0xff] %v372
                %v374 = vld [vmem:[%s218 + $0x4c8] sm:$0xff]
                %375 = vst [vmem:[%s219 + $0x268] sm:$0xff] %v374
                %v376 = vld [vmem:[%s218 + $0x4d0] sm:$0xff]
                %377 = vst [vmem:[%s219 + $0x270] sm:$0xff] %v376
                %v378 = vld [vmem:[%s218 + $0x4d8] sm:$0xff]
                %379 = vst [vmem:[%s219 + $0x278] sm:$0xff] %v378
                %v380 = vld [vmem:[%s218 + $0x500] sm:$0xff]
                %381 = vst [vmem:[%s219 + $0x280] sm:$0xff] %v380
                %v382 = vld [vmem:[%s218 + $0x508] sm:$0xff]
                %383 = vst [vmem:[%s219 + $0x288] sm:$0xff] %v382
                %v384 = vld [vmem:[%s218 + $0x510] sm:$0xff]
                %385 = vst [vmem:[%s219 + $0x290] sm:$0xff] %v384
                %v386 = vld [vmem:[%s218 + $0x518] sm:$0xff]
                %387 = vst [vmem:[%s219 + $0x298] sm:$0xff] %v386
                %v388 = vld [vmem:[%s218 + $0x540] sm:$0xff]
                %389 = vst [vmem:[%s219 + $0x2a0] sm:$0xff] %v388
                %v390 = vld [vmem:[%s218 + $0x548] sm:$0xff]
                %391 = vst [vmem:[%s219 + $0x2a8] sm:$0xff] %v390
                %v392 = vld [vmem:[%s218 + $0x550] sm:$0xff]
                %393 = vst [vmem:[%s219 + $0x2b0] sm:$0xff] %v392
                %v394 = vld [vmem:[%s218 + $0x558] sm:$0xff]
                %395 = vst [vmem:[%s219 + $0x2b8] sm:$0xff] %v394
                %v396 = vld [vmem:[%s218 + $0x580] sm:$0xff]
                %397 = vst [vmem:[%s219 + $0x2c0] sm:$0xff] %v396
                %v398 = vld [vmem:[%s218 + $0x588] sm:$0xff]
                %399 = vst [vmem:[%s219 + $0x2c8] sm:$0xff] %v398
                %v400 = vld [vmem:[%s218 + $0x590] sm:$0xff]
                %401 = vst [vmem:[%s219 + $0x2d0] sm:$0xff] %v400
                %v402 = vld [vmem:[%s218 + $0x598] sm:$0xff]
                %403 = vst [vmem:[%s219 + $0x2d8] sm:$0xff] %v402
                %v404 = vld [vmem:[%s218 + $0x5c0] sm:$0xff]
                %405 = vst [vmem:[%s219 + $0x2e0] sm:$0xff] %v404
                %v406 = vld [vmem:[%s218 + $0x5c8] sm:$0xff]
                %407 = vst [vmem:[%s219 + $0x2e8] sm:$0xff] %v406
                %v408 = vld [vmem:[%s218 + $0x5d0] sm:$0xff]
                %409 = vst [vmem:[%s219 + $0x2f0] sm:$0xff] %v408
                %v410 = vld [vmem:[%s218 + $0x5d8] sm:$0xff]
                %411 = vst [vmem:[%s219 + $0x2f8] sm:$0xff] %v410
                %v412 = vld [vmem:[%s218 + $0x600] sm:$0xff]
                %413 = vst [vmem:[%s219 + $0x300] sm:$0xff] %v412
                %v414 = vld [vmem:[%s218 + $0x608] sm:$0xff]
                %415 = vst [vmem:[%s219 + $0x308] sm:$0xff] %v414
                %v416 = vld [vmem:[%s218 + $0x610] sm:$0xff]
                %417 = vst [vmem:[%s219 + $0x310] sm:$0xff] %v416
                %v418 = vld [vmem:[%s218 + $0x618] sm:$0xff]
                %419 = vst [vmem:[%s219 + $0x318] sm:$0xff] %v418
                %v420 = vld [vmem:[%s218 + $0x640] sm:$0xff]
                %421 = vst [vmem:[%s219 + $0x320] sm:$0xff] %v420
                %v422 = vld [vmem:[%s218 + $0x648] sm:$0xff]
                %423 = vst [vmem:[%s219 + $0x328] sm:$0xff] %v422
                %v424 = vld [vmem:[%s218 + $0x650] sm:$0xff]
                %425 = vst [vmem:[%s219 + $0x330] sm:$0xff] %v424
                %v426 = vld [vmem:[%s218 + $0x658] sm:$0xff]
                %427 = vst [vmem:[%s219 + $0x338] sm:$0xff] %v426
                %v428 = vld [vmem:[%s218 + $0x680] sm:$0xff]
                %429 = vst [vmem:[%s219 + $0x340] sm:$0xff] %v428
                %v430 = vld [vmem:[%s218 + $0x688] sm:$0xff]
                %431 = vst [vmem:[%s219 + $0x348] sm:$0xff] %v430
                %v432 = vld [vmem:[%s218 + $0x690] sm:$0xff]
                %433 = vst [vmem:[%s219 + $0x350] sm:$0xff] %v432
                %v434 = vld [vmem:[%s218 + $0x698] sm:$0xff]
                %435 = vst [vmem:[%s219 + $0x358] sm:$0xff] %v434
              $region49: #{seq2seq3d_forward.13} parent=43 // loop_footer
                %s217 = sadd.s32 1, %s213
              $region50: #{seq2seq3d_forward.13} parent=43 // loop_footer_branch
                %212 = sbr.rel target = $region46
              $region51: #{seq2seq3d_forward.13} parent=43 // loop_exit
                _
            $region44: #{seq2seq3d_forward.13} parent=39 // pred_fallthru
              _
            // Predicated region
            $region52: #{seq2seq3d_forward.13} parent=39 // pred_check
              _
            $region53: #{seq2seq3d_forward.13} parent=39 // pred_check_branch
              %437 = sbr.rel target = $region55
            $region54: #{seq2seq3d_forward.13} parent=39 // pred_region
              _
            $region55: #{seq2seq3d_forward.13} parent=39 // pred_fallthru
              _
          $region40: #{seq2seq3d_forward.13} parent=35 // pred_fallthru
            _
          %438 = vnop
        $region36: #{seq2seq3d_forward.13} parent=31 // pred_fallthru
          _
      $region32: #{seq2seq3d_forward.13} parent=5 // pred_fallthru
        _
      %p439 = scmp.le.s32.totalorder 1, %s13
      %p440 = scmp.lt.s32.totalorder %s13, 5
      %p441 = pnand %p439, %p440
      %p442 = pneg %p441
      // Predicated region
      $region56: #{seq2seq3d_forward.13} parent=5 // pred_check
        _
      $region57: #{seq2seq3d_forward.13} parent=5 // pred_check_branch
        %444 = sbr.rel (%p441) target = $region59
      $region58: #{seq2seq3d_forward.13} parent=5 // pred_region
        %s445 = ssub.s32 %s13, 1
        %s446 = sand.u32 %s40, 1
        %s447 = sand.u32 %s40, 1
        %s448 = smul.addr %s447, 864
        %s449 = scalar_lea.vmem [#allocation3], %s448
        // Predicated region
        $region60: #{seq2seq3d_forward.13} parent=58 // pred_check
          %p450 = pneg %p53
        $region61: #{seq2seq3d_forward.13} parent=58 // pred_check_branch
          %452 = sbr.rel (%p450) target = $region63
        $region62: #{seq2seq3d_forward.13} parent=58 // pred_region
          _
        $region63: #{seq2seq3d_forward.13} parent=58 // pred_fallthru
          _
        %s453 = sand.u32 %s40, 1
        %s454 = sand.u32 %s40, 1
        %s455 = smul.addr %s454, 864
        %s456 = scalar_lea.vmem [#allocation3], %s455
        %p457 = pneg %p53
        %p458 = pneg %p50
        %p459 = pneg %p74
        %p460 = pneg %p71
        %p461 = pneg %p95
        %p462 = pneg %p92
        %p463 = pneg %p116
        %p464 = pneg %p113
        %p465 = pneg %p137
        %p466 = pneg %p134
        %p467 = pneg %p165
        %p468 = pneg %p162
        %s469 = smul.u32 8, %s23
        %p470 = scmp.lt.s32.totalorder %s22, 1
        %s471 = scalar_select %p470, %s22, 1
        %p472 = scmp.lt.s32.totalorder %s469, 15
        %s473 = scalar_select %p472, %s469, 15
        %s474 = smul.addr %s471, 16
        %s475 = sadd.s32 %s473, %s474
        %s476 = scalar_lea.vmem %s5, %s475
        %s477 = smul.u32 8, %s23
        %s478 = smul.u32 8, %s23
        %p479 = scmp.lt.s32.totalorder %s22, 1
        %s480 = scalar_select %p479, %s22, 1
        %p481 = scmp.lt.s32.totalorder %s478, 15
        %s482 = scalar_select %p481, %s478, 15
        %s483 = smul.addr %s480, 16
        %s484 = sadd.s32 %s482, %s483
        %s485 = scalar_lea.vmem %s5, %s484
        %s486 = smul.u32 8, %s23
        %v488 = vld [vmem:[%s1] sm:$0xff]
        %v489 = vld [vmem:[%s449] sm:$0xff]
        %v490 = vld [vmem:[%s449 + $0x8] sm:$0xff]
        %v491 = vld [vmem:[%s449 + $0x10] sm:$0xff]
        %v492 = vld [vmem:[%s449 + $0x18] sm:$0xff]
        %v493 = vld [vmem:[%s449 + $0x20] sm:$0xff]
        %v494 = vld [vmem:[%s449 + $0x28] sm:$0xff]
        %v495 = vld [vmem:[%s449 + $0x30] sm:$0xff]
        %v496 = vld [vmem:[%s449 + $0x38] sm:$0xff]
        %v497 = vld [vmem:[%s449 + $0x40] sm:$0xff]
        %v498 = vld [vmem:[%s449 + $0x48] sm:$0xff]
        %v499 = vld [vmem:[%s449 + $0x50] sm:$0xff]
        %v500 = vld [vmem:[%s449 + $0x58] sm:$0xff]
        %v501 = vld [vmem:[%s449 + $0x60] sm:$0xff]
        %v502 = vld [vmem:[%s449 + $0x68] sm:$0xff]
        %v503 = vld [vmem:[%s449 + $0x70] sm:$0xff]
        %v504 = vld [vmem:[%s449 + $0x78] sm:$0xff]
        %v505 = vld [vmem:[%s449 + $0x80] sm:$0xff]
        %v506 = vld [vmem:[%s449 + $0x88] sm:$0xff]
        %v507 = vld [vmem:[%s449 + $0x90] sm:$0xff]
        %v508 = vld [vmem:[%s449 + $0x98] sm:$0xff]
        %v509 = vld [vmem:[%s449 + $0xa0] sm:$0xff]
        %v510 = vld [vmem:[%s449 + $0xa8] sm:$0xff]
        %v511 = vld [vmem:[%s449 + $0xb0] sm:$0xff]
        %v512 = vld [vmem:[%s449 + $0xb8] sm:$0xff]
        %v513 = vld [vmem:[%s449 + $0xc0] sm:$0xff]
        %v514 = vld [vmem:[%s449 + $0xc8] sm:$0xff]
        %v515 = vld [vmem:[%s449 + $0xd0] sm:$0xff]
        %v516 = vld [vmem:[%s449 + $0xd8] sm:$0xff]
        %v517 = vld [vmem:[%s449 + $0xe0] sm:$0xff]
        %v518 = vld [vmem:[%s449 + $0xe8] sm:$0xff]
        %v519 = vld [vmem:[%s449 + $0xf0] sm:$0xff]
        %v520 = vld [vmem:[%s449 + $0xf8] sm:$0xff]
        %v521 = vld [vmem:[%s449 + $0x100] sm:$0xff]
        %v522 = vld [vmem:[%s449 + $0x108] sm:$0xff]
        %v523 = vld [vmem:[%s449 + $0x110] sm:$0xff]
        %v524 = vld [vmem:[%s449 + $0x118] sm:$0xff]
        %v525 = vld [vmem:[%s449 + $0x120] sm:$0xff]
        %v526 = vld [vmem:[%s449 + $0x128] sm:$0xff]
        %v527 = vld [vmem:[%s449 + $0x130] sm:$0xff]
        %v528 = vld [vmem:[%s449 + $0x138] sm:$0xff]
        %v529 = vld [vmem:[%s449 + $0x140] sm:$0xff]
        %v530 = vld [vmem:[%s449 + $0x148] sm:$0xff]
        %v531 = vld [vmem:[%s449 + $0x150] sm:$0xff]
        %v532 = vld [vmem:[%s449 + $0x158] sm:$0xff]
        %v533 = vld [vmem:[%s449 + $0x160] sm:$0xff]
        %v534 = vld [vmem:[%s449 + $0x168] sm:$0xff]
        %v535 = vld [vmem:[%s449 + $0x170] sm:$0xff]
        %v536 = vld [vmem:[%s449 + $0x178] sm:$0xff]
        %v537 = vld [vmem:[%s449 + $0x180] sm:$0xff]
        %v538 = vld [vmem:[%s449 + $0x188] sm:$0xff]
        %v539 = vld [vmem:[%s449 + $0x190] sm:$0xff]
        %v540 = vld [vmem:[%s449 + $0x198] sm:$0xff]
        %v541 = vld [vmem:[%s449 + $0x1a0] sm:$0xff]
        %v542 = vld [vmem:[%s449 + $0x1a8] sm:$0xff]
        %v543 = vld [vmem:[%s449 + $0x1b0] sm:$0xff]
        %v544 = vld [vmem:[%s449 + $0x1b8] sm:$0xff]
        %v545 = vld [vmem:[%s449 + $0x1c0] sm:$0xff]
        %v546 = vld [vmem:[%s449 + $0x1c8] sm:$0xff]
        %v547 = vld [vmem:[%s449 + $0x1d0] sm:$0xff]
        %v548 = vld [vmem:[%s449 + $0x1d8] sm:$0xff]
        %v549 = vld [vmem:[%s449 + $0x1e0] sm:$0xff]
        %v550 = vld [vmem:[%s449 + $0x1e8] sm:$0xff]
        %v551 = vld [vmem:[%s449 + $0x1f0] sm:$0xff]
        %v552 = vld [vmem:[%s449 + $0x1f8] sm:$0xff]
        %v553 = vld [vmem:[%s449 + $0x200] sm:$0xff]
        %v554 = vld [vmem:[%s449 + $0x208] sm:$0xff]
        %v555 = vld [vmem:[%s449 + $0x210] sm:$0xff]
        %v556 = vld [vmem:[%s449 + $0x218] sm:$0xff]
        %v557 = vld [vmem:[%s449 + $0x220] sm:$0xff]
        %v558 = vld [vmem:[%s449 + $0x228] sm:$0xff]
        %v559 = vld [vmem:[%s449 + $0x230] sm:$0xff]
        %v560 = vld [vmem:[%s449 + $0x238] sm:$0xff]
        %v561 = vld [vmem:[%s449 + $0x240] sm:$0xff]
        %v562 = vld [vmem:[%s449 + $0x248] sm:$0xff]
        %v563 = vld [vmem:[%s449 + $0x250] sm:$0xff]
        %v564 = vld [vmem:[%s449 + $0x258] sm:$0xff]
        %v565 = vld [vmem:[%s449 + $0x260] sm:$0xff]
        %v566 = vld [vmem:[%s449 + $0x268] sm:$0xff]
        %v567 = vld [vmem:[%s449 + $0x270] sm:$0xff]
        %v568 = vld [vmem:[%s449 + $0x278] sm:$0xff]
        %v569 = vld [vmem:[%s449 + $0x280] sm:$0xff]
        %v570 = vld [vmem:[%s449 + $0x288] sm:$0xff]
        %v571 = vld [vmem:[%s449 + $0x290] sm:$0xff]
        %v572 = vld [vmem:[%s449 + $0x298] sm:$0xff]
        %v573 = vld [vmem:[%s449 + $0x2a0] sm:$0xff]
        %v574 = vld [vmem:[%s449 + $0x2a8] sm:$0xff]
        %v575 = vld [vmem:[%s449 + $0x2b0] sm:$0xff]
        %v576 = vld [vmem:[%s449 + $0x2b8] sm:$0xff]
        %v577 = vld [vmem:[%s449 + $0x2c0] sm:$0xff]
        %v578 = vld [vmem:[%s449 + $0x2c8] sm:$0xff]
        %v579 = vld [vmem:[%s449 + $0x2d0] sm:$0xff]
        %v580 = vld [vmem:[%s449 + $0x2d8] sm:$0xff]
        %v581 = vld [vmem:[%s449 + $0x2e0] sm:$0xff]
        %v582 = vld [vmem:[%s449 + $0x2e8] sm:$0xff]
        %v583 = vld [vmem:[%s449 + $0x2f0] sm:$0xff]
        %v584 = vld [vmem:[%s449 + $0x2f8] sm:$0xff]
        %v585 = vld [vmem:[%s449 + $0x300] sm:$0xff]
        %v586 = vld [vmem:[%s449 + $0x308] sm:$0xff]
        %v587 = vld [vmem:[%s449 + $0x310] sm:$0xff]
        %v588 = vld [vmem:[%s449 + $0x318] sm:$0xff]
        %v589 = vld [vmem:[%s449 + $0x320] sm:$0xff]
        %v590 = vld [vmem:[%s449 + $0x328] sm:$0xff]
        %v591 = vld [vmem:[%s449 + $0x330] sm:$0xff]
        %v592 = vld [vmem:[%s449 + $0x338] sm:$0xff]
        %v593 = vld [vmem:[%s449 + $0x340] sm:$0xff]
        %v594 = vld [vmem:[%s449 + $0x348] sm:$0xff]
        %v595 = vld [vmem:[%s449 + $0x350] sm:$0xff]
        %v596 = vld [vmem:[%s449 + $0x358] sm:$0xff]
        %v597 = vld [vmem:[%s2] sm:$0xff]
        %599 = vset.pattern.permute.xlu0 0
        %600 = vperm.xlu0 %599, %v597
        %v601 = vpop.permute.xlu0 %600
        %v604 = vunpack.c.l.b16 %v488
        %v605 = vunpack.c.h.b16 %v488
        %v606 = vpack.c.b16 %v604, %v604
        %v607 = vpack.c.b16 %v605, %v605
        %v717 = vunpack.c.l.b16 %v489
        %v718 = vunpack.c.h.b16 %v489
        %v719 = vunpack.c.l.b16 %v490
        %v720 = vunpack.c.h.b16 %v490
        %v721 = vunpack.c.l.b16 %v491
        %v722 = vunpack.c.h.b16 %v491
        %v723 = vunpack.c.l.b16 %v492
        %v724 = vunpack.c.h.b16 %v492
        %v725 = vunpack.c.l.b16 %v493
        %v726 = vunpack.c.h.b16 %v493
        %v727 = vunpack.c.l.b16 %v494
        %v728 = vunpack.c.h.b16 %v494
        %v729 = vunpack.c.l.b16 %v495
        %v730 = vunpack.c.h.b16 %v495
        %v731 = vunpack.c.l.b16 %v496
        %v732 = vunpack.c.h.b16 %v496
        %v733 = vunpack.c.l.b16 %v497
        %v734 = vunpack.c.h.b16 %v497
        %v735 = vunpack.c.l.b16 %v498
        %v736 = vunpack.c.h.b16 %v498
        %v737 = vunpack.c.l.b16 %v499
        %v738 = vunpack.c.h.b16 %v499
        %v739 = vunpack.c.l.b16 %v500
        %v740 = vunpack.c.h.b16 %v500
        %v741 = vunpack.c.l.b16 %v501
        %v742 = vunpack.c.h.b16 %v501
        %v743 = vunpack.c.l.b16 %v502
        %v744 = vunpack.c.h.b16 %v502
        %v745 = vunpack.c.l.b16 %v503
        %v746 = vunpack.c.h.b16 %v503
        %v747 = vunpack.c.l.b16 %v504
        %v748 = vunpack.c.h.b16 %v504
        %v749 = vunpack.c.l.b16 %v505
        %v750 = vunpack.c.h.b16 %v505
        %v751 = vunpack.c.l.b16 %v506
        %v752 = vunpack.c.h.b16 %v506
        %v753 = vunpack.c.l.b16 %v507
        %v754 = vunpack.c.h.b16 %v507
        %v755 = vunpack.c.l.b16 %v508
        %v756 = vunpack.c.h.b16 %v508
        %v757 = vunpack.c.l.b16 %v509
        %v758 = vunpack.c.h.b16 %v509
        %v759 = vunpack.c.l.b16 %v510
        %v760 = vunpack.c.h.b16 %v510
        %v761 = vunpack.c.l.b16 %v511
        %v762 = vunpack.c.h.b16 %v511
        %v763 = vunpack.c.l.b16 %v512
        %v764 = vunpack.c.h.b16 %v512
        %v765 = vunpack.c.l.b16 %v513
        %v766 = vunpack.c.h.b16 %v513
        %v767 = vunpack.c.l.b16 %v514
        %v768 = vunpack.c.h.b16 %v514
        %v769 = vunpack.c.l.b16 %v515
        %v770 = vunpack.c.h.b16 %v515
        %v771 = vunpack.c.l.b16 %v516
        %v772 = vunpack.c.h.b16 %v516
        %v773 = vunpack.c.l.b16 %v517
        %v774 = vunpack.c.h.b16 %v517
        %v775 = vunpack.c.l.b16 %v518
        %v776 = vunpack.c.h.b16 %v518
        %v777 = vunpack.c.l.b16 %v519
        %v778 = vunpack.c.h.b16 %v519
        %v779 = vunpack.c.l.b16 %v520
        %v780 = vunpack.c.h.b16 %v520
        %v781 = vunpack.c.l.b16 %v521
        %v782 = vunpack.c.h.b16 %v521
        %v783 = vunpack.c.l.b16 %v522
        %v784 = vunpack.c.h.b16 %v522
        %v785 = vunpack.c.l.b16 %v523
        %v786 = vunpack.c.h.b16 %v523
        %v787 = vunpack.c.l.b16 %v524
        %v788 = vunpack.c.h.b16 %v524
        %v789 = vunpack.c.l.b16 %v525
        %v790 = vunpack.c.h.b16 %v525
        %v791 = vunpack.c.l.b16 %v526
        %v792 = vunpack.c.h.b16 %v526
        %v793 = vunpack.c.l.b16 %v527
        %v794 = vunpack.c.h.b16 %v527
        %v795 = vunpack.c.l.b16 %v528
        %v796 = vunpack.c.h.b16 %v528
        %v797 = vunpack.c.l.b16 %v529
        %v798 = vunpack.c.h.b16 %v529
        %v799 = vunpack.c.l.b16 %v530
        %v800 = vunpack.c.h.b16 %v530
        %v801 = vunpack.c.l.b16 %v531
        %v802 = vunpack.c.h.b16 %v531
        %v803 = vunpack.c.l.b16 %v532
        %v804 = vunpack.c.h.b16 %v532
        %v805 = vunpack.c.l.b16 %v533
        %v806 = vunpack.c.h.b16 %v533
        %v807 = vunpack.c.l.b16 %v534
        %v808 = vunpack.c.h.b16 %v534
        %v809 = vunpack.c.l.b16 %v535
        %v810 = vunpack.c.h.b16 %v535
        %v811 = vunpack.c.l.b16 %v536
        %v812 = vunpack.c.h.b16 %v536
        %v813 = vunpack.c.l.b16 %v537
        %v814 = vunpack.c.h.b16 %v537
        %v815 = vunpack.c.l.b16 %v538
        %v816 = vunpack.c.h.b16 %v538
        %v817 = vunpack.c.l.b16 %v539
        %v818 = vunpack.c.h.b16 %v539
        %v819 = vunpack.c.l.b16 %v540
        %v820 = vunpack.c.h.b16 %v540
        %v821 = vunpack.c.l.b16 %v541
        %v822 = vunpack.c.h.b16 %v541
        %v823 = vunpack.c.l.b16 %v542
        %v824 = vunpack.c.h.b16 %v542
        %v825 = vunpack.c.l.b16 %v543
        %v826 = vunpack.c.h.b16 %v543
        %v827 = vunpack.c.l.b16 %v544
        %v828 = vunpack.c.h.b16 %v544
        %v829 = vunpack.c.l.b16 %v545
        %v830 = vunpack.c.h.b16 %v545
        %v831 = vunpack.c.l.b16 %v546
        %v832 = vunpack.c.h.b16 %v546
        %v833 = vunpack.c.l.b16 %v547
        %v834 = vunpack.c.h.b16 %v547
        %v835 = vunpack.c.l.b16 %v548
        %v836 = vunpack.c.h.b16 %v548
        %v837 = vunpack.c.l.b16 %v549
        %v838 = vunpack.c.h.b16 %v549
        %v839 = vunpack.c.l.b16 %v550
        %v840 = vunpack.c.h.b16 %v550
        %v841 = vunpack.c.l.b16 %v551
        %v842 = vunpack.c.h.b16 %v551
        %v843 = vunpack.c.l.b16 %v552
        %v844 = vunpack.c.h.b16 %v552
        %v845 = vunpack.c.l.b16 %v553
        %v846 = vunpack.c.h.b16 %v553
        %v847 = vunpack.c.l.b16 %v554
        %v848 = vunpack.c.h.b16 %v554
        %v849 = vunpack.c.l.b16 %v555
        %v850 = vunpack.c.h.b16 %v555
        %v851 = vunpack.c.l.b16 %v556
        %v852 = vunpack.c.h.b16 %v556
        %v853 = vunpack.c.l.b16 %v557
        %v854 = vunpack.c.h.b16 %v557
        %v855 = vunpack.c.l.b16 %v558
        %v856 = vunpack.c.h.b16 %v558
        %v857 = vunpack.c.l.b16 %v559
        %v858 = vunpack.c.h.b16 %v559
        %v859 = vunpack.c.l.b16 %v560
        %v860 = vunpack.c.h.b16 %v560
        %v861 = vunpack.c.l.b16 %v561
        %v862 = vunpack.c.h.b16 %v561
        %v863 = vunpack.c.l.b16 %v562
        %v864 = vunpack.c.h.b16 %v562
        %v865 = vunpack.c.l.b16 %v563
        %v866 = vunpack.c.h.b16 %v563
        %v867 = vunpack.c.l.b16 %v564
        %v868 = vunpack.c.h.b16 %v564
        %v869 = vunpack.c.l.b16 %v565
        %v870 = vunpack.c.h.b16 %v565
        %v871 = vunpack.c.l.b16 %v566
        %v872 = vunpack.c.h.b16 %v566
        %v873 = vunpack.c.l.b16 %v567
        %v874 = vunpack.c.h.b16 %v567
        %v875 = vunpack.c.l.b16 %v568
        %v876 = vunpack.c.h.b16 %v568
        %v877 = vunpack.c.l.b16 %v569
        %v878 = vunpack.c.h.b16 %v569
        %v879 = vunpack.c.l.b16 %v570
        %v880 = vunpack.c.h.b16 %v570
        %v881 = vunpack.c.l.b16 %v571
        %v882 = vunpack.c.h.b16 %v571
        %v883 = vunpack.c.l.b16 %v572
        %v884 = vunpack.c.h.b16 %v572
        %v885 = vunpack.c.l.b16 %v573
        %v886 = vunpack.c.h.b16 %v573
        %v887 = vunpack.c.l.b16 %v574
        %v888 = vunpack.c.h.b16 %v574
        %v889 = vunpack.c.l.b16 %v575
        %v890 = vunpack.c.h.b16 %v575
        %v891 = vunpack.c.l.b16 %v576
        %v892 = vunpack.c.h.b16 %v576
        %v893 = vunpack.c.l.b16 %v577
        %v894 = vunpack.c.h.b16 %v577
        %v895 = vunpack.c.l.b16 %v578
        %v896 = vunpack.c.h.b16 %v578
        %v897 = vunpack.c.l.b16 %v579
        %v898 = vunpack.c.h.b16 %v579
        %v899 = vunpack.c.l.b16 %v580
        %v900 = vunpack.c.h.b16 %v580
        %v901 = vunpack.c.l.b16 %v581
        %v902 = vunpack.c.h.b16 %v581
        %v903 = vunpack.c.l.b16 %v582
        %v904 = vunpack.c.h.b16 %v582
        %v905 = vunpack.c.l.b16 %v583
        %v906 = vunpack.c.h.b16 %v583
        %v907 = vunpack.c.l.b16 %v584
        %v908 = vunpack.c.h.b16 %v584
        %v909 = vunpack.c.l.b16 %v585
        %v910 = vunpack.c.h.b16 %v585
        %v911 = vunpack.c.l.b16 %v586
        %v912 = vunpack.c.h.b16 %v586
        %v913 = vunpack.c.l.b16 %v587
        %v914 = vunpack.c.h.b16 %v587
        %v915 = vunpack.c.l.b16 %v588
        %v916 = vunpack.c.h.b16 %v588
        %v917 = vunpack.c.l.b16 %v589
        %v918 = vunpack.c.h.b16 %v589
        %v919 = vunpack.c.l.b16 %v590
        %v920 = vunpack.c.h.b16 %v590
        %v921 = vunpack.c.l.b16 %v591
        %v922 = vunpack.c.h.b16 %v591
        %v923 = vunpack.c.l.b16 %v592
        %v924 = vunpack.c.h.b16 %v592
        %v925 = vunpack.c.l.b16 %v593
        %v926 = vunpack.c.h.b16 %v593
        %v927 = vunpack.c.l.b16 %v594
        %v928 = vunpack.c.h.b16 %v594
        %v929 = vunpack.c.l.b16 %v595
        %v930 = vunpack.c.h.b16 %v595
        %v931 = vunpack.c.l.b16 %v596
        %v932 = vunpack.c.h.b16 %v596
        %v933 = vpack.c.b16 %v725, %v717
        %v934 = vpack.c.b16 %v726, %v718
        %v935 = vpack.c.b16 %v727, %v719
        %v936 = vpack.c.b16 %v728, %v720
        %v937 = vpack.c.b16 %v729, %v721
        %v938 = vpack.c.b16 %v730, %v722
        %v939 = vpack.c.b16 %v731, %v723
        %v940 = vpack.c.b16 %v732, %v724
        %v941 = vpack.c.b16 %v741, %v733
        %v942 = vpack.c.b16 %v742, %v734
        %v943 = vpack.c.b16 %v743, %v735
        %v944 = vpack.c.b16 %v744, %v736
        %v945 = vpack.c.b16 %v745, %v737
        %v946 = vpack.c.b16 %v746, %v738
        %v947 = vpack.c.b16 %v747, %v739
        %v948 = vpack.c.b16 %v748, %v740
        %v949 = vpack.c.b16 %v757, %v749
        %v950 = vpack.c.b16 %v758, %v750
        %v951 = vpack.c.b16 %v759, %v751
        %v952 = vpack.c.b16 %v760, %v752
        %v953 = vpack.c.b16 %v761, %v753
        %v954 = vpack.c.b16 %v762, %v754
        %v955 = vpack.c.b16 %v763, %v755
        %v956 = vpack.c.b16 %v764, %v756
        %v957 = vpack.c.b16 %v773, %v765
        %v958 = vpack.c.b16 %v774, %v766
        %v959 = vpack.c.b16 %v775, %v767
        %v960 = vpack.c.b16 %v776, %v768
        %v961 = vpack.c.b16 %v777, %v769
        %v962 = vpack.c.b16 %v778, %v770
        %v963 = vpack.c.b16 %v779, %v771
        %v964 = vpack.c.b16 %v780, %v772
        %v965 = vpack.c.b16 %v789, %v781
        %v966 = vpack.c.b16 %v790, %v782
        %v967 = vpack.c.b16 %v791, %v783
        %v968 = vpack.c.b16 %v792, %v784
        %v969 = vpack.c.b16 %v793, %v785
        %v970 = vpack.c.b16 %v794, %v786
        %v971 = vpack.c.b16 %v795, %v787
        %v972 = vpack.c.b16 %v796, %v788
        %v973 = vpack.c.b16 %v805, %v797
        %v974 = vpack.c.b16 %v806, %v798
        %v975 = vpack.c.b16 %v807, %v799
        %v976 = vpack.c.b16 %v808, %v800
        %v977 = vpack.c.b16 %v809, %v801
        %v978 = vpack.c.b16 %v810, %v802
        %v979 = vpack.c.b16 %v811, %v803
        %v980 = vpack.c.b16 %v812, %v804
        %v981 = vpack.c.b16 %v821, %v813
        %v982 = vpack.c.b16 %v822, %v814
        %v983 = vpack.c.b16 %v823, %v815
        %v984 = vpack.c.b16 %v824, %v816
        %v985 = vpack.c.b16 %v825, %v817
        %v986 = vpack.c.b16 %v826, %v818
        %v987 = vpack.c.b16 %v827, %v819
        %v988 = vpack.c.b16 %v828, %v820
        %v989 = vpack.c.b16 %v837, %v829
        %v990 = vpack.c.b16 %v838, %v830
        %v991 = vpack.c.b16 %v839, %v831
        %v992 = vpack.c.b16 %v840, %v832
        %v993 = vpack.c.b16 %v841, %v833
        %v994 = vpack.c.b16 %v842, %v834
        %v995 = vpack.c.b16 %v843, %v835
        %v996 = vpack.c.b16 %v844, %v836
        %v997 = vpack.c.b16 %v853, %v845
        %v998 = vpack.c.b16 %v854, %v846
        %v999 = vpack.c.b16 %v855, %v847
        %v1000 = vpack.c.b16 %v856, %v848
        %v1001 = vpack.c.b16 %v857, %v849
        %v1002 = vpack.c.b16 %v858, %v850
        %v1003 = vpack.c.b16 %v859, %v851
        %v1004 = vpack.c.b16 %v860, %v852
        %v1005 = vpack.c.b16 %v869, %v861
        %v1006 = vpack.c.b16 %v870, %v862
        %v1007 = vpack.c.b16 %v871, %v863
        %v1008 = vpack.c.b16 %v872, %v864
        %v1009 = vpack.c.b16 %v873, %v865
        %v1010 = vpack.c.b16 %v874, %v866
        %v1011 = vpack.c.b16 %v875, %v867
        %v1012 = vpack.c.b16 %v876, %v868
        %v1013 = vpack.c.b16 %v885, %v877
        %v1014 = vpack.c.b16 %v886, %v878
        %v1015 = vpack.c.b16 %v887, %v879
        %v1016 = vpack.c.b16 %v888, %v880
        %v1017 = vpack.c.b16 %v889, %v881
        %v1018 = vpack.c.b16 %v890, %v882
        %v1019 = vpack.c.b16 %v891, %v883
        %v1020 = vpack.c.b16 %v892, %v884
        %v1021 = vpack.c.b16 %v901, %v893
        %v1022 = vpack.c.b16 %v902, %v894
        %v1023 = vpack.c.b16 %v903, %v895
        %v1024 = vpack.c.b16 %v904, %v896
        %v1025 = vpack.c.b16 %v905, %v897
        %v1026 = vpack.c.b16 %v906, %v898
        %v1027 = vpack.c.b16 %v907, %v899
        %v1028 = vpack.c.b16 %v908, %v900
        %v1029 = vpack.c.b16 %v917, %v909
        %v1030 = vpack.c.b16 %v918, %v910
        %v1031 = vpack.c.b16 %v919, %v911
        %v1032 = vpack.c.b16 %v920, %v912
        %v1033 = vpack.c.b16 %v921, %v913
        %v1034 = vpack.c.b16 %v922, %v914
        %v1035 = vpack.c.b16 %v923, %v915
        %v1036 = vpack.c.b16 %v924, %v916
        %v1037 = vpack.c.b16 %v925, %v925
        %v1038 = vpack.c.b16 %v926, %v926
        %v1039 = vpack.c.b16 %v927, %v927
        %v1040 = vpack.c.b16 %v928, %v928
        %v1041 = vpack.c.b16 %v929, %v929
        %v1042 = vpack.c.b16 %v930, %v930
        %v1043 = vpack.c.b16 %v931, %v931
        %v1044 = vpack.c.b16 %v932, %v932
        %vm1149 = vcmask 719872
        %v1151 = vsel %vm1149, %v607, 0
        %vm1153 = vcmask 1043456
        %v1155 = vsel %vm1153, %v1037, 0
        %v1158 = vsel %vm1153, %v1038, 0
        %v1161 = vsel %vm1153, %v1039, 0
        %v1164 = vsel %vm1153, %v1040, 0
        %v1167 = vsel %vm1153, %v1041, 0
        %v1170 = vsel %vm1153, %v1042, 0
        %v1173 = vsel %vm1153, %v1043, 0
        %v1176 = vsel %vm1153, %v1044, 0
        %1178 = vmatpush.bf16.msra.mxu0 %v989
        %1179 = vmatpush.bf16.msra.mxu0 %v981
        %1180 = vmatpush.bf16.msra.mxu0 %v973
        %1181 = vmatpush.bf16.msra.mxu0 %v965
        %1182 = vmatpush.bf16.msra.mxu0 %v957
        %1183 = vmatpush.bf16.msra.mxu0 %v949
        %1184 = vmatpush.bf16.msra.mxu0 %v941
        %1185 = vmatpush.bf16.msra.mxu0 %v933
        %1186 = vmatmul.bf16.gmra.mxu0 %v606
        %v1187 = vpop.f32.mrf.mxu0
        %v1188 = vadd.f32 %v601, %v1187
        %v1189 = vpop.f32.mrf.mxu0
        %1190 = vdwg.mxu0
        %1191 = vmatpush.bf16.msra.mxu0 0
        %1192 = vmatpush.bf16.msra.mxu0 0
        %1193 = vmatpush.bf16.msra.mxu0 %v1155
        %1194 = vmatpush.bf16.msra.mxu0 %v1029
        %1195 = vmatpush.bf16.msra.mxu0 %v1021
        %1196 = vmatpush.bf16.msra.mxu0 %v1013
        %1197 = vmatpush.bf16.msra.mxu0 %v1005
        %1198 = vmatpush.bf16.msra.mxu0 %v997
        %1199 = vmatmul.bf16.gmra.mxu0 %v1151
        %v1200 = vpop.f32.mrf.mxu0
        %v1201 = vadd.f32 %v1188, %v1200
        %v1202 = vpop.f32.mrf.mxu0
        %1203 = vdwg.mxu0
        %1204 = vmatpush.bf16.msra.mxu0 %v990
        %1205 = vmatpush.bf16.msra.mxu0 %v982
        %1206 = vmatpush.bf16.msra.mxu0 %v974
        %1207 = vmatpush.bf16.msra.mxu0 %v966
        %1208 = vmatpush.bf16.msra.mxu0 %v958
        %1209 = vmatpush.bf16.msra.mxu0 %v950
        %1210 = vmatpush.bf16.msra.mxu0 %v942
        %1211 = vmatpush.bf16.msra.mxu0 %v934
        %1212 = vmatmul.bf16.gmra.mxu0 %v606
        %v1213 = vpop.f32.mrf.mxu0
        %v1214 = vadd.f32 %v601, %v1213
        %v1215 = vpop.f32.mrf.mxu0
        %1216 = vdwg.mxu0
        %1217 = vmatpush.bf16.msra.mxu0 0
        %1218 = vmatpush.bf16.msra.mxu0 0
        %1219 = vmatpush.bf16.msra.mxu0 %v1158
        %1220 = vmatpush.bf16.msra.mxu0 %v1030
        %1221 = vmatpush.bf16.msra.mxu0 %v1022
        %1222 = vmatpush.bf16.msra.mxu0 %v1014
        %1223 = vmatpush.bf16.msra.mxu0 %v1006
        %1224 = vmatpush.bf16.msra.mxu0 %v998
        %1225 = vmatmul.bf16.gmra.mxu0 %v1151
        %v1226 = vpop.f32.mrf.mxu0
        %v1227 = vadd.f32 %v1214, %v1226
        %v1228 = vpop.f32.mrf.mxu0
        %1229 = vdwg.mxu0
        %1230 = vmatpush.bf16.msra.mxu0 %v991
        %1231 = vmatpush.bf16.msra.mxu0 %v983
        %1232 = vmatpush.bf16.msra.mxu0 %v975
        %1233 = vmatpush.bf16.msra.mxu0 %v967
        %1234 = vmatpush.bf16.msra.mxu0 %v959
        %1235 = vmatpush.bf16.msra.mxu0 %v951
        %1236 = vmatpush.bf16.msra.mxu0 %v943
        %1237 = vmatpush.bf16.msra.mxu0 %v935
        %1238 = vmatmul.bf16.gmra.mxu0 %v606
        %v1239 = vpop.f32.mrf.mxu0
        %v1240 = vadd.f32 %v601, %v1239
        %v1241 = vpop.f32.mrf.mxu0
        %1242 = vdwg.mxu0
        %1243 = vmatpush.bf16.msra.mxu0 0
        %1244 = vmatpush.bf16.msra.mxu0 0
        %1245 = vmatpush.bf16.msra.mxu0 %v1161
        %1246 = vmatpush.bf16.msra.mxu0 %v1031
        %1247 = vmatpush.bf16.msra.mxu0 %v1023
        %1248 = vmatpush.bf16.msra.mxu0 %v1015
        %1249 = vmatpush.bf16.msra.mxu0 %v1007
        %1250 = vmatpush.bf16.msra.mxu0 %v999
        %1251 = vmatmul.bf16.gmra.mxu0 %v1151
        %v1252 = vpop.f32.mrf.mxu0
        %v1253 = vadd.f32 %v1240, %v1252
        %v1254 = vpop.f32.mrf.mxu0
        %1255 = vdwg.mxu0
        %1256 = vmatpush.bf16.msra.mxu0 %v992
        %1257 = vmatpush.bf16.msra.mxu0 %v984
        %1258 = vmatpush.bf16.msra.mxu0 %v976
        %1259 = vmatpush.bf16.msra.mxu0 %v968
        %1260 = vmatpush.bf16.msra.mxu0 %v960
        %1261 = vmatpush.bf16.msra.mxu0 %v952
        %1262 = vmatpush.bf16.msra.mxu0 %v944
        %1263 = vmatpush.bf16.msra.mxu0 %v936
        %1264 = vmatmul.bf16.gmra.mxu0 %v606
        %v1265 = vpop.f32.mrf.mxu0
        %v1266 = vadd.f32 %v601, %v1265
        %v1267 = vpop.f32.mrf.mxu0
        %1268 = vdwg.mxu0
        %1269 = vmatpush.bf16.msra.mxu0 0
        %1270 = vmatpush.bf16.msra.mxu0 0
        %1271 = vmatpush.bf16.msra.mxu0 %v1164
        %1272 = vmatpush.bf16.msra.mxu0 %v1032
        %1273 = vmatpush.bf16.msra.mxu0 %v1024
        %1274 = vmatpush.bf16.msra.mxu0 %v1016
        %1275 = vmatpush.bf16.msra.mxu0 %v1008
        %1276 = vmatpush.bf16.msra.mxu0 %v1000
        %1277 = vmatmul.bf16.gmra.mxu0 %v1151
        %v1278 = vpop.f32.mrf.mxu0
        %v1279 = vadd.f32 %v1266, %v1278
        %v1280 = vpop.f32.mrf.mxu0
        %1281 = vdwg.mxu0
        %1282 = vmatpush.bf16.msra.mxu0 %v993
        %1283 = vmatpush.bf16.msra.mxu0 %v985
        %1284 = vmatpush.bf16.msra.mxu0 %v977
        %1285 = vmatpush.bf16.msra.mxu0 %v969
        %1286 = vmatpush.bf16.msra.mxu0 %v961
        %1287 = vmatpush.bf16.msra.mxu0 %v953
        %1288 = vmatpush.bf16.msra.mxu0 %v945
        %1289 = vmatpush.bf16.msra.mxu0 %v937
        %1290 = vmatmul.bf16.gmra.mxu0 %v606
        %v1291 = vpop.f32.mrf.mxu0
        %v1292 = vadd.f32 %v601, %v1291
        %v1293 = vpop.f32.mrf.mxu0
        %1294 = vdwg.mxu0
        %1295 = vmatpush.bf16.msra.mxu0 0
        %1296 = vmatpush.bf16.msra.mxu0 0
        %1297 = vmatpush.bf16.msra.mxu0 %v1167
        %1298 = vmatpush.bf16.msra.mxu0 %v1033
        %1299 = vmatpush.bf16.msra.mxu0 %v1025
        %1300 = vmatpush.bf16.msra.mxu0 %v1017
        %1301 = vmatpush.bf16.msra.mxu0 %v1009
        %1302 = vmatpush.bf16.msra.mxu0 %v1001
        %1303 = vmatmul.bf16.gmra.mxu0 %v1151
        %v1304 = vpop.f32.mrf.mxu0
        %v1305 = vadd.f32 %v1292, %v1304
        %v1306 = vpop.f32.mrf.mxu0
        %1307 = vdwg.mxu0
        %1308 = vmatpush.bf16.msra.mxu0 %v994
        %1309 = vmatpush.bf16.msra.mxu0 %v986
        %1310 = vmatpush.bf16.msra.mxu0 %v978
        %1311 = vmatpush.bf16.msra.mxu0 %v970
        %1312 = vmatpush.bf16.msra.mxu0 %v962
        %1313 = vmatpush.bf16.msra.mxu0 %v954
        %1314 = vmatpush.bf16.msra.mxu0 %v946
        %1315 = vmatpush.bf16.msra.mxu0 %v938
        %1316 = vmatmul.bf16.gmra.mxu0 %v606
        %v1317 = vpop.f32.mrf.mxu0
        %v1318 = vadd.f32 %v601, %v1317
        %v1319 = vpop.f32.mrf.mxu0
        %1320 = vdwg.mxu0
        %1321 = vmatpush.bf16.msra.mxu0 0
        %1322 = vmatpush.bf16.msra.mxu0 0
        %1323 = vmatpush.bf16.msra.mxu0 %v1170
        %1324 = vmatpush.bf16.msra.mxu0 %v1034
        %1325 = vmatpush.bf16.msra.mxu0 %v1026
        %1326 = vmatpush.bf16.msra.mxu0 %v1018
        %1327 = vmatpush.bf16.msra.mxu0 %v1010
        %1328 = vmatpush.bf16.msra.mxu0 %v1002
        %1329 = vmatmul.bf16.gmra.mxu0 %v1151
        %v1330 = vpop.f32.mrf.mxu0
        %v1331 = vadd.f32 %v1318, %v1330
        %v1332 = vpop.f32.mrf.mxu0
        %1333 = vdwg.mxu0
        %1334 = vmatpush.bf16.msra.mxu0 %v995
        %1335 = vmatpush.bf16.msra.mxu0 %v987
        %1336 = vmatpush.bf16.msra.mxu0 %v979
        %1337 = vmatpush.bf16.msra.mxu0 %v971
        %1338 = vmatpush.bf16.msra.mxu0 %v963
        %1339 = vmatpush.bf16.msra.mxu0 %v955
        %1340 = vmatpush.bf16.msra.mxu0 %v947
        %1341 = vmatpush.bf16.msra.mxu0 %v939
        %1342 = vmatmul.bf16.gmra.mxu0 %v606
        %v1343 = vpop.f32.mrf.mxu0
        %v1344 = vadd.f32 %v601, %v1343
        %v1345 = vpop.f32.mrf.mxu0
        %1346 = vdwg.mxu0
        %1347 = vmatpush.bf16.msra.mxu0 0
        %1348 = vmatpush.bf16.msra.mxu0 0
        %1349 = vmatpush.bf16.msra.mxu0 %v1173
        %1350 = vmatpush.bf16.msra.mxu0 %v1035
        %1351 = vmatpush.bf16.msra.mxu0 %v1027
        %1352 = vmatpush.bf16.msra.mxu0 %v1019
        %1353 = vmatpush.bf16.msra.mxu0 %v1011
        %1354 = vmatpush.bf16.msra.mxu0 %v1003
        %1355 = vmatmul.bf16.gmra.mxu0 %v1151
        %v1356 = vpop.f32.mrf.mxu0
        %v1357 = vadd.f32 %v1344, %v1356
        %v1358 = vpop.f32.mrf.mxu0
        %1359 = vdwg.mxu0
        %1360 = vmatpush.bf16.msra.mxu0 %v996
        %1361 = vmatpush.bf16.msra.mxu0 %v988
        %1362 = vmatpush.bf16.msra.mxu0 %v980
        %1363 = vmatpush.bf16.msra.mxu0 %v972
        %1364 = vmatpush.bf16.msra.mxu0 %v964
        %1365 = vmatpush.bf16.msra.mxu0 %v956
        %1366 = vmatpush.bf16.msra.mxu0 %v948
        %1367 = vmatpush.bf16.msra.mxu0 %v940
        %1368 = vmatmul.bf16.gmra.mxu0 %v606
        %v1369 = vpop.f32.mrf.mxu0
        %v1370 = vadd.f32 %v601, %v1369
        %v1371 = vpop.f32.mrf.mxu0
        %1372 = vdwg.mxu0
        %1373 = vmatpush.bf16.msra.mxu0 0
        %1374 = vmatpush.bf16.msra.mxu0 0
        %1375 = vmatpush.bf16.msra.mxu0 %v1176
        %1376 = vmatpush.bf16.msra.mxu0 %v1036
        %1377 = vmatpush.bf16.msra.mxu0 %v1028
        %1378 = vmatpush.bf16.msra.mxu0 %v1020
        %1379 = vmatpush.bf16.msra.mxu0 %v1012
        %1380 = vmatpush.bf16.msra.mxu0 %v1004
        %1381 = vmatmul.bf16.gmra.mxu0 %v1151
        %v1382 = vpop.f32.mrf.mxu0
        %v1383 = vadd.f32 %v1370, %v1382
        %v1384 = vpop.f32.mrf.mxu0
        %1385 = vdwg.mxu0
        %vm1386 = vcmp.ge.f32.partialorder %v1201, 0.0
        %vm1387 = vcmp.ge.f32.partialorder %v1227, 0.0
        %vm1388 = vcmp.ge.f32.partialorder %v1253, 0.0
        %vm1389 = vcmp.ge.f32.partialorder %v1279, 0.0
        %vm1390 = vcmp.ge.f32.partialorder %v1305, 0.0
        %vm1391 = vcmp.ge.f32.partialorder %v1331, 0.0
        %vm1392 = vcmp.ge.f32.partialorder %v1357, 0.0
        %vm1393 = vcmp.ge.f32.partialorder %v1383, 0.0
        %v1394 = vmul.f32 %v1201, 0.01
        %v1395 = vmul.f32 %v1227, 0.01
        %v1396 = vmul.f32 %v1253, 0.01
        %v1397 = vmul.f32 %v1279, 0.01
        %v1398 = vmul.f32 %v1305, 0.01
        %v1399 = vmul.f32 %v1331, 0.01
        %v1400 = vmul.f32 %v1357, 0.01
        %v1401 = vmul.f32 %v1383, 0.01
        %v1402 = vsel %vm1386, %v1201, %v1394
        %v1403 = vsel %vm1387, %v1227, %v1395
        %v1404 = vsel %vm1388, %v1253, %v1396
        %v1405 = vsel %vm1389, %v1279, %v1397
        %v1406 = vsel %vm1390, %v1305, %v1398
        %v1407 = vsel %vm1391, %v1331, %v1399
        %v1408 = vsel %vm1392, %v1357, %v1400
        %v1409 = vsel %vm1393, %v1383, %v1401
        %v1410 = vld [vmem:[%s3] sm:$0x1]
        %v1411 = vld [vmem:[#allocation2] sm:$0x1]
        %1413 = vset.pattern.permute.xlu0 0
        %1414 = vperm.xlu0 %1413, %v1411
        %v1415 = vpop.permute.xlu0 %1414
        %v1417 = vperm.slane %v1415, 0
        %vm1418 = vcmask 64512
        %v1420 = vsel %vm1418, %v1410, 0
        %1422 = vmatpush.msra.mxu0 0.0
        %1423 = vmatpush.msra.mxu0 0.0
        %1424 = vmatpush.msra.mxu0 0.0
        %1425 = vmatpush.msra.mxu0 0.0
        %1426 = vmatpush.msra.mxu0 0.0
        %1427 = vmatpush.msra.mxu0 0.0
        %1428 = vmatpush.msra.mxu0 0.0
        %1429 = vmatpush.msra.mxu0 0.0
        %1430 = vmatpush.msra.mxu0 0.0
        %1431 = vmatpush.msra.mxu0 0.0
        %1432 = vmatpush.msra.mxu0 0.0
        %1433 = vmatpush.msra.mxu0 0.0
        %1434 = vmatpush.msra.mxu0 0.0
        %1435 = vmatpush.msra.mxu0 0.0
        %1436 = vmatpush.msra.mxu0 0.0
        %1437 = vmatpush.msra.mxu0 %v1402
        %1438 = vmatmul.f32.gmra.mxu0 %v1420
        %v1439 = vpop.f32.mrf.mxu0
        %v1440 = vadd.f32 %v1417, %v1439
        %1441 = vdwg.mxu0
        %1442 = vmatpush.msra.mxu0 0.0
        %1443 = vmatpush.msra.mxu0 0.0
        %1444 = vmatpush.msra.mxu0 0.0
        %1445 = vmatpush.msra.mxu0 0.0
        %1446 = vmatpush.msra.mxu0 0.0
        %1447 = vmatpush.msra.mxu0 0.0
        %1448 = vmatpush.msra.mxu0 0.0
        %1449 = vmatpush.msra.mxu0 0.0
        %1450 = vmatpush.msra.mxu0 0.0
        %1451 = vmatpush.msra.mxu0 0.0
        %1452 = vmatpush.msra.mxu0 0.0
        %1453 = vmatpush.msra.mxu0 0.0
        %1454 = vmatpush.msra.mxu0 0.0
        %1455 = vmatpush.msra.mxu0 0.0
        %1456 = vmatpush.msra.mxu0 0.0
        %1457 = vmatpush.msra.mxu0 %v1403
        %1458 = vmatmul.f32.gmra.mxu0 %v1420
        %v1459 = vpop.f32.mrf.mxu0
        %v1460 = vadd.f32 %v1417, %v1459
        %1461 = vdwg.mxu0
        %1462 = vmatpush.msra.mxu0 0.0
        %1463 = vmatpush.msra.mxu0 0.0
        %1464 = vmatpush.msra.mxu0 0.0
        %1465 = vmatpush.msra.mxu0 0.0
        %1466 = vmatpush.msra.mxu0 0.0
        %1467 = vmatpush.msra.mxu0 0.0
        %1468 = vmatpush.msra.mxu0 0.0
        %1469 = vmatpush.msra.mxu0 0.0
        %1470 = vmatpush.msra.mxu0 0.0
        %1471 = vmatpush.msra.mxu0 0.0
        %1472 = vmatpush.msra.mxu0 0.0
        %1473 = vmatpush.msra.mxu0 0.0
        %1474 = vmatpush.msra.mxu0 0.0
        %1475 = vmatpush.msra.mxu0 0.0
        %1476 = vmatpush.msra.mxu0 0.0
        %1477 = vmatpush.msra.mxu0 %v1404
        %1478 = vmatmul.f32.gmra.mxu0 %v1420
        %v1479 = vpop.f32.mrf.mxu0
        %v1480 = vadd.f32 %v1417, %v1479
        %1481 = vdwg.mxu0
        %1482 = vmatpush.msra.mxu0 0.0
        %1483 = vmatpush.msra.mxu0 0.0
        %1484 = vmatpush.msra.mxu0 0.0
        %1485 = vmatpush.msra.mxu0 0.0
        %1486 = vmatpush.msra.mxu0 0.0
        %1487 = vmatpush.msra.mxu0 0.0
        %1488 = vmatpush.msra.mxu0 0.0
        %1489 = vmatpush.msra.mxu0 0.0
        %1490 = vmatpush.msra.mxu0 0.0
        %1491 = vmatpush.msra.mxu0 0.0
        %1492 = vmatpush.msra.mxu0 0.0
        %1493 = vmatpush.msra.mxu0 0.0
        %1494 = vmatpush.msra.mxu0 0.0
        %1495 = vmatpush.msra.mxu0 0.0
        %1496 = vmatpush.msra.mxu0 0.0
        %1497 = vmatpush.msra.mxu0 %v1405
        %1498 = vmatmul.f32.gmra.mxu0 %v1420
        %v1499 = vpop.f32.mrf.mxu0
        %v1500 = vadd.f32 %v1417, %v1499
        %1501 = vdwg.mxu0
        %1502 = vmatpush.msra.mxu0 0.0
        %1503 = vmatpush.msra.mxu0 0.0
        %1504 = vmatpush.msra.mxu0 0.0
        %1505 = vmatpush.msra.mxu0 0.0
        %1506 = vmatpush.msra.mxu0 0.0
        %1507 = vmatpush.msra.mxu0 0.0
        %1508 = vmatpush.msra.mxu0 0.0
        %1509 = vmatpush.msra.mxu0 0.0
        %1510 = vmatpush.msra.mxu0 0.0
        %1511 = vmatpush.msra.mxu0 0.0
        %1512 = vmatpush.msra.mxu0 0.0
        %1513 = vmatpush.msra.mxu0 0.0
        %1514 = vmatpush.msra.mxu0 0.0
        %1515 = vmatpush.msra.mxu0 0.0
        %1516 = vmatpush.msra.mxu0 0.0
        %1517 = vmatpush.msra.mxu0 %v1406
        %1518 = vmatmul.f32.gmra.mxu0 %v1420
        %v1519 = vpop.f32.mrf.mxu0
        %v1520 = vadd.f32 %v1417, %v1519
        %1521 = vdwg.mxu0
        %1522 = vmatpush.msra.mxu0 0.0
        %1523 = vmatpush.msra.mxu0 0.0
        %1524 = vmatpush.msra.mxu0 0.0
        %1525 = vmatpush.msra.mxu0 0.0
        %1526 = vmatpush.msra.mxu0 0.0
        %1527 = vmatpush.msra.mxu0 0.0
        %1528 = vmatpush.msra.mxu0 0.0
        %1529 = vmatpush.msra.mxu0 0.0
        %1530 = vmatpush.msra.mxu0 0.0
        %1531 = vmatpush.msra.mxu0 0.0
        %1532 = vmatpush.msra.mxu0 0.0
        %1533 = vmatpush.msra.mxu0 0.0
        %1534 = vmatpush.msra.mxu0 0.0
        %1535 = vmatpush.msra.mxu0 0.0
        %1536 = vmatpush.msra.mxu0 0.0
        %1537 = vmatpush.msra.mxu0 %v1407
        %1538 = vmatmul.f32.gmra.mxu0 %v1420
        %v1539 = vpop.f32.mrf.mxu0
        %v1540 = vadd.f32 %v1417, %v1539
        %1541 = vdwg.mxu0
        %1542 = vmatpush.msra.mxu0 0.0
        %1543 = vmatpush.msra.mxu0 0.0
        %1544 = vmatpush.msra.mxu0 0.0
        %1545 = vmatpush.msra.mxu0 0.0
        %1546 = vmatpush.msra.mxu0 0.0
        %1547 = vmatpush.msra.mxu0 0.0
        %1548 = vmatpush.msra.mxu0 0.0
        %1549 = vmatpush.msra.mxu0 0.0
        %1550 = vmatpush.msra.mxu0 0.0
        %1551 = vmatpush.msra.mxu0 0.0
        %1552 = vmatpush.msra.mxu0 0.0
        %1553 = vmatpush.msra.mxu0 0.0
        %1554 = vmatpush.msra.mxu0 0.0
        %1555 = vmatpush.msra.mxu0 0.0
        %1556 = vmatpush.msra.mxu0 0.0
        %1557 = vmatpush.msra.mxu0 %v1408
        %1558 = vmatmul.f32.gmra.mxu0 %v1420
        %v1559 = vpop.f32.mrf.mxu0
        %v1560 = vadd.f32 %v1417, %v1559
        %1561 = vdwg.mxu0
        %1562 = vmatpush.msra.mxu0 0.0
        %1563 = vmatpush.msra.mxu0 0.0
        %1564 = vmatpush.msra.mxu0 0.0
        %1565 = vmatpush.msra.mxu0 0.0
        %1566 = vmatpush.msra.mxu0 0.0
        %1567 = vmatpush.msra.mxu0 0.0
        %1568 = vmatpush.msra.mxu0 0.0
        %1569 = vmatpush.msra.mxu0 0.0
        %1570 = vmatpush.msra.mxu0 0.0
        %1571 = vmatpush.msra.mxu0 0.0
        %1572 = vmatpush.msra.mxu0 0.0
        %1573 = vmatpush.msra.mxu0 0.0
        %1574 = vmatpush.msra.mxu0 0.0
        %1575 = vmatpush.msra.mxu0 0.0
        %1576 = vmatpush.msra.mxu0 0.0
        %1577 = vmatpush.msra.mxu0 %v1409
        %1578 = vmatmul.f32.gmra.mxu0 %v1420
        %v1579 = vpop.f32.mrf.mxu0
        %v1580 = vadd.f32 %v1417, %v1579
        %1581 = vdwg.mxu0
        %v1590 = vrot.slane %v1460, 7
        %v1591 = vrot.slane %v1480, 6
        %v1592 = vrot.slane %v1500, 5
        %v1593 = vrot.slane %v1520, 4
        %v1594 = vrot.slane %v1540, 3
        %v1595 = vrot.slane %v1560, 2
        %v1596 = vrot.slane %v1580, 1
        %vm1597 = vcmask 1040384
        %v1598 = vsel %vm1597, %v1440, %v1590
        %vm1599 = vcmask 1042434
        %v1600 = vsel %vm1599, %v1591, %v1592
        %vm1601 = vcmask 1041408
        %v1602 = vsel %vm1601, %v1598, %v1600
        %vm1603 = vcmask 1044484
        %v1604 = vsel %vm1603, %v1593, %v1594
        %vm1605 = vcmask 1046534
        %v1606 = vsel %vm1605, %v1595, %v1596
        %vm1607 = vcmask 1045508
        %v1608 = vsel %vm1607, %v1604, %v1606
        %v1609 = vsel %vm1153, %v1602, %v1608
        %1611 = vst [vmem:[%s485] sm:$0xff] %v1609
        %s1612 = smul.u32 8, %s23
        %p1613 = scmp.lt.s32.totalorder %s22, 1
        %s1614 = scalar_select %p1613, %s22, 1
        %p1615 = scmp.lt.s32.totalorder %s1612, 15
        %s1616 = scalar_select %p1615, %s1612, 15
        %s1617 = smul.addr %s1614, 16
        %s1618 = sadd.s32 %s1616, %s1617
        %s1619 = scalar_lea.vmem %s5, %s1618
        // Predicated region
        $region64: #{seq2seq3d_forward.13} parent=58 // pred_check
          %p1620 = pneg %p162
        $region65: #{seq2seq3d_forward.13} parent=58 // pred_check_branch
          %1622 = sbr.rel (%p1620) target = $region67
        $region66: #{seq2seq3d_forward.13} parent=58 // pred_region
          %s1623 = smul.u32 8, %s23
        $region67: #{seq2seq3d_forward.13} parent=58 // pred_fallthru
          _
      $region59: #{seq2seq3d_forward.13} parent=5 // pred_fallthru
        _
      %p1624 = scmp.le.s32.totalorder 2, %s13
      // Predicated region
      $region68: #{seq2seq3d_forward.13} parent=5 // pred_check
        %p1625 = pneg %p1624
      $region69: #{seq2seq3d_forward.13} parent=5 // pred_check_branch
        %1627 = sbr.rel (%p1625) target = $region71
      $region70: #{seq2seq3d_forward.13} parent=5 // pred_region
        %s1628 = ssub.s32 %s13, 2
        // Predicated region
        $region72: #{seq2seq3d_forward.13} parent=70 // pred_check
          %p1629 = pneg %p168
        $region73: #{seq2seq3d_forward.13} parent=70 // pred_check_branch
          %1631 = sbr.rel (%p1629) target = $region75
        $region74: #{seq2seq3d_forward.13} parent=70 // pred_region
          %s1632 = smul.u32 8, %s25
          %p1633 = scmp.lt.s32.totalorder %s24, 1
          %s1634 = scalar_select %p1633, %s24, 1
          %p1635 = scmp.lt.s32.totalorder %s1632, 15
          %s1636 = scalar_select %p1635, %s1632, 15
          %s1637 = smul.addr %s1634, 16
          %s1638 = sadd.s32 %s1636, %s1637
          %s1639 = scalar_lea.vmem %s5, %s1638
        $region75: #{seq2seq3d_forward.13} parent=70 // pred_fallthru
          _
      $region71: #{seq2seq3d_forward.13} parent=5 // pred_fallthru
        _
    $region6: #{seq2seq3d_forward.13} parent=1 // loop_footer
      %s17 = sadd.s32 1, %s13
    $region7: #{seq2seq3d_forward.13} parent=1 // loop_footer_branch
      %12 = sbr.rel target = $region3
    $region8: #{seq2seq3d_forward.13} parent=1 // loop_exit
      _

</llo_original>
